<compile_context>
chip_gen: v5e
topology: v5e:2x2
jax: 0.10.0
libtpu: 0.0.40
codegen_flags: <defaults>
</compile_context>

<pallas_src>
import jax
import jax.numpy as jnp
import numpy as np
from jax.experimental import pallas as pl
from jax.experimental.pallas import tpu as pltpu


# ----------------------------- fused kernel ----------------------------------

def _mlstm_fcn_kernel(
        x_lstm_ref,                         # [T*B, F]       f32 (time-major, flattened)
        xfold_ref,                          # [B*T1, K1*F]   f32 (conv1 taps host-folded)
        wih_ref, whh_ref, lstm_b_ref,       # [F,4H] bf16, [H,4H] bf16, [1,4H] f32 (i,f,o,g)
        w1_ref, bn1_s_ref, bn1_b_ref,       # [K1*F, C1] bf16, [1,C1] f32, [1,C1] f32
        se1_w1_ref, se1_w2_ref,             # [C1,C1/r] bf16, [C1/r,C1] bf16
        w2_ref, bn2_s_ref, bn2_b_ref,       # [K2*C1, C2] bf16, ...
        se2_w1_ref, se2_w2_ref,
        w3_ref, bn3_s_ref, bn3_b_ref,       # [K3*C2, C3] bf16, ...
        fc_wh_ref, fc_wc_ref, fc_b_ref,     # [H,NCp] bf16, [C3,NCp] bf16, [1,NCp] f32
        out_ref,                            # [B, NCp] f32 (padded log-probs)
):
    f32 = jnp.float32
    bf16 = jnp.bfloat16

    B = out_ref.shape[0]
    H = whh_ref.shape[0]
    T = x_lstm_ref.shape[0] // B
    C1 = bn1_s_ref.shape[1]
    C2 = bn2_s_ref.shape[1]
    C3 = bn3_s_ref.shape[1]
    T1 = xfold_ref.shape[0] // B
    K2 = w2_ref.shape[0] // C1
    K3 = w3_ref.shape[0] // C2
    T2 = T1 - K2 + 1
    T3 = T2 - K3 + 1

    # ------------------ LSTM branch (hidden state at final step) ------------
    # Input projection hoisted out of the serial loop: ONE [T*B,F]x[F,4H] matmul.
    wih = wih_ref[...]
    whh = whh_ref[...]
    gx = jnp.dot(x_lstm_ref[...].astype(bf16), wih,
                 preferred_element_type=f32)                  # [T*B, 4H]
    gx = gx + lstm_b_ref[...]                                 # bias broadcast, once

    h = jnp.zeros((B, H), f32)
    c = jnp.zeros((B, H), f32)
    # TODO(synk): hold whh resident in the MXU across the 16 steps via
    # pltpu.matmul_push_rhs / matmul_acc_lhs / matmul_pop (N=512 needs multi-tile
    # staging that differs per chip generation); kept as jnp.dot for portability.
    for t in range(T):          # static unroll; h/c live in vregs (no scratch)
        gates = gx[t * B:(t + 1) * B, :] + jnp.dot(
            h.astype(bf16), whh, preferred_element_type=f32)  # [B, 4H]
        # gate order (i, f, o, g) after host-side column permutation:
        sig = jax.nn.sigmoid(gates[:, 0:3 * H])               # one wide sigmoid
        gg = jnp.tanh(gates[:, 3 * H:4 * H])                  # one tanh
        ig = sig[:, 0:H]
        fg = sig[:, H:2 * H]
        og = sig[:, 2 * H:3 * H]
        c = fg * c + ig * gg
        h = og * jnp.tanh(c)                                  # x1 = lstm_out[:, -1, :]

    # ------------------ FCN branch (batched over B, taps in contraction dim) ---
    def bn_relu(acc, s_ref, b_ref):
        return jnp.maximum(acc * s_ref[...] + b_ref[...], 0.0)

    def per_sample_mean(y2d, t_len):
        # [B*t_len, C] -> [B, C] (per-sample mean over time)
        return jnp.concatenate(
            [jnp.mean(y2d[b * t_len:(b + 1) * t_len, :], axis=0, keepdims=True)
             for b in range(B)], axis=0)

    def se(y2d, t_len, w1_r, w2_r):
        # squeeze-excite on a [B*t_len, C] slab; SE matmuls batched over B.
        s = per_sample_mean(y2d, t_len)                       # [B, C]
        s = jnp.maximum(jnp.dot(s.astype(bf16), w1_r[...],
                                preferred_element_type=f32), 0.0)
        s = jax.nn.sigmoid(jnp.dot(s.astype(bf16), w2_r[...],
                                   preferred_element_type=f32))
        return jnp.concatenate(
            [y2d[b * t_len:(b + 1) * t_len, :] * s[b:b + 1, :]
             for b in range(B)], axis=0)

    def fold_taps(y2d, t_in, k_taps, t_out):
        # [B*t_in, C_in] -> [B*t_out, k_taps*C_in]; lane-concat offsets are
        # multiples of C_in (128 / 256), i.e. 128-aligned.
        slabs = []
        for b in range(B):
            base = b * t_in
            slabs.append(jnp.concatenate(
                [y2d[base + k: base + k + t_out, :] for k in range(k_taps)],
                axis=-1))
        return jnp.concatenate(slabs, axis=0)

    # conv1 + bn + relu: taps folded on the host -> one [B*T1, K1*F] x [K1*F, C1]
    y = bn_relu(jnp.dot(xfold_ref[...].astype(bf16), w1_ref[...],
                        preferred_element_type=f32), bn1_s_ref, bn1_b_ref)
    y = se(y, T1, se1_w1_ref, se1_w2_ref)

    # conv2 + bn + relu: one [B*T2, K2*C1] x [K2*C1, C2] matmul
    a2 = fold_taps(y, T1, K2, T2)
    y = bn_relu(jnp.dot(a2.astype(bf16), w2_ref[...],
                        preferred_element_type=f32), bn2_s_ref, bn2_b_ref)
    y = se(y, T2, se2_w1_ref, se2_w2_ref)

    # conv3 + bn + relu: one [B*T3, K3*C2] x [K3*C2, C3] matmul
    a3 = fold_taps(y, T2, K3, T3)
    y = bn_relu(jnp.dot(a3.astype(bf16), w3_ref[...],
                        preferred_element_type=f32), bn3_s_ref, bn3_b_ref)

    # ------------------ head: batched, lane-dense store -----------------------
    # TODO(synk): on v7x the LSTM and FCN branches could run on the two
    # TensorCores via pl.core_map + CMEM handoff; kept single-core for portability.
    x2 = per_sample_mean(y, T3)                               # [B, C3]
    logits = (jnp.dot(h.astype(bf16), fc_wh_ref[...],
                      preferred_element_type=f32)
              + jnp.dot(x2.astype(bf16), fc_wc_ref[...],
                        preferred_element_type=f32)
              + fc_b_ref[...])                                # [B, NCp]
    m = jnp.max(logits, axis=1, keepdims=True)
    z = logits - m
    lse = jnp.log(jnp.sum(jnp.exp(z), axis=1, keepdims=True))
    out_ref[...] = z - lse


# ----------------------------- wrapper ----------------------------------------

def mlstm_fcn_forward(x, kp, num_classes):
    """x: [B, T, F] float32 -> log-probs [B, num_classes]."""
    B, T, F = x.shape
    NCp = kp['fc_b'].shape[1]
    K1 = kp['w1'].shape[0] // F
    T1 = T - K1 + 1

    # time-major flattened view for the LSTM input projection (host-side, free)
    x_lstm = jnp.transpose(x, (1, 0, 2)).reshape(T * B, F)
    # conv1 taps folded on the host (C_in = F is tiny / lane-unaligned in-kernel)
    xfold = jnp.concatenate([x[:, k:k + T1, :] for k in range(K1)],
                            axis=-1).reshape(B * T1, K1 * F)

    inputs = [x_lstm, xfold,
              kp['wih'], kp['whh'], kp['lstm_b'],
              kp['w1'], kp['bn1_scale'], kp['bn1_shift'], kp['se1_w1'], kp['se1_w2'],
              kp['w2'], kp['bn2_scale'], kp['bn2_shift'], kp['se2_w1'], kp['se2_w2'],
              kp['w3'], kp['bn3_scale'], kp['bn3_shift'],
              kp['fc_wh'], kp['fc_wc'], kp['fc_b']]

    in_specs = [pl.BlockSpec(tuple(a.shape), lambda i, nd=a.ndim: (0,) * nd)
                for a in inputs]
    out_specs = pl.BlockSpec((B, NCp), lambda i: (0, 0))

    # TODO(synk): initial weight DMA (~0.7 MiB) is exposed with grid=(1,); could be
    # hidden behind the LSTM recurrence via memory_space=pl.ANY + make_async_copy.
    out = pl.pallas_call(
        _mlstm_fcn_kernel,
        out_shape=jax.ShapeDtypeStruct((B, NCp), jnp.float32),
        grid=(1,),
        in_specs=in_specs,
        out_specs=out_specs,
        compiler_params=pltpu.CompilerParams(
            dimension_semantics=("arbitrary",)),
    )(*inputs)
    return out[:, :num_classes]


# ----------------------------- params ------------------------------------------

def init_params(key, F, H, C1, C2, C3, NC, red=16, eps=1e-5):
    """Canonical f32 parameters (torch-equivalent, eval-mode BN folded)."""
    ks = iter(jax.random.split(key, 32))

    def rn(shape, s=0.1):
        return jax.random.normal(next(ks), shape, jnp.float32) * s

    p = {}
    # LSTM (W_ih^T, W_hh^T, combined bias); canonical gate order i, f, g, o
    p['wih_t'] = rn((F, 4 * H))
    p['whh_t'] = rn((H, 4 * H))
    p['lstm_b'] = rn((1, 4 * H))

    def conv_bn(cin, cout, K):
        w = rn((K, cin, cout))                  # torch [cout,cin,K] -> [K,cin,cout]
        conv_b = rn((1, cout), 0.05)
        gamma = 1.0 + rn((1, cout), 0.05)
        beta = rn((1, cout), 0.05)
        rmean = rn((1, cout), 0.05)
        rvar = 1.0 + jnp.abs(rn((1, cout), 0.05))
        scale = gamma / jnp.sqrt(rvar + eps)    # eval-mode BN folded w/ conv bias
        shift = beta + scale * (conv_b - rmean)
        return w, scale, shift

    p['w_conv1'], p['bn1_scale'], p['bn1_shift'] = conv_bn(F, C1, 8)
    p['w_conv2'], p['bn2_scale'], p['bn2_shift'] = conv_bn(C1, C2, 5)
    p['w_conv3'], p['bn3_scale'], p['bn3_shift'] = conv_bn(C2, C3, 3)

    p['se1_w1'] = rn((C1, C1 // red)); p['se1_w2'] = rn((C1 // red, C1))
    p['se2_w1'] = rn((C2, C2 // red)); p['se2_w2'] = rn((C2 // red, C2))

    # fc over concat([lstm_h (H), conv_mean (C3)]) -> split into two matmuls
    p['fc_wh'] = rn((H, NC)); p['fc_wc'] = rn((C3, NC)); p['fc_b'] = rn((1, NC))
    return p


def prep_kernel_params(p, nc_pad=128):
    """Kernel-format params: bf16 matmul weights, gate columns permuted to
    (i,f,o,g), conv taps folded into the contraction dim, classifier padded to
    128 lanes."""
    bf = lambda a: a.astype(jnp.bfloat16)
    H = p['whh_t'].shape[0]
    NC = p['fc_wh'].shape[1]
    pad = nc_pad - NC

    # i,f,g,o -> i,f,o,g  (one sigmoid over [:, :3H], one tanh over [:, 3H:])
    perm = jnp.concatenate([jnp.arange(0, 2 * H),
                            jnp.arange(3 * H, 4 * H),
                            jnp.arange(2 * H, 3 * H)])
    reorder = lambda a: a[:, perm]
    fold = lambda w: w.reshape(w.shape[0] * w.shape[1], w.shape[2])

    return {
        'wih': bf(reorder(p['wih_t'])), 'whh': bf(reorder(p['whh_t'])),
        'lstm_b': reorder(p['lstm_b']),
        'w1': bf(fold(p['w_conv1'])), 'bn1_scale': p['bn1_scale'], 'bn1_shift': p['bn1_shift'],
        'se1_w1': bf(p['se1_w1']), 'se1_w2': bf(p['se1_w2']),
        'w2': bf(fold(p['w_conv2'])), 'bn2_scale': p['bn2_scale'], 'bn2_shift': p['bn2_shift'],
        'se2_w1': bf(p['se2_w1']), 'se2_w2': bf(p['se2_w2']),
        'w3': bf(fold(p['w_conv3'])), 'bn3_scale': p['bn3_scale'], 'bn3_shift': p['bn3_shift'],
        # padded columns: zero weight + very negative bias -> exp() == 0, sliced off.
        'fc_wh': bf(jnp.pad(p['fc_wh'], ((0, 0), (0, pad)))),
        'fc_wc': bf(jnp.pad(p['fc_wc'], ((0, 0), (0, pad)))),
        'fc_b': jnp.pad(p['fc_b'], ((0, 0), (0, pad)), constant_values=-1e9),
    }


# ----------------------------- pure-JAX reference --------------------------------
# Mirrors the kernel's precision (bf16 matmul operands, f32 accumulation),
# canonical gate order and unfolded conv weights (cross-checks the permutation
# and tap folding done in prep_kernel_params / the kernel).

def ref_forward(x, p):
    bf = lambda a: a.astype(jnp.bfloat16)
    dot = lambda a, b: jnp.dot(bf(a), bf(b), preferred_element_type=jnp.float32)
    B, T, F = x.shape
    H = p['whh_t'].shape[0]
    h = jnp.zeros((B, H), jnp.float32)
    c = jnp.zeros((B, H), jnp.float32)
    for t in range(T):
        gates = dot(x[:, t, :], p['wih_t']) + dot(h, p['whh_t']) + p['lstm_b']
        i = jax.nn.sigmoid(gates[:, :H]); f = jax.nn.sigmoid(gates[:, H:2 * H])
        g = jnp.tanh(gates[:, 2 * H:3 * H]); o = jax.nn.sigmoid(gates[:, 3 * H:])
        c = f * c + i * g
        h = o * jnp.tanh(c)

    def cbr(y, w, sc, sh):
        K = w.shape[0]
        T_out = y.shape[1] - K + 1
        acc = sum(jnp.einsum('btc,cd->btd', bf(y[:, k:k + T_out, :]), bf(w[k]),
                             preferred_element_type=jnp.float32)
                  for k in range(K))
        return jnp.maximum(acc * sc[0] + sh[0], 0.0)

    def se(y, w1, w2):
        s = jnp.mean(y, axis=1)
        s = jax.nn.sigmoid(dot(jnp.maximum(dot(s, w1), 0.0), w2))
        return y * s[:, None, :]

    y = cbr(x, p['w_conv1'], p['bn1_scale'], p['bn1_shift'])
    y = se(y, p['se1_w1'], p['se1_w2'])
    y = cbr(y, p['w_conv2'], p['bn2_scale'], p['bn2_shift'])
    y = se(y, p['se2_w1'], p['se2_w2'])
    y = cbr(y, p['w_conv3'], p['bn3_scale'], p['bn3_shift'])
    x2 = jnp.mean(y, axis=1)
    logits = dot(h, p['fc_wh']) + dot(x2, p['fc_wc']) + p['fc_b']
    return jax.nn.log_softmax(logits, axis=1)


# ----------------------------- main ------------------------------------------------

if __name__ == "__main__":
    B, T, F = 2, 16, 8            # batch, time, features
    H, C1, C2, C3, NC = 128, 128, 256, 128, 10

    key = jax.random.PRNGKey(0)
    kx, kparam = jax.random.split(key)
    x = jax.random.normal(kx, (B, T, F), jnp.float32)
    params = init_params(kparam, F, H, C1, C2, C3, NC)
    kparams = prep_kernel_params(params)

    # TODO(synk): seq_lens / pack_padded_sequence path not implemented (h taken
    # at t = T-1 for all samples); Dropout layers are identity (eval mode).
    fwd = jax.jit(lambda xx: mlstm_fcn_forward(xx, kparams, NC))
    out = jax.block_until_ready(fwd(x))

    # sanity checks
    probs_sum = np.asarray(jnp.exp(out).sum(axis=1))
    assert np.allclose(probs_sum, 1.0, atol=1e-3), probs_sum
    ref = np.asarray(ref_forward(x, params))
    err = np.max(np.abs(np.asarray(out) - ref))
    assert np.allclose(np.asarray(out), ref, rtol=1e-2, atol=1e-2), err

    print("KERNEL_OK")
</pallas_src>

<mosaic_0001>
module attributes {stable_mosaic.version = 11 : i64} {
  func.func @_mlstm_fcn_kernel(%arg0: i32, %arg1: memref<32x8xf32, #tpu.memory_space<vmem>>, %arg2: memref<18x64xf32, #tpu.memory_space<vmem>>, %arg3: memref<8x512xbf16, #tpu.memory_space<vmem>>, %arg4: memref<128x512xbf16, #tpu.memory_space<vmem>>, %arg5: memref<1x512xf32, #tpu.memory_space<vmem>>, %arg6: memref<64x128xbf16, #tpu.memory_space<vmem>>, %arg7: memref<1x128xf32, #tpu.memory_space<vmem>>, %arg8: memref<1x128xf32, #tpu.memory_space<vmem>>, %arg9: memref<128x8xbf16, #tpu.memory_space<vmem>>, %arg10: memref<8x128xbf16, #tpu.memory_space<vmem>>, %arg11: memref<640x256xbf16, #tpu.memory_space<vmem>>, %arg12: memref<1x256xf32, #tpu.memory_space<vmem>>, %arg13: memref<1x256xf32, #tpu.memory_space<vmem>>, %arg14: memref<256x16xbf16, #tpu.memory_space<vmem>>, %arg15: memref<16x256xbf16, #tpu.memory_space<vmem>>, %arg16: memref<768x128xbf16, #tpu.memory_space<vmem>>, %arg17: memref<1x128xf32, #tpu.memory_space<vmem>>, %arg18: memref<1x128xf32, #tpu.memory_space<vmem>>, %arg19: memref<128x128xbf16, #tpu.memory_space<vmem>>, %arg20: memref<128x128xbf16, #tpu.memory_space<vmem>>, %arg21: memref<1x128xf32, #tpu.memory_space<vmem>>, %arg22: memref<2x128xf32, #tpu.memory_space<vmem>>) attributes {dimension_semantics = [#tpu.dimension_semantics<arbitrary>], iteration_bounds = array<i64: 1>, scalar_prefetch = 0 : i64, scratch_operands = 0 : i64, tpu.core_type = #tpu.core_type<tc>, window_params = [{pipeline_mode = #tpu.pipeline_mode<synchronous>, transform_indices = @transform_0, window_bounds = array<i64: 32, 8>}, {pipeline_mode = #tpu.pipeline_mode<synchronous>, transform_indices = @transform_1, window_bounds = array<i64: 18, 64>}, {pipeline_mode = #tpu.pipeline_mode<synchronous>, transform_indices = @transform_2, window_bounds = array<i64: 8, 512>}, {pipeline_mode = #tpu.pipeline_mode<synchronous>, transform_indices = @transform_3, window_bounds = array<i64: 128, 512>}, {pipeline_mode = #tpu.pipeline_mode<synchronous>, transform_indices = @transform_4, window_bounds = array<i64: 1, 512>}, {pipeline_mode = #tpu.pipeline_mode<synchronous>, transform_indices = @transform_5, window_bounds = array<i64: 64, 128>}, {pipeline_mode = #tpu.pipeline_mode<synchronous>, transform_indices = @transform_6, window_bounds = array<i64: 1, 128>}, {pipeline_mode = #tpu.pipeline_mode<synchronous>, transform_indices = @transform_7, window_bounds = array<i64: 1, 128>}, {pipeline_mode = #tpu.pipeline_mode<synchronous>, transform_indices = @transform_8, window_bounds = array<i64: 128, 8>}, {pipeline_mode = #tpu.pipeline_mode<synchronous>, transform_indices = @transform_9, window_bounds = array<i64: 8, 128>}, {pipeline_mode = #tpu.pipeline_mode<synchronous>, transform_indices = @transform_10, window_bounds = array<i64: 640, 256>}, {pipeline_mode = #tpu.pipeline_mode<synchronous>, transform_indices = @transform_11, window_bounds = array<i64: 1, 256>}, {pipeline_mode = #tpu.pipeline_mode<synchronous>, transform_indices = @transform_12, window_bounds = array<i64: 1, 256>}, {pipeline_mode = #tpu.pipeline_mode<synchronous>, transform_indices = @transform_13, window_bounds = array<i64: 256, 16>}, {pipeline_mode = #tpu.pipeline_mode<synchronous>, transform_indices = @transform_14, window_bounds = array<i64: 16, 256>}, {pipeline_mode = #tpu.pipeline_mode<synchronous>, transform_indices = @transform_15, window_bounds = array<i64: 768, 128>}, {pipeline_mode = #tpu.pipeline_mode<synchronous>, transform_indices = @transform_16, window_bounds = array<i64: 1, 128>}, {pipeline_mode = #tpu.pipeline_mode<synchronous>, transform_indices = @transform_17, window_bounds = array<i64: 1, 128>}, {pipeline_mode = #tpu.pipeline_mode<synchronous>, transform_indices = @transform_18, window_bounds = array<i64: 128, 128>}, {pipeline_mode = #tpu.pipeline_mode<synchronous>, transform_indices = @transform_19, window_bounds = array<i64: 128, 128>}, {pipeline_mode = #tpu.pipeline_mode<synchronous>, transform_indices = @transform_20, window_bounds = array<i64: 1, 128>}, {pipeline_mode = #tpu.pipeline_mode<synchronous>, transform_indices = @transform_21, window_bounds = array<i64: 2, 128>}]} {
    %c0 = arith.constant 0 : index
    %c0_0 = arith.constant 0 : index
    %0 = vector.load %arg3[%c0, %c0_0] : memref<8x512xbf16, #tpu.memory_space<vmem>>, vector<8x512xbf16>
    %c0_1 = arith.constant 0 : index
    %c0_2 = arith.constant 0 : index
    %1 = vector.load %arg4[%c0_1, %c0_2] : memref<128x512xbf16, #tpu.memory_space<vmem>>, vector<128x512xbf16>
    %c0_3 = arith.constant 0 : index
    %c0_4 = arith.constant 0 : index
    %2 = vector.load %arg1[%c0_3, %c0_4] : memref<32x8xf32, #tpu.memory_space<vmem>>, vector<32x8xf32>
    %3 = arith.truncf %2 : vector<32x8xf32> to vector<32x8xbf16>
    %cst = arith.constant dense<0.000000e+00> : vector<32x512xf32>
    %4 = tpu.matmul %3, %0, %cst {dimension_numbers = #tpu.dot_dimension_numbers<[1], [0], [0], [1], [0, 0, 1, 1], [], []>} : vector<32x8xbf16>, vector<8x512xbf16>, vector<32x512xf32> -> vector<32x512xf32>
    %c0_5 = arith.constant 0 : index
    %c0_6 = arith.constant 0 : index
    %5 = vector.load %arg5[%c0_5, %c0_6] : memref<1x512xf32, #tpu.memory_space<vmem>>, vector<1x512xf32>
    %6 = vector.broadcast %5 : vector<1x512xf32> to vector<32x512xf32>
    %7 = arith.addf %4, %6 : vector<32x512xf32>
    %cst_7 = arith.constant 0.000000e+00 : f32
    %8 = vector.broadcast %cst_7 : f32 to vector<2x128xf32>
    %cst_8 = arith.constant 0.000000e+00 : f32
    %9 = vector.broadcast %cst_8 : f32 to vector<2x128xf32>
    %10 = vector.extract_strided_slice %7 {offsets = [0, 0], sizes = [2, 512], strides = [1, 1]} : vector<32x512xf32> to vector<2x512xf32>
    %11 = arith.truncf %8 : vector<2x128xf32> to vector<2x128xbf16>
    %cst_9 = arith.constant dense<0.000000e+00> : vector<2x512xf32>
    %12 = tpu.matmul %11, %1, %cst_9 {dimension_numbers = #tpu.dot_dimension_numbers<[1], [0], [0], [1], [0, 0, 1, 1], [], []>} : vector<2x128xbf16>, vector<128x512xbf16>, vector<2x512xf32> -> vector<2x512xf32>
    %13 = arith.addf %10, %12 : vector<2x512xf32>
    %14 = vector.extract_strided_slice %13 {offsets = [0, 0], sizes = [2, 384], strides = [1, 1]} : vector<2x512xf32> to vector<2x384xf32>
    %15 = arith.negf %14 : vector<2x384xf32>
    %16 = math.exp %15 : vector<2x384xf32>
    %cst_10 = arith.constant 1.000000e+00 : f32
    %17 = vector.broadcast %cst_10 : f32 to vector<2x384xf32>
    %18 = arith.addf %17, %16 : vector<2x384xf32>
    %19 = arith.divf %17, %18 : vector<2x384xf32>
    %20 = vector.extract_strided_slice %13 {offsets = [0, 384], sizes = [2, 128], strides = [1, 1]} : vector<2x512xf32> to vector<2x128xf32>
    %21 = math.tanh %20 : vector<2x128xf32>
    %22 = vector.extract_strided_slice %19 {offsets = [0, 0], sizes = [2, 128], strides = [1, 1]} : vector<2x384xf32> to vector<2x128xf32>
    %23 = vector.extract_strided_slice %19 {offsets = [0, 128], sizes = [2, 128], strides = [1, 1]} : vector<2x384xf32> to vector<2x128xf32>
    %24 = vector.extract_strided_slice %19 {offsets = [0, 256], sizes = [2, 128], strides = [1, 1]} : vector<2x384xf32> to vector<2x128xf32>
    %25 = arith.mulf %23, %9 : vector<2x128xf32>
    %26 = arith.mulf %22, %21 : vector<2x128xf32>
    %27 = arith.addf %25, %26 : vector<2x128xf32>
    %28 = math.tanh %27 : vector<2x128xf32>
    %29 = arith.mulf %24, %28 : vector<2x128xf32>
    %30 = vector.extract_strided_slice %7 {offsets = [2, 0], sizes = [2, 512], strides = [1, 1]} : vector<32x512xf32> to vector<2x512xf32>
    %31 = arith.truncf %29 : vector<2x128xf32> to vector<2x128xbf16>
    %cst_11 = arith.constant dense<0.000000e+00> : vector<2x512xf32>
    %32 = tpu.matmul %31, %1, %cst_11 {dimension_numbers = #tpu.dot_dimension_numbers<[1], [0], [0], [1], [0, 0, 1, 1], [], []>} : vector<2x128xbf16>, vector<128x512xbf16>, vector<2x512xf32> -> vector<2x512xf32>
    %33 = arith.addf %30, %32 : vector<2x512xf32>
    %34 = vector.extract_strided_slice %33 {offsets = [0, 0], sizes = [2, 384], strides = [1, 1]} : vector<2x512xf32> to vector<2x384xf32>
    %35 = arith.negf %34 : vector<2x384xf32>
    %36 = math.exp %35 : vector<2x384xf32>
    %cst_12 = arith.constant 1.000000e+00 : f32
    %37 = vector.broadcast %cst_12 : f32 to vector<2x384xf32>
    %38 = arith.addf %37, %36 : vector<2x384xf32>
    %39 = arith.divf %37, %38 : vector<2x384xf32>
    %40 = vector.extract_strided_slice %33 {offsets = [0, 384], sizes = [2, 128], strides = [1, 1]} : vector<2x512xf32> to vector<2x128xf32>
    %41 = math.tanh %40 : vector<2x128xf32>
    %42 = vector.extract_strided_slice %39 {offsets = [0, 0], sizes = [2, 128], strides = [1, 1]} : vector<2x384xf32> to vector<2x128xf32>
    %43 = vector.extract_strided_slice %39 {offsets = [0, 128], sizes = [2, 128], strides = [1, 1]} : vector<2x384xf32> to vector<2x128xf32>
    %44 = vector.extract_strided_slice %39 {offsets = [0, 256], sizes = [2, 128], strides = [1, 1]} : vector<2x384xf32> to vector<2x128xf32>
    %45 = arith.mulf %43, %27 : vector<2x128xf32>
    %46 = arith.mulf %42, %41 : vector<2x128xf32>
    %47 = arith.addf %45, %46 : vector<2x128xf32>
    %48 = math.tanh %47 : vector<2x128xf32>
    %49 = arith.mulf %44, %48 : vector<2x128xf32>
    %50 = vector.extract_strided_slice %7 {offsets = [4, 0], sizes = [2, 512], strides = [1, 1]} : vector<32x512xf32> to vector<2x512xf32>
    %51 = arith.truncf %49 : vector<2x128xf32> to vector<2x128xbf16>
    %cst_13 = arith.constant dense<0.000000e+00> : vector<2x512xf32>
    %52 = tpu.matmul %51, %1, %cst_13 {dimension_numbers = #tpu.dot_dimension_numbers<[1], [0], [0], [1], [0, 0, 1, 1], [], []>} : vector<2x128xbf16>, vector<128x512xbf16>, vector<2x512xf32> -> vector<2x512xf32>
    %53 = arith.addf %50, %52 : vector<2x512xf32>
    %54 = vector.extract_strided_slice %53 {offsets = [0, 0], sizes = [2, 384], strides = [1, 1]} : vector<2x512xf32> to vector<2x384xf32>
    %55 = arith.negf %54 : vector<2x384xf32>
    %56 = math.exp %55 : vector<2x384xf32>
    %cst_14 = arith.constant 1.000000e+00 : f32
    %57 = vector.broadcast %cst_14 : f32 to vector<2x384xf32>
    %58 = arith.addf %57, %56 : vector<2x384xf32>
    %59 = arith.divf %57, %58 : vector<2x384xf32>
    %60 = vector.extract_strided_slice %53 {offsets = [0, 384], sizes = [2, 128], strides = [1, 1]} : vector<2x512xf32> to vector<2x128xf32>
    %61 = math.tanh %60 : vector<2x128xf32>
    %62 = vector.extract_strided_slice %59 {offsets = [0, 0], sizes = [2, 128], strides = [1, 1]} : vector<2x384xf32> to vector<2x128xf32>
    %63 = vector.extract_strided_slice %59 {offsets = [0, 128], sizes = [2, 128], strides = [1, 1]} : vector<2x384xf32> to vector<2x128xf32>
    %64 = vector.extract_strided_slice %59 {offsets = [0, 256], sizes = [2, 128], strides = [1, 1]} : vector<2x384xf32> to vector<2x128xf32>
    %65 = arith.mulf %63, %47 : vector<2x128xf32>
    %66 = arith.mulf %62, %61 : vector<2x128xf32>
    %67 = arith.addf %65, %66 : vector<2x128xf32>
    %68 = math.tanh %67 : vector<2x128xf32>
    %69 = arith.mulf %64, %68 : vector<2x128xf32>
    %70 = vector.extract_strided_slice %7 {offsets = [6, 0], sizes = [2, 512], strides = [1, 1]} : vector<32x512xf32> to vector<2x512xf32>
    %71 = arith.truncf %69 : vector<2x128xf32> to vector<2x128xbf16>
    %cst_15 = arith.constant dense<0.000000e+00> : vector<2x512xf32>
    %72 = tpu.matmul %71, %1, %cst_15 {dimension_numbers = #tpu.dot_dimension_numbers<[1], [0], [0], [1], [0, 0, 1, 1], [], []>} : vector<2x128xbf16>, vector<128x512xbf16>, vector<2x512xf32> -> vector<2x512xf32>
    %73 = arith.addf %70, %72 : vector<2x512xf32>
    %74 = vector.extract_strided_slice %73 {offsets = [0, 0], sizes = [2, 384], strides = [1, 1]} : vector<2x512xf32> to vector<2x384xf32>
    %75 = arith.negf %74 : vector<2x384xf32>
    %76 = math.exp %75 : vector<2x384xf32>
    %cst_16 = arith.constant 1.000000e+00 : f32
    %77 = vector.broadcast %cst_16 : f32 to vector<2x384xf32>
    %78 = arith.addf %77, %76 : vector<2x384xf32>
    %79 = arith.divf %77, %78 : vector<2x384xf32>
    %80 = vector.extract_strided_slice %73 {offsets = [0, 384], sizes = [2, 128], strides = [1, 1]} : vector<2x512xf32> to vector<2x128xf32>
    %81 = math.tanh %80 : vector<2x128xf32>
    %82 = vector.extract_strided_slice %79 {offsets = [0, 0], sizes = [2, 128], strides = [1, 1]} : vector<2x384xf32> to vector<2x128xf32>
    %83 = vector.extract_strided_slice %79 {offsets = [0, 128], sizes = [2, 128], strides = [1, 1]} : vector<2x384xf32> to vector<2x128xf32>
    %84 = vector.extract_strided_slice %79 {offsets = [0, 256], sizes = [2, 128], strides = [1, 1]} : vector<2x384xf32> to vector<2x128xf32>
    %85 = arith.mulf %83, %67 : vector<2x128xf32>
    %86 = arith.mulf %82, %81 : vector<2x128xf32>
    %87 = arith.addf %85, %86 : vector<2x128xf32>
    %88 = math.tanh %87 : vector<2x128xf32>
    %89 = arith.mulf %84, %88 : vector<2x128xf32>
    %90 = vector.extract_strided_slice %7 {offsets = [8, 0], sizes = [2, 512], strides = [1, 1]} : vector<32x512xf32> to vector<2x512xf32>
    %91 = arith.truncf %89 : vector<2x128xf32> to vector<2x128xbf16>
    %cst_17 = arith.constant dense<0.000000e+00> : vector<2x512xf32>
    %92 = tpu.matmul %91, %1, %cst_17 {dimension_numbers = #tpu.dot_dimension_numbers<[1], [0], [0], [1], [0, 0, 1, 1], [], []>} : vector<2x128xbf16>, vector<128x512xbf16>, vector<2x512xf32> -> vector<2x512xf32>
    %93 = arith.addf %90, %92 : vector<2x512xf32>
    %94 = vector.extract_strided_slice %93 {offsets = [0, 0], sizes = [2, 384], strides = [1, 1]} : vector<2x512xf32> to vector<2x384xf32>
    %95 = arith.negf %94 : vector<2x384xf32>
    %96 = math.exp %95 : vector<2x384xf32>
    %cst_18 = arith.constant 1.000000e+00 : f32
    %97 = vector.broadcast %cst_18 : f32 to vector<2x384xf32>
    %98 = arith.addf %97, %96 : vector<2x384xf32>
    %99 = arith.divf %97, %98 : vector<2x384xf32>
    %100 = vector.extract_strided_slice %93 {offsets = [0, 384], sizes = [2, 128], strides = [1, 1]} : vector<2x512xf32> to vector<2x128xf32>
    %101 = math.tanh %100 : vector<2x128xf32>
    %102 = vector.extract_strided_slice %99 {offsets = [0, 0], sizes = [2, 128], strides = [1, 1]} : vector<2x384xf32> to vector<2x128xf32>
    %103 = vector.extract_strided_slice %99 {offsets = [0, 128], sizes = [2, 128], strides = [1, 1]} : vector<2x384xf32> to vector<2x128xf32>
    %104 = vector.extract_strided_slice %99 {offsets = [0, 256], sizes = [2, 128], strides = [1, 1]} : vector<2x384xf32> to vector<2x128xf32>
    %105 = arith.mulf %103, %87 : vector<2x128xf32>
    %106 = arith.mulf %102, %101 : vector<2x128xf32>
    %107 = arith.addf %105, %106 : vector<2x128xf32>
    %108 = math.tanh %107 : vector<2x128xf32>
    %109 = arith.mulf %104, %108 : vector<2x128xf32>
    %110 = vector.extract_strided_slice %7 {offsets = [10, 0], sizes = [2, 512], strides = [1, 1]} : vector<32x512xf32> to vector<2x512xf32>
    %111 = arith.truncf %109 : vector<2x128xf32> to vector<2x128xbf16>
    %cst_19 = arith.constant dense<0.000000e+00> : vector<2x512xf32>
    %112 = tpu.matmul %111, %1, %cst_19 {dimension_numbers = #tpu.dot_dimension_numbers<[1], [0], [0], [1], [0, 0, 1, 1], [], []>} : vector<2x128xbf16>, vector<128x512xbf16>, vector<2x512xf32> -> vector<2x512xf32>
    %113 = arith.addf %110, %112 : vector<2x512xf32>
    %114 = vector.extract_strided_slice %113 {offsets = [0, 0], sizes = [2, 384], strides = [1, 1]} : vector<2x512xf32> to vector<2x384xf32>
    %115 = arith.negf %114 : vector<2x384xf32>
    %116 = math.exp %115 : vector<2x384xf32>
    %cst_20 = arith.constant 1.000000e+00 : f32
    %117 = vector.broadcast %cst_20 : f32 to vector<2x384xf32>
    %118 = arith.addf %117, %116 : vector<2x384xf32>
    %119 = arith.divf %117, %118 : vector<2x384xf32>
    %120 = vector.extract_strided_slice %113 {offsets = [0, 384], sizes = [2, 128], strides = [1, 1]} : vector<2x512xf32> to vector<2x128xf32>
    %121 = math.tanh %120 : vector<2x128xf32>
    %122 = vector.extract_strided_slice %119 {offsets = [0, 0], sizes = [2, 128], strides = [1, 1]} : vector<2x384xf32> to vector<2x128xf32>
    %123 = vector.extract_strided_slice %119 {offsets = [0, 128], sizes = [2, 128], strides = [1, 1]} : vector<2x384xf32> to vector<2x128xf32>
    %124 = vector.extract_strided_slice %119 {offsets = [0, 256], sizes = [2, 128], strides = [1, 1]} : vector<2x384xf32> to vector<2x128xf32>
    %125 = arith.mulf %123, %107 : vector<2x128xf32>
    %126 = arith.mulf %122, %121 : vector<2x128xf32>
    %127 = arith.addf %125, %126 : vector<2x128xf32>
    %128 = math.tanh %127 : vector<2x128xf32>
    %129 = arith.mulf %124, %128 : vector<2x128xf32>
    %130 = vector.extract_strided_slice %7 {offsets = [12, 0], sizes = [2, 512], strides = [1, 1]} : vector<32x512xf32> to vector<2x512xf32>
    %131 = arith.truncf %129 : vector<2x128xf32> to vector<2x128xbf16>
    %cst_21 = arith.constant dense<0.000000e+00> : vector<2x512xf32>
    %132 = tpu.matmul %131, %1, %cst_21 {dimension_numbers = #tpu.dot_dimension_numbers<[1], [0], [0], [1], [0, 0, 1, 1], [], []>} : vector<2x128xbf16>, vector<128x512xbf16>, vector<2x512xf32> -> vector<2x512xf32>
    %133 = arith.addf %130, %132 : vector<2x512xf32>
    %134 = vector.extract_strided_slice %133 {offsets = [0, 0], sizes = [2, 384], strides = [1, 1]} : vector<2x512xf32> to vector<2x384xf32>
    %135 = arith.negf %134 : vector<2x384xf32>
    %136 = math.exp %135 : vector<2x384xf32>
    %cst_22 = arith.constant 1.000000e+00 : f32
    %137 = vector.broadcast %cst_22 : f32 to vector<2x384xf32>
    %138 = arith.addf %137, %136 : vector<2x384xf32>
    %139 = arith.divf %137, %138 : vector<2x384xf32>
    %140 = vector.extract_strided_slice %133 {offsets = [0, 384], sizes = [2, 128], strides = [1, 1]} : vector<2x512xf32> to vector<2x128xf32>
    %141 = math.tanh %140 : vector<2x128xf32>
    %142 = vector.extract_strided_slice %139 {offsets = [0, 0], sizes = [2, 128], strides = [1, 1]} : vector<2x384xf32> to vector<2x128xf32>
    %143 = vector.extract_strided_slice %139 {offsets = [0, 128], sizes = [2, 128], strides = [1, 1]} : vector<2x384xf32> to vector<2x128xf32>
    %144 = vector.extract_strided_slice %139 {offsets = [0, 256], sizes = [2, 128], strides = [1, 1]} : vector<2x384xf32> to vector<2x128xf32>
    %145 = arith.mulf %143, %127 : vector<2x128xf32>
    %146 = arith.mulf %142, %141 : vector<2x128xf32>
    %147 = arith.addf %145, %146 : vector<2x128xf32>
    %148 = math.tanh %147 : vector<2x128xf32>
    %149 = arith.mulf %144, %148 : vector<2x128xf32>
    %150 = vector.extract_strided_slice %7 {offsets = [14, 0], sizes = [2, 512], strides = [1, 1]} : vector<32x512xf32> to vector<2x512xf32>
    %151 = arith.truncf %149 : vector<2x128xf32> to vector<2x128xbf16>
    %cst_23 = arith.constant dense<0.000000e+00> : vector<2x512xf32>
    %152 = tpu.matmul %151, %1, %cst_23 {dimension_numbers = #tpu.dot_dimension_numbers<[1], [0], [0], [1], [0, 0, 1, 1], [], []>} : vector<2x128xbf16>, vector<128x512xbf16>, vector<2x512xf32> -> vector<2x512xf32>
    %153 = arith.addf %150, %152 : vector<2x512xf32>
    %154 = vector.extract_strided_slice %153 {offsets = [0, 0], sizes = [2, 384], strides = [1, 1]} : vector<2x512xf32> to vector<2x384xf32>
    %155 = arith.negf %154 : vector<2x384xf32>
    %156 = math.exp %155 : vector<2x384xf32>
    %cst_24 = arith.constant 1.000000e+00 : f32
    %157 = vector.broadcast %cst_24 : f32 to vector<2x384xf32>
    %158 = arith.addf %157, %156 : vector<2x384xf32>
    %159 = arith.divf %157, %158 : vector<2x384xf32>
    %160 = vector.extract_strided_slice %153 {offsets = [0, 384], sizes = [2, 128], strides = [1, 1]} : vector<2x512xf32> to vector<2x128xf32>
    %161 = math.tanh %160 : vector<2x128xf32>
    %162 = vector.extract_strided_slice %159 {offsets = [0, 0], sizes = [2, 128], strides = [1, 1]} : vector<2x384xf32> to vector<2x128xf32>
    %163 = vector.extract_strided_slice %159 {offsets = [0, 128], sizes = [2, 128], strides = [1, 1]} : vector<2x384xf32> to vector<2x128xf32>
    %164 = vector.extract_strided_slice %159 {offsets = [0, 256], sizes = [2, 128], strides = [1, 1]} : vector<2x384xf32> to vector<2x128xf32>
    %165 = arith.mulf %163, %147 : vector<2x128xf32>
    %166 = arith.mulf %162, %161 : vector<2x128xf32>
    %167 = arith.addf %165, %166 : vector<2x128xf32>
    %168 = math.tanh %167 : vector<2x128xf32>
    %169 = arith.mulf %164, %168 : vector<2x128xf32>
    %170 = vector.extract_strided_slice %7 {offsets = [16, 0], sizes = [2, 512], strides = [1, 1]} : vector<32x512xf32> to vector<2x512xf32>
    %171 = arith.truncf %169 : vector<2x128xf32> to vector<2x128xbf16>
    %cst_25 = arith.constant dense<0.000000e+00> : vector<2x512xf32>
    %172 = tpu.matmul %171, %1, %cst_25 {dimension_numbers = #tpu.dot_dimension_numbers<[1], [0], [0], [1], [0, 0, 1, 1], [], []>} : vector<2x128xbf16>, vector<128x512xbf16>, vector<2x512xf32> -> vector<2x512xf32>
    %173 = arith.addf %170, %172 : vector<2x512xf32>
    %174 = vector.extract_strided_slice %173 {offsets = [0, 0], sizes = [2, 384], strides = [1, 1]} : vector<2x512xf32> to vector<2x384xf32>
    %175 = arith.negf %174 : vector<2x384xf32>
    %176 = math.exp %175 : vector<2x384xf32>
    %cst_26 = arith.constant 1.000000e+00 : f32
    %177 = vector.broadcast %cst_26 : f32 to vector<2x384xf32>
    %178 = arith.addf %177, %176 : vector<2x384xf32>
    %179 = arith.divf %177, %178 : vector<2x384xf32>
    %180 = vector.extract_strided_slice %173 {offsets = [0, 384], sizes = [2, 128], strides = [1, 1]} : vector<2x512xf32> to vector<2x128xf32>
    %181 = math.tanh %180 : vector<2x128xf32>
    %182 = vector.extract_strided_slice %179 {offsets = [0, 0], sizes = [2, 128], strides = [1, 1]} : vector<2x384xf32> to vector<2x128xf32>
    %183 = vector.extract_strided_slice %179 {offsets = [0, 128], sizes = [2, 128], strides = [1, 1]} : vector<2x384xf32> to vector<2x128xf32>
    %184 = vector.extract_strided_slice %179 {offsets = [0, 256], sizes = [2, 128], strides = [1, 1]} : vector<2x384xf32> to vector<2x128xf32>
    %185 = arith.mulf %183, %167 : vector<2x128xf32>
    %186 = arith.mulf %182, %181 : vector<2x128xf32>
    %187 = arith.addf %185, %186 : vector<2x128xf32>
    %188 = math.tanh %187 : vector<2x128xf32>
    %189 = arith.mulf %184, %188 : vector<2x128xf32>
    %190 = vector.extract_strided_slice %7 {offsets = [18, 0], sizes = [2, 512], strides = [1, 1]} : vector<32x512xf32> to vector<2x512xf32>
    %191 = arith.truncf %189 : vector<2x128xf32> to vector<2x128xbf16>
    %cst_27 = arith.constant dense<0.000000e+00> : vector<2x512xf32>
    %192 = tpu.matmul %191, %1, %cst_27 {dimension_numbers = #tpu.dot_dimension_numbers<[1], [0], [0], [1], [0, 0, 1, 1], [], []>} : vector<2x128xbf16>, vector<128x512xbf16>, vector<2x512xf32> -> vector<2x512xf32>
    %193 = arith.addf %190, %192 : vector<2x512xf32>
    %194 = vector.extract_strided_slice %193 {offsets = [0, 0], sizes = [2, 384], strides = [1, 1]} : vector<2x512xf32> to vector<2x384xf32>
    %195 = arith.negf %194 : vector<2x384xf32>
    %196 = math.exp %195 : vector<2x384xf32>
    %cst_28 = arith.constant 1.000000e+00 : f32
    %197 = vector.broadcast %cst_28 : f32 to vector<2x384xf32>
    %198 = arith.addf %197, %196 : vector<2x384xf32>
    %199 = arith.divf %197, %198 : vector<2x384xf32>
    %200 = vector.extract_strided_slice %193 {offsets = [0, 384], sizes = [2, 128], strides = [1, 1]} : vector<2x512xf32> to vector<2x128xf32>
    %201 = math.tanh %200 : vector<2x128xf32>
    %202 = vector.extract_strided_slice %199 {offsets = [0, 0], sizes = [2, 128], strides = [1, 1]} : vector<2x384xf32> to vector<2x128xf32>
    %203 = vector.extract_strided_slice %199 {offsets = [0, 128], sizes = [2, 128], strides = [1, 1]} : vector<2x384xf32> to vector<2x128xf32>
    %204 = vector.extract_strided_slice %199 {offsets = [0, 256], sizes = [2, 128], strides = [1, 1]} : vector<2x384xf32> to vector<2x128xf32>
    %205 = arith.mulf %203, %187 : vector<2x128xf32>
    %206 = arith.mulf %202, %201 : vector<2x128xf32>
    %207 = arith.addf %205, %206 : vector<2x128xf32>
    %208 = math.tanh %207 : vector<2x128xf32>
    %209 = arith.mulf %204, %208 : vector<2x128xf32>
    %210 = vector.extract_strided_slice %7 {offsets = [20, 0], sizes = [2, 512], strides = [1, 1]} : vector<32x512xf32> to vector<2x512xf32>
    %211 = arith.truncf %209 : vector<2x128xf32> to vector<2x128xbf16>
    %cst_29 = arith.constant dense<0.000000e+00> : vector<2x512xf32>
    %212 = tpu.matmul %211, %1, %cst_29 {dimension_numbers = #tpu.dot_dimension_numbers<[1], [0], [0], [1], [0, 0, 1, 1], [], []>} : vector<2x128xbf16>, vector<128x512xbf16>, vector<2x512xf32> -> vector<2x512xf32>
    %213 = arith.addf %210, %212 : vector<2x512xf32>
    %214 = vector.extract_strided_slice %213 {offsets = [0, 0], sizes = [2, 384], strides = [1, 1]} : vector<2x512xf32> to vector<2x384xf32>
    %215 = arith.negf %214 : vector<2x384xf32>
    %216 = math.exp %215 : vector<2x384xf32>
    %cst_30 = arith.constant 1.000000e+00 : f32
    %217 = vector.broadcast %cst_30 : f32 to vector<2x384xf32>
    %218 = arith.addf %217, %216 : vector<2x384xf32>
    %219 = arith.divf %217, %218 : vector<2x384xf32>
    %220 = vector.extract_strided_slice %213 {offsets = [0, 384], sizes = [2, 128], strides = [1, 1]} : vector<2x512xf32> to vector<2x128xf32>
    %221 = math.tanh %220 : vector<2x128xf32>
    %222 = vector.extract_strided_slice %219 {offsets = [0, 0], sizes = [2, 128], strides = [1, 1]} : vector<2x384xf32> to vector<2x128xf32>
    %223 = vector.extract_strided_slice %219 {offsets = [0, 128], sizes = [2, 128], strides = [1, 1]} : vector<2x384xf32> to vector<2x128xf32>
    %224 = vector.extract_strided_slice %219 {offsets = [0, 256], sizes = [2, 128], strides = [1, 1]} : vector<2x384xf32> to vector<2x128xf32>
    %225 = arith.mulf %223, %207 : vector<2x128xf32>
    %226 = arith.mulf %222, %221 : vector<2x128xf32>
    %227 = arith.addf %225, %226 : vector<2x128xf32>
    %228 = math.tanh %227 : vector<2x128xf32>
    %229 = arith.mulf %224, %228 : vector<2x128xf32>
    %230 = vector.extract_strided_slice %7 {offsets = [22, 0], sizes = [2, 512], strides = [1, 1]} : vector<32x512xf32> to vector<2x512xf32>
    %231 = arith.truncf %229 : vector<2x128xf32> to vector<2x128xbf16>
    %cst_31 = arith.constant dense<0.000000e+00> : vector<2x512xf32>
    %232 = tpu.matmul %231, %1, %cst_31 {dimension_numbers = #tpu.dot_dimension_numbers<[1], [0], [0], [1], [0, 0, 1, 1], [], []>} : vector<2x128xbf16>, vector<128x512xbf16>, vector<2x512xf32> -> vector<2x512xf32>
    %233 = arith.addf %230, %232 : vector<2x512xf32>
    %234 = vector.extract_strided_slice %233 {offsets = [0, 0], sizes = [2, 384], strides = [1, 1]} : vector<2x512xf32> to vector<2x384xf32>
    %235 = arith.negf %234 : vector<2x384xf32>
    %236 = math.exp %235 : vector<2x384xf32>
    %cst_32 = arith.constant 1.000000e+00 : f32
    %237 = vector.broadcast %cst_32 : f32 to vector<2x384xf32>
    %238 = arith.addf %237, %236 : vector<2x384xf32>
    %239 = arith.divf %237, %238 : vector<2x384xf32>
    %240 = vector.extract_strided_slice %233 {offsets = [0, 384], sizes = [2, 128], strides = [1, 1]} : vector<2x512xf32> to vector<2x128xf32>
    %241 = math.tanh %240 : vector<2x128xf32>
    %242 = vector.extract_strided_slice %239 {offsets = [0, 0], sizes = [2, 128], strides = [1, 1]} : vector<2x384xf32> to vector<2x128xf32>
    %243 = vector.extract_strided_slice %239 {offsets = [0, 128], sizes = [2, 128], strides = [1, 1]} : vector<2x384xf32> to vector<2x128xf32>
    %244 = vector.extract_strided_slice %239 {offsets = [0, 256], sizes = [2, 128], strides = [1, 1]} : vector<2x384xf32> to vector<2x128xf32>
    %245 = arith.mulf %243, %227 : vector<2x128xf32>
    %246 = arith.mulf %242, %241 : vector<2x128xf32>
    %247 = arith.addf %245, %246 : vector<2x128xf32>
    %248 = math.tanh %247 : vector<2x128xf32>
    %249 = arith.mulf %244, %248 : vector<2x128xf32>
    %250 = vector.extract_strided_slice %7 {offsets = [24, 0], sizes = [2, 512], strides = [1, 1]} : vector<32x512xf32> to vector<2x512xf32>
    %251 = arith.truncf %249 : vector<2x128xf32> to vector<2x128xbf16>
    %cst_33 = arith.constant dense<0.000000e+00> : vector<2x512xf32>
    %252 = tpu.matmul %251, %1, %cst_33 {dimension_numbers = #tpu.dot_dimension_numbers<[1], [0], [0], [1], [0, 0, 1, 1], [], []>} : vector<2x128xbf16>, vector<128x512xbf16>, vector<2x512xf32> -> vector<2x512xf32>
    %253 = arith.addf %250, %252 : vector<2x512xf32>
    %254 = vector.extract_strided_slice %253 {offsets = [0, 0], sizes = [2, 384], strides = [1, 1]} : vector<2x512xf32> to vector<2x384xf32>
    %255 = arith.negf %254 : vector<2x384xf32>
    %256 = math.exp %255 : vector<2x384xf32>
    %cst_34 = arith.constant 1.000000e+00 : f32
    %257 = vector.broadcast %cst_34 : f32 to vector<2x384xf32>
    %258 = arith.addf %257, %256 : vector<2x384xf32>
    %259 = arith.divf %257, %258 : vector<2x384xf32>
    %260 = vector.extract_strided_slice %253 {offsets = [0, 384], sizes = [2, 128], strides = [1, 1]} : vector<2x512xf32> to vector<2x128xf32>
    %261 = math.tanh %260 : vector<2x128xf32>
    %262 = vector.extract_strided_slice %259 {offsets = [0, 0], sizes = [2, 128], strides = [1, 1]} : vector<2x384xf32> to vector<2x128xf32>
    %263 = vector.extract_strided_slice %259 {offsets = [0, 128], sizes = [2, 128], strides = [1, 1]} : vector<2x384xf32> to vector<2x128xf32>
    %264 = vector.extract_strided_slice %259 {offsets = [0, 256], sizes = [2, 128], strides = [1, 1]} : vector<2x384xf32> to vector<2x128xf32>
    %265 = arith.mulf %263, %247 : vector<2x128xf32>
    %266 = arith.mulf %262, %261 : vector<2x128xf32>
    %267 = arith.addf %265, %266 : vector<2x128xf32>
    %268 = math.tanh %267 : vector<2x128xf32>
    %269 = arith.mulf %264, %268 : vector<2x128xf32>
    %270 = vector.extract_strided_slice %7 {offsets = [26, 0], sizes = [2, 512], strides = [1, 1]} : vector<32x512xf32> to vector<2x512xf32>
    %271 = arith.truncf %269 : vector<2x128xf32> to vector<2x128xbf16>
    %cst_35 = arith.constant dense<0.000000e+00> : vector<2x512xf32>
    %272 = tpu.matmul %271, %1, %cst_35 {dimension_numbers = #tpu.dot_dimension_numbers<[1], [0], [0], [1], [0, 0, 1, 1], [], []>} : vector<2x128xbf16>, vector<128x512xbf16>, vector<2x512xf32> -> vector<2x512xf32>
    %273 = arith.addf %270, %272 : vector<2x512xf32>
    %274 = vector.extract_strided_slice %273 {offsets = [0, 0], sizes = [2, 384], strides = [1, 1]} : vector<2x512xf32> to vector<2x384xf32>
    %275 = arith.negf %274 : vector<2x384xf32>
    %276 = math.exp %275 : vector<2x384xf32>
    %cst_36 = arith.constant 1.000000e+00 : f32
    %277 = vector.broadcast %cst_36 : f32 to vector<2x384xf32>
    %278 = arith.addf %277, %276 : vector<2x384xf32>
    %279 = arith.divf %277, %278 : vector<2x384xf32>
    %280 = vector.extract_strided_slice %273 {offsets = [0, 384], sizes = [2, 128], strides = [1, 1]} : vector<2x512xf32> to vector<2x128xf32>
    %281 = math.tanh %280 : vector<2x128xf32>
    %282 = vector.extract_strided_slice %279 {offsets = [0, 0], sizes = [2, 128], strides = [1, 1]} : vector<2x384xf32> to vector<2x128xf32>
    %283 = vector.extract_strided_slice %279 {offsets = [0, 128], sizes = [2, 128], strides = [1, 1]} : vector<2x384xf32> to vector<2x128xf32>
    %284 = vector.extract_strided_slice %279 {offsets = [0, 256], sizes = [2, 128], strides = [1, 1]} : vector<2x384xf32> to vector<2x128xf32>
    %285 = arith.mulf %283, %267 : vector<2x128xf32>
    %286 = arith.mulf %282, %281 : vector<2x128xf32>
    %287 = arith.addf %285, %286 : vector<2x128xf32>
    %288 = math.tanh %287 : vector<2x128xf32>
    %289 = arith.mulf %284, %288 : vector<2x128xf32>
    %290 = vector.extract_strided_slice %7 {offsets = [28, 0], sizes = [2, 512], strides = [1, 1]} : vector<32x512xf32> to vector<2x512xf32>
    %291 = arith.truncf %289 : vector<2x128xf32> to vector<2x128xbf16>
    %cst_37 = arith.constant dense<0.000000e+00> : vector<2x512xf32>
    %292 = tpu.matmul %291, %1, %cst_37 {dimension_numbers = #tpu.dot_dimension_numbers<[1], [0], [0], [1], [0, 0, 1, 1], [], []>} : vector<2x128xbf16>, vector<128x512xbf16>, vector<2x512xf32> -> vector<2x512xf32>
    %293 = arith.addf %290, %292 : vector<2x512xf32>
    %294 = vector.extract_strided_slice %293 {offsets = [0, 0], sizes = [2, 384], strides = [1, 1]} : vector<2x512xf32> to vector<2x384xf32>
    %295 = arith.negf %294 : vector<2x384xf32>
    %296 = math.exp %295 : vector<2x384xf32>
    %cst_38 = arith.constant 1.000000e+00 : f32
    %297 = vector.broadcast %cst_38 : f32 to vector<2x384xf32>
    %298 = arith.addf %297, %296 : vector<2x384xf32>
    %299 = arith.divf %297, %298 : vector<2x384xf32>
    %300 = vector.extract_strided_slice %293 {offsets = [0, 384], sizes = [2, 128], strides = [1, 1]} : vector<2x512xf32> to vector<2x128xf32>
    %301 = math.tanh %300 : vector<2x128xf32>
    %302 = vector.extract_strided_slice %299 {offsets = [0, 0], sizes = [2, 128], strides = [1, 1]} : vector<2x384xf32> to vector<2x128xf32>
    %303 = vector.extract_strided_slice %299 {offsets = [0, 128], sizes = [2, 128], strides = [1, 1]} : vector<2x384xf32> to vector<2x128xf32>
    %304 = vector.extract_strided_slice %299 {offsets = [0, 256], sizes = [2, 128], strides = [1, 1]} : vector<2x384xf32> to vector<2x128xf32>
    %305 = arith.mulf %303, %287 : vector<2x128xf32>
    %306 = arith.mulf %302, %301 : vector<2x128xf32>
    %307 = arith.addf %305, %306 : vector<2x128xf32>
    %308 = math.tanh %307 : vector<2x128xf32>
    %309 = arith.mulf %304, %308 : vector<2x128xf32>
    %310 = vector.extract_strided_slice %7 {offsets = [30, 0], sizes = [2, 512], strides = [1, 1]} : vector<32x512xf32> to vector<2x512xf32>
    %311 = arith.truncf %309 : vector<2x128xf32> to vector<2x128xbf16>
    %cst_39 = arith.constant dense<0.000000e+00> : vector<2x512xf32>
    %312 = tpu.matmul %311, %1, %cst_39 {dimension_numbers = #tpu.dot_dimension_numbers<[1], [0], [0], [1], [0, 0, 1, 1], [], []>} : vector<2x128xbf16>, vector<128x512xbf16>, vector<2x512xf32> -> vector<2x512xf32>
    %313 = arith.addf %310, %312 : vector<2x512xf32>
    %314 = vector.extract_strided_slice %313 {offsets = [0, 0], sizes = [2, 384], strides = [1, 1]} : vector<2x512xf32> to vector<2x384xf32>
    %315 = arith.negf %314 : vector<2x384xf32>
    %316 = math.exp %315 : vector<2x384xf32>
    %cst_40 = arith.constant 1.000000e+00 : f32
    %317 = vector.broadcast %cst_40 : f32 to vector<2x384xf32>
    %318 = arith.addf %317, %316 : vector<2x384xf32>
    %319 = arith.divf %317, %318 : vector<2x384xf32>
    %320 = vector.extract_strided_slice %313 {offsets = [0, 384], sizes = [2, 128], strides = [1, 1]} : vector<2x512xf32> to vector<2x128xf32>
    %321 = math.tanh %320 : vector<2x128xf32>
    %322 = vector.extract_strided_slice %319 {offsets = [0, 0], sizes = [2, 128], strides = [1, 1]} : vector<2x384xf32> to vector<2x128xf32>
    %323 = vector.extract_strided_slice %319 {offsets = [0, 128], sizes = [2, 128], strides = [1, 1]} : vector<2x384xf32> to vector<2x128xf32>
    %324 = vector.extract_strided_slice %319 {offsets = [0, 256], sizes = [2, 128], strides = [1, 1]} : vector<2x384xf32> to vector<2x128xf32>
    %325 = arith.mulf %323, %307 : vector<2x128xf32>
    %326 = arith.mulf %322, %321 : vector<2x128xf32>
    %327 = arith.addf %325, %326 : vector<2x128xf32>
    %328 = math.tanh %327 : vector<2x128xf32>
    %329 = arith.mulf %324, %328 : vector<2x128xf32>
    %c0_41 = arith.constant 0 : index
    %c0_42 = arith.constant 0 : index
    %330 = vector.load %arg2[%c0_41, %c0_42] : memref<18x64xf32, #tpu.memory_space<vmem>>, vector<18x64xf32>
    %331 = arith.truncf %330 : vector<18x64xf32> to vector<18x64xbf16>
    %c0_43 = arith.constant 0 : index
    %c0_44 = arith.constant 0 : index
    %332 = vector.load %arg6[%c0_43, %c0_44] : memref<64x128xbf16, #tpu.memory_space<vmem>>, vector<64x128xbf16>
    %cst_45 = arith.constant dense<0.000000e+00> : vector<18x128xf32>
    %333 = tpu.matmul %331, %332, %cst_45 {dimension_numbers = #tpu.dot_dimension_numbers<[1], [0], [0], [1], [0, 0, 1, 1], [], []>} : vector<18x64xbf16>, vector<64x128xbf16>, vector<18x128xf32> -> vector<18x128xf32>
    %c0_46 = arith.constant 0 : index
    %c0_47 = arith.constant 0 : index
    %334 = vector.load %arg7[%c0_46, %c0_47] : memref<1x128xf32, #tpu.memory_space<vmem>>, vector<1x128xf32>
    %335 = vector.broadcast %334 : vector<1x128xf32> to vector<18x128xf32>
    %336 = arith.mulf %333, %335 : vector<18x128xf32>
    %c0_48 = arith.constant 0 : index
    %c0_49 = arith.constant 0 : index
    %337 = vector.load %arg8[%c0_48, %c0_49] : memref<1x128xf32, #tpu.memory_space<vmem>>, vector<1x128xf32>
    %338 = vector.broadcast %337 : vector<1x128xf32> to vector<18x128xf32>
    %339 = arith.addf %336, %338 : vector<18x128xf32>
    %cst_50 = arith.constant 0.000000e+00 : f32
    %340 = vector.broadcast %cst_50 : f32 to vector<18x128xf32>
    %341 = arith.maximumf %339, %340 : vector<18x128xf32>
    %342 = vector.extract_strided_slice %341 {offsets = [0, 0], sizes = [9, 128], strides = [1, 1]} : vector<18x128xf32> to vector<9x128xf32>
    %cst_51 = arith.constant dense<0.000000e+00> : vector<128xf32>
    %343 = vector.multi_reduction <add>, %342, %cst_51 [0] : vector<9x128xf32> to vector<128xf32>
    %344 = vector.shape_cast %343 : vector<128xf32> to vector<1x128xf32>
    %cst_52 = arith.constant 9.000000e+00 : f32
    %345 = vector.broadcast %cst_52 : f32 to vector<1x128xf32>
    %346 = arith.divf %344, %345 : vector<1x128xf32>
    %347 = vector.extract_strided_slice %341 {offsets = [9, 0], sizes = [9, 128], strides = [1, 1]} : vector<18x128xf32> to vector<9x128xf32>
    %cst_53 = arith.constant dense<0.000000e+00> : vector<128xf32>
    %348 = vector.multi_reduction <add>, %347, %cst_53 [0] : vector<9x128xf32> to vector<128xf32>
    %349 = vector.shape_cast %348 : vector<128xf32> to vector<1x128xf32>
    %cst_54 = arith.constant 9.000000e+00 : f32
    %350 = vector.broadcast %cst_54 : f32 to vector<1x128xf32>
    %351 = arith.divf %349, %350 : vector<1x128xf32>
    %352 = tpu.concatenate %346, %351 in 0 : vector<1x128xf32>, vector<1x128xf32> -> vector<2x128xf32>
    %353 = arith.truncf %352 : vector<2x128xf32> to vector<2x128xbf16>
    %c0_55 = arith.constant 0 : index
    %c0_56 = arith.constant 0 : index
    %354 = vector.load %arg9[%c0_55, %c0_56] : memref<128x8xbf16, #tpu.memory_space<vmem>>, vector<128x8xbf16>
    %cst_57 = arith.constant dense<0.000000e+00> : vector<2x8xf32>
    %355 = tpu.matmul %353, %354, %cst_57 {dimension_numbers = #tpu.dot_dimension_numbers<[1], [0], [0], [1], [0, 0, 1, 1], [], []>} : vector<2x128xbf16>, vector<128x8xbf16>, vector<2x8xf32> -> vector<2x8xf32>
    %cst_58 = arith.constant 0.000000e+00 : f32
    %356 = vector.broadcast %cst_58 : f32 to vector<2x8xf32>
    %357 = arith.maximumf %355, %356 : vector<2x8xf32>
    %358 = arith.truncf %357 : vector<2x8xf32> to vector<2x8xbf16>
    %c0_59 = arith.constant 0 : index
    %c0_60 = arith.constant 0 : index
    %359 = vector.load %arg10[%c0_59, %c0_60] : memref<8x128xbf16, #tpu.memory_space<vmem>>, vector<8x128xbf16>
    %cst_61 = arith.constant dense<0.000000e+00> : vector<2x128xf32>
    %360 = tpu.matmul %358, %359, %cst_61 {dimension_numbers = #tpu.dot_dimension_numbers<[1], [0], [0], [1], [0, 0, 1, 1], [], []>} : vector<2x8xbf16>, vector<8x128xbf16>, vector<2x128xf32> -> vector<2x128xf32>
    %361 = arith.negf %360 : vector<2x128xf32>
    %362 = math.exp %361 : vector<2x128xf32>
    %cst_62 = arith.constant 1.000000e+00 : f32
    %363 = vector.broadcast %cst_62 : f32 to vector<2x128xf32>
    %364 = arith.addf %363, %362 : vector<2x128xf32>
    %365 = arith.divf %363, %364 : vector<2x128xf32>
    %366 = vector.extract_strided_slice %341 {offsets = [0, 0], sizes = [9, 128], strides = [1, 1]} : vector<18x128xf32> to vector<9x128xf32>
    %367 = vector.extract_strided_slice %365 {offsets = [0, 0], sizes = [1, 128], strides = [1, 1]} : vector<2x128xf32> to vector<1x128xf32>
    %368 = vector.broadcast %367 : vector<1x128xf32> to vector<9x128xf32>
    %369 = arith.mulf %366, %368 : vector<9x128xf32>
    %370 = vector.extract_strided_slice %341 {offsets = [9, 0], sizes = [9, 128], strides = [1, 1]} : vector<18x128xf32> to vector<9x128xf32>
    %371 = vector.extract_strided_slice %365 {offsets = [1, 0], sizes = [1, 128], strides = [1, 1]} : vector<2x128xf32> to vector<1x128xf32>
    %372 = vector.broadcast %371 : vector<1x128xf32> to vector<9x128xf32>
    %373 = arith.mulf %370, %372 : vector<9x128xf32>
    %374 = tpu.concatenate %369, %373 in 0 : vector<9x128xf32>, vector<9x128xf32> -> vector<18x128xf32>
    %375 = vector.extract_strided_slice %374 {offsets = [0, 0], sizes = [5, 128], strides = [1, 1]} : vector<18x128xf32> to vector<5x128xf32>
    %376 = vector.extract_strided_slice %374 {offsets = [1, 0], sizes = [5, 128], strides = [1, 1]} : vector<18x128xf32> to vector<5x128xf32>
    %377 = vector.extract_strided_slice %374 {offsets = [2, 0], sizes = [5, 128], strides = [1, 1]} : vector<18x128xf32> to vector<5x128xf32>
    %378 = vector.extract_strided_slice %374 {offsets = [3, 0], sizes = [5, 128], strides = [1, 1]} : vector<18x128xf32> to vector<5x128xf32>
    %379 = vector.extract_strided_slice %374 {offsets = [4, 0], sizes = [5, 128], strides = [1, 1]} : vector<18x128xf32> to vector<5x128xf32>
    %380 = tpu.concatenate %375, %376, %377, %378, %379 in 1 : vector<5x128xf32>, vector<5x128xf32>, vector<5x128xf32>, vector<5x128xf32>, vector<5x128xf32> -> vector<5x640xf32>
    %381 = vector.extract_strided_slice %374 {offsets = [9, 0], sizes = [5, 128], strides = [1, 1]} : vector<18x128xf32> to vector<5x128xf32>
    %382 = vector.extract_strided_slice %374 {offsets = [10, 0], sizes = [5, 128], strides = [1, 1]} : vector<18x128xf32> to vector<5x128xf32>
    %383 = vector.extract_strided_slice %374 {offsets = [11, 0], sizes = [5, 128], strides = [1, 1]} : vector<18x128xf32> to vector<5x128xf32>
    %384 = vector.extract_strided_slice %374 {offsets = [12, 0], sizes = [5, 128], strides = [1, 1]} : vector<18x128xf32> to vector<5x128xf32>
    %385 = vector.extract_strided_slice %374 {offsets = [13, 0], sizes = [5, 128], strides = [1, 1]} : vector<18x128xf32> to vector<5x128xf32>
    %386 = tpu.concatenate %381, %382, %383, %384, %385 in 1 : vector<5x128xf32>, vector<5x128xf32>, vector<5x128xf32>, vector<5x128xf32>, vector<5x128xf32> -> vector<5x640xf32>
    %387 = tpu.concatenate %380, %386 in 0 : vector<5x640xf32>, vector<5x640xf32> -> vector<10x640xf32>
    %388 = arith.truncf %387 : vector<10x640xf32> to vector<10x640xbf16>
    %c0_63 = arith.constant 0 : index
    %c0_64 = arith.constant 0 : index
    %389 = vector.load %arg11[%c0_63, %c0_64] : memref<640x256xbf16, #tpu.memory_space<vmem>>, vector<640x256xbf16>
    %cst_65 = arith.constant dense<0.000000e+00> : vector<10x256xf32>
    %390 = tpu.matmul %388, %389, %cst_65 {dimension_numbers = #tpu.dot_dimension_numbers<[1], [0], [0], [1], [0, 0, 1, 1], [], []>} : vector<10x640xbf16>, vector<640x256xbf16>, vector<10x256xf32> -> vector<10x256xf32>
    %c0_66 = arith.constant 0 : index
    %c0_67 = arith.constant 0 : index
    %391 = vector.load %arg12[%c0_66, %c0_67] : memref<1x256xf32, #tpu.memory_space<vmem>>, vector<1x256xf32>
    %392 = vector.broadcast %391 : vector<1x256xf32> to vector<10x256xf32>
    %393 = arith.mulf %390, %392 : vector<10x256xf32>
    %c0_68 = arith.constant 0 : index
    %c0_69 = arith.constant 0 : index
    %394 = vector.load %arg13[%c0_68, %c0_69] : memref<1x256xf32, #tpu.memory_space<vmem>>, vector<1x256xf32>
    %395 = vector.broadcast %394 : vector<1x256xf32> to vector<10x256xf32>
    %396 = arith.addf %393, %395 : vector<10x256xf32>
    %cst_70 = arith.constant 0.000000e+00 : f32
    %397 = vector.broadcast %cst_70 : f32 to vector<10x256xf32>
    %398 = arith.maximumf %396, %397 : vector<10x256xf32>
    %399 = vector.extract_strided_slice %398 {offsets = [0, 0], sizes = [5, 256], strides = [1, 1]} : vector<10x256xf32> to vector<5x256xf32>
    %cst_71 = arith.constant dense<0.000000e+00> : vector<256xf32>
    %400 = vector.multi_reduction <add>, %399, %cst_71 [0] : vector<5x256xf32> to vector<256xf32>
    %401 = vector.shape_cast %400 : vector<256xf32> to vector<1x256xf32>
    %cst_72 = arith.constant 5.000000e+00 : f32
    %402 = vector.broadcast %cst_72 : f32 to vector<1x256xf32>
    %403 = arith.divf %401, %402 : vector<1x256xf32>
    %404 = vector.extract_strided_slice %398 {offsets = [5, 0], sizes = [5, 256], strides = [1, 1]} : vector<10x256xf32> to vector<5x256xf32>
    %cst_73 = arith.constant dense<0.000000e+00> : vector<256xf32>
    %405 = vector.multi_reduction <add>, %404, %cst_73 [0] : vector<5x256xf32> to vector<256xf32>
    %406 = vector.shape_cast %405 : vector<256xf32> to vector<1x256xf32>
    %cst_74 = arith.constant 5.000000e+00 : f32
    %407 = vector.broadcast %cst_74 : f32 to vector<1x256xf32>
    %408 = arith.divf %406, %407 : vector<1x256xf32>
    %409 = tpu.concatenate %403, %408 in 0 : vector<1x256xf32>, vector<1x256xf32> -> vector<2x256xf32>
    %410 = arith.truncf %409 : vector<2x256xf32> to vector<2x256xbf16>
    %c0_75 = arith.constant 0 : index
    %c0_76 = arith.constant 0 : index
    %411 = vector.load %arg14[%c0_75, %c0_76] : memref<256x16xbf16, #tpu.memory_space<vmem>>, vector<256x16xbf16>
    %cst_77 = arith.constant dense<0.000000e+00> : vector<2x16xf32>
    %412 = tpu.matmul %410, %411, %cst_77 {dimension_numbers = #tpu.dot_dimension_numbers<[1], [0], [0], [1], [0, 0, 1, 1], [], []>} : vector<2x256xbf16>, vector<256x16xbf16>, vector<2x16xf32> -> vector<2x16xf32>
    %cst_78 = arith.constant 0.000000e+00 : f32
    %413 = vector.broadcast %cst_78 : f32 to vector<2x16xf32>
    %414 = arith.maximumf %412, %413 : vector<2x16xf32>
    %415 = arith.truncf %414 : vector<2x16xf32> to vector<2x16xbf16>
    %c0_79 = arith.constant 0 : index
    %c0_80 = arith.constant 0 : index
    %416 = vector.load %arg15[%c0_79, %c0_80] : memref<16x256xbf16, #tpu.memory_space<vmem>>, vector<16x256xbf16>
    %cst_81 = arith.constant dense<0.000000e+00> : vector<2x256xf32>
    %417 = tpu.matmul %415, %416, %cst_81 {dimension_numbers = #tpu.dot_dimension_numbers<[1], [0], [0], [1], [0, 0, 1, 1], [], []>} : vector<2x16xbf16>, vector<16x256xbf16>, vector<2x256xf32> -> vector<2x256xf32>
    %418 = arith.negf %417 : vector<2x256xf32>
    %419 = math.exp %418 : vector<2x256xf32>
    %cst_82 = arith.constant 1.000000e+00 : f32
    %420 = vector.broadcast %cst_82 : f32 to vector<2x256xf32>
    %421 = arith.addf %420, %419 : vector<2x256xf32>
    %422 = arith.divf %420, %421 : vector<2x256xf32>
    %423 = vector.extract_strided_slice %398 {offsets = [0, 0], sizes = [5, 256], strides = [1, 1]} : vector<10x256xf32> to vector<5x256xf32>
    %424 = vector.extract_strided_slice %422 {offsets = [0, 0], sizes = [1, 256], strides = [1, 1]} : vector<2x256xf32> to vector<1x256xf32>
    %425 = vector.broadcast %424 : vector<1x256xf32> to vector<5x256xf32>
    %426 = arith.mulf %423, %425 : vector<5x256xf32>
    %427 = vector.extract_strided_slice %398 {offsets = [5, 0], sizes = [5, 256], strides = [1, 1]} : vector<10x256xf32> to vector<5x256xf32>
    %428 = vector.extract_strided_slice %422 {offsets = [1, 0], sizes = [1, 256], strides = [1, 1]} : vector<2x256xf32> to vector<1x256xf32>
    %429 = vector.broadcast %428 : vector<1x256xf32> to vector<5x256xf32>
    %430 = arith.mulf %427, %429 : vector<5x256xf32>
    %431 = tpu.concatenate %426, %430 in 0 : vector<5x256xf32>, vector<5x256xf32> -> vector<10x256xf32>
    %432 = vector.extract_strided_slice %431 {offsets = [0, 0], sizes = [3, 256], strides = [1, 1]} : vector<10x256xf32> to vector<3x256xf32>
    %433 = vector.extract_strided_slice %431 {offsets = [1, 0], sizes = [3, 256], strides = [1, 1]} : vector<10x256xf32> to vector<3x256xf32>
    %434 = vector.extract_strided_slice %431 {offsets = [2, 0], sizes = [3, 256], strides = [1, 1]} : vector<10x256xf32> to vector<3x256xf32>
    %435 = tpu.concatenate %432, %433, %434 in 1 : vector<3x256xf32>, vector<3x256xf32>, vector<3x256xf32> -> vector<3x768xf32>
    %436 = vector.extract_strided_slice %431 {offsets = [5, 0], sizes = [3, 256], strides = [1, 1]} : vector<10x256xf32> to vector<3x256xf32>
    %437 = vector.extract_strided_slice %431 {offsets = [6, 0], sizes = [3, 256], strides = [1, 1]} : vector<10x256xf32> to vector<3x256xf32>
    %438 = vector.extract_strided_slice %431 {offsets = [7, 0], sizes = [3, 256], strides = [1, 1]} : vector<10x256xf32> to vector<3x256xf32>
    %439 = tpu.concatenate %436, %437, %438 in 1 : vector<3x256xf32>, vector<3x256xf32>, vector<3x256xf32> -> vector<3x768xf32>
    %440 = tpu.concatenate %435, %439 in 0 : vector<3x768xf32>, vector<3x768xf32> -> vector<6x768xf32>
    %441 = arith.truncf %440 : vector<6x768xf32> to vector<6x768xbf16>
    %c0_83 = arith.constant 0 : index
    %c0_84 = arith.constant 0 : index
    %442 = vector.load %arg16[%c0_83, %c0_84] : memref<768x128xbf16, #tpu.memory_space<vmem>>, vector<768x128xbf16>
    %cst_85 = arith.constant dense<0.000000e+00> : vector<6x128xf32>
    %443 = tpu.matmul %441, %442, %cst_85 {dimension_numbers = #tpu.dot_dimension_numbers<[1], [0], [0], [1], [0, 0, 1, 1], [], []>} : vector<6x768xbf16>, vector<768x128xbf16>, vector<6x128xf32> -> vector<6x128xf32>
    %c0_86 = arith.constant 0 : index
    %c0_87 = arith.constant 0 : index
    %444 = vector.load %arg17[%c0_86, %c0_87] : memref<1x128xf32, #tpu.memory_space<vmem>>, vector<1x128xf32>
    %445 = vector.broadcast %444 : vector<1x128xf32> to vector<6x128xf32>
    %446 = arith.mulf %443, %445 : vector<6x128xf32>
    %c0_88 = arith.constant 0 : index
    %c0_89 = arith.constant 0 : index
    %447 = vector.load %arg18[%c0_88, %c0_89] : memref<1x128xf32, #tpu.memory_space<vmem>>, vector<1x128xf32>
    %448 = vector.broadcast %447 : vector<1x128xf32> to vector<6x128xf32>
    %449 = arith.addf %446, %448 : vector<6x128xf32>
    %cst_90 = arith.constant 0.000000e+00 : f32
    %450 = vector.broadcast %cst_90 : f32 to vector<6x128xf32>
    %451 = arith.maximumf %449, %450 : vector<6x128xf32>
    %452 = vector.extract_strided_slice %451 {offsets = [0, 0], sizes = [3, 128], strides = [1, 1]} : vector<6x128xf32> to vector<3x128xf32>
    %cst_91 = arith.constant dense<0.000000e+00> : vector<128xf32>
    %453 = vector.multi_reduction <add>, %452, %cst_91 [0] : vector<3x128xf32> to vector<128xf32>
    %454 = vector.shape_cast %453 : vector<128xf32> to vector<1x128xf32>
    %cst_92 = arith.constant 3.000000e+00 : f32
    %455 = vector.broadcast %cst_92 : f32 to vector<1x128xf32>
    %456 = arith.divf %454, %455 : vector<1x128xf32>
    %457 = vector.extract_strided_slice %451 {offsets = [3, 0], sizes = [3, 128], strides = [1, 1]} : vector<6x128xf32> to vector<3x128xf32>
    %cst_93 = arith.constant dense<0.000000e+00> : vector<128xf32>
    %458 = vector.multi_reduction <add>, %457, %cst_93 [0] : vector<3x128xf32> to vector<128xf32>
    %459 = vector.shape_cast %458 : vector<128xf32> to vector<1x128xf32>
    %cst_94 = arith.constant 3.000000e+00 : f32
    %460 = vector.broadcast %cst_94 : f32 to vector<1x128xf32>
    %461 = arith.divf %459, %460 : vector<1x128xf32>
    %462 = tpu.concatenate %456, %461 in 0 : vector<1x128xf32>, vector<1x128xf32> -> vector<2x128xf32>
    %463 = arith.truncf %329 : vector<2x128xf32> to vector<2x128xbf16>
    %c0_95 = arith.constant 0 : index
    %c0_96 = arith.constant 0 : index
    %464 = vector.load %arg19[%c0_95, %c0_96] : memref<128x128xbf16, #tpu.memory_space<vmem>>, vector<128x128xbf16>
    %cst_97 = arith.constant dense<0.000000e+00> : vector<2x128xf32>
    %465 = tpu.matmul %463, %464, %cst_97 {dimension_numbers = #tpu.dot_dimension_numbers<[1], [0], [0], [1], [0, 0, 1, 1], [], []>} : vector<2x128xbf16>, vector<128x128xbf16>, vector<2x128xf32> -> vector<2x128xf32>
    %466 = arith.truncf %462 : vector<2x128xf32> to vector<2x128xbf16>
    %c0_98 = arith.constant 0 : index
    %c0_99 = arith.constant 0 : index
    %467 = vector.load %arg20[%c0_98, %c0_99] : memref<128x128xbf16, #tpu.memory_space<vmem>>, vector<128x128xbf16>
    %cst_100 = arith.constant dense<0.000000e+00> : vector<2x128xf32>
    %468 = tpu.matmul %466, %467, %cst_100 {dimension_numbers = #tpu.dot_dimension_numbers<[1], [0], [0], [1], [0, 0, 1, 1], [], []>} : vector<2x128xbf16>, vector<128x128xbf16>, vector<2x128xf32> -> vector<2x128xf32>
    %469 = arith.addf %465, %468 : vector<2x128xf32>
    %c0_101 = arith.constant 0 : index
    %c0_102 = arith.constant 0 : index
    %470 = vector.load %arg21[%c0_101, %c0_102] : memref<1x128xf32, #tpu.memory_space<vmem>>, vector<1x128xf32>
    %471 = vector.broadcast %470 : vector<1x128xf32> to vector<2x128xf32>
    %472 = arith.addf %469, %471 : vector<2x128xf32>
    %cst_103 = arith.constant dense<0xFF800000> : vector<2xf32>
    %473 = vector.multi_reduction <maximumf>, %472, %cst_103 [1] : vector<2x128xf32> to vector<2xf32>
    %474 = vector.shape_cast %473 : vector<2xf32> to vector<2x1xf32>
    %475 = vector.broadcast %474 : vector<2x1xf32> to vector<2x128xf32>
    %476 = arith.subf %472, %475 : vector<2x128xf32>
    %477 = math.exp %476 : vector<2x128xf32>
    %cst_104 = arith.constant dense<0.000000e+00> : vector<2xf32>
    %478 = vector.multi_reduction <add>, %477, %cst_104 [1] : vector<2x128xf32> to vector<2xf32>
    %479 = vector.shape_cast %478 : vector<2xf32> to vector<2x1xf32>
    %480 = math.log %479 : vector<2x1xf32>
    %481 = vector.broadcast %480 : vector<2x1xf32> to vector<2x128xf32>
    %482 = arith.subf %476, %481 : vector<2x128xf32>
    %c0_105 = arith.constant 0 : index
    %c0_106 = arith.constant 0 : index
    %483 = vector.load %arg22[%c0_105, %c0_106] : memref<2x128xf32, #tpu.memory_space<vmem>>, vector<2x128xf32>
    tpu.vector_store %arg22[%c0_105, %c0_106], %482 {strides = array<i32>} : memref<2x128xf32, #tpu.memory_space<vmem>>, vector<2x128xf32>,
    return
  }
  func.func @transform_0(%arg0: i32) -> (i32, i32) {
    %c0_i32 = arith.constant 0 : i32
    %c0_i32_0 = arith.constant 0 : i32
    %c0_i32_1 = arith.constant 0 : i32
    return %c0_i32, %c0_i32_0 : i32, i32
  }
  func.func @transform_1(%arg0: i32) -> (i32, i32) {
    %c0_i32 = arith.constant 0 : i32
    %c0_i32_0 = arith.constant 0 : i32
    %c0_i32_1 = arith.constant 0 : i32
    return %c0_i32, %c0_i32_0 : i32, i32
  }
  func.func @transform_2(%arg0: i32) -> (i32, i32) {
    %c0_i32 = arith.constant 0 : i32
    %c0_i32_0 = arith.constant 0 : i32
    %c0_i32_1 = arith.constant 0 : i32
    return %c0_i32, %c0_i32_0 : i32, i32
  }
  func.func @transform_3(%arg0: i32) -> (i32, i32) {
    %c0_i32 = arith.constant 0 : i32
    %c0_i32_0 = arith.constant 0 : i32
    %c0_i32_1 = arith.constant 0 : i32
    return %c0_i32, %c0_i32_0 : i32, i32
  }
  func.func @transform_4(%arg0: i32) -> (i32, i32) {
    %c0_i32 = arith.constant 0 : i32
    %c0_i32_0 = arith.constant 0 : i32
    %c0_i32_1 = arith.constant 0 : i32
    return %c0_i32, %c0_i32_0 : i32, i32
  }
  func.func @transform_5(%arg0: i32) -> (i32, i32) {
    %c0_i32 = arith.constant 0 : i32
    %c0_i32_0 = arith.constant 0 : i32
    %c0_i32_1 = arith.constant 0 : i32
    return %c0_i32, %c0_i32_0 : i32, i32
  }
  func.func @transform_6(%arg0: i32) -> (i32, i32) {
    %c0_i32 = arith.constant 0 : i32
    %c0_i32_0 = arith.constant 0 : i32
    %c0_i32_1 = arith.constant 0 : i32
    return %c0_i32, %c0_i32_0 : i32, i32
  }
  func.func @transform_7(%arg0: i32) -> (i32, i32) {
    %c0_i32 = arith.constant 0 : i32
    %c0_i32_0 = arith.constant 0 : i32
    %c0_i32_1 = arith.constant 0 : i32
    return %c0_i32, %c0_i32_0 : i32, i32
  }
  func.func @transform_8(%arg0: i32) -> (i32, i32) {
    %c0_i32 = arith.constant 0 : i32
    %c0_i32_0 = arith.constant 0 : i32
    %c0_i32_1 = arith.constant 0 : i32
    return %c0_i32, %c0_i32_0 : i32, i32
  }
  func.func @transform_9(%arg0: i32) -> (i32, i32) {
    %c0_i32 = arith.constant 0 : i32
    %c0_i32_0 = arith.constant 0 : i32
    %c0_i32_1 = arith.constant 0 : i32
    return %c0_i32, %c0_i32_0 : i32, i32
  }
  func.func @transform_10(%arg0: i32) -> (i32, i32) {
    %c0_i32 = arith.constant 0 : i32
    %c0_i32_0 = arith.constant 0 : i32
    %c0_i32_1 = arith.constant 0 : i32
    return %c0_i32, %c0_i32_0 : i32, i32
  }
  func.func @transform_11(%arg0: i32) -> (i32, i32) {
    %c0_i32 = arith.constant 0 : i32
    %c0_i32_0 = arith.constant 0 : i32
    %c0_i32_1 = arith.constant 0 : i32
    return %c0_i32, %c0_i32_0 : i32, i32
  }
  func.func @transform_12(%arg0: i32) -> (i32, i32) {
    %c0_i32 = arith.constant 0 : i32
    %c0_i32_0 = arith.constant 0 : i32
    %c0_i32_1 = arith.constant 0 : i32
    return %c0_i32, %c0_i32_0 : i32, i32
  }
  func.func @transform_13(%arg0: i32) -> (i32, i32) {
    %c0_i32 = arith.constant 0 : i32
    %c0_i32_0 = arith.constant 0 : i32
    %c0_i32_1 = arith.constant 0 : i32
    return %c0_i32, %c0_i32_0 : i32, i32
  }
  func.func @transform_14(%arg0: i32) -> (i32, i32) {
    %c0_i32 = arith.constant 0 : i32
    %c0_i32_0 = arith.constant 0 : i32
    %c0_i32_1 = arith.constant 0 : i32
    return %c0_i32, %c0_i32_0 : i32, i32
  }
  func.func @transform_15(%arg0: i32) -> (i32, i32) {
    %c0_i32 = arith.constant 0 : i32
    %c0_i32_0 = arith.constant 0 : i32
    %c0_i32_1 = arith.constant 0 : i32
    return %c0_i32, %c0_i32_0 : i32, i32
  }
  func.func @transform_16(%arg0: i32) -> (i32, i32) {
    %c0_i32 = arith.constant 0 : i32
    %c0_i32_0 = arith.constant 0 : i32
    %c0_i32_1 = arith.constant 0 : i32
    return %c0_i32, %c0_i32_0 : i32, i32
  }
  func.func @transform_17(%arg0: i32) -> (i32, i32) {
    %c0_i32 = arith.constant 0 : i32
    %c0_i32_0 = arith.constant 0 : i32
    %c0_i32_1 = arith.constant 0 : i32
    return %c0_i32, %c0_i32_0 : i32, i32
  }
  func.func @transform_18(%arg0: i32) -> (i32, i32) {
    %c0_i32 = arith.constant 0 : i32
    %c0_i32_0 = arith.constant 0 : i32
    %c0_i32_1 = arith.constant 0 : i32
    return %c0_i32, %c0_i32_0 : i32, i32
  }
  func.func @transform_19(%arg0: i32) -> (i32, i32) {
    %c0_i32 = arith.constant 0 : i32
    %c0_i32_0 = arith.constant 0 : i32
    %c0_i32_1 = arith.constant 0 : i32
    return %c0_i32, %c0_i32_0 : i32, i32
  }
  func.func @transform_20(%arg0: i32) -> (i32, i32) {
    %c0_i32 = arith.constant 0 : i32
    %c0_i32_0 = arith.constant 0 : i32
    %c0_i32_1 = arith.constant 0 : i32
    return %c0_i32, %c0_i32_0 : i32, i32
  }
  func.func @transform_21(%arg0: i32) -> (i32, i32) {
    %c0_i32 = arith.constant 0 : i32
    %c0_i32_0 = arith.constant 0 : i32
    %c0_i32_1 = arith.constant 0 : i32
    return %c0_i32, %c0_i32_0 : i32, i32
  }
}

</mosaic_0001>

<llo_original>
// kernel: _lambda_.1
$region0: #{_lambda_.1}
  #allocation0 [shape = 'u32[]', space=smem, size = 0x4, offset = 0x4, fixed_abs, tag = 'smem constant byte address 0x4 - core index']
  #allocation1 [shape = 'u32[72,128]{1,0:T(1,128)}', space=vmem, size = 0x9000, scoped, tag = 'internal scratch']
  %s0 = inlined_call_operand.vmem [shape: f32[32,8], index: 0, kind: input, shape index: {}]
  %s1 = inlined_call_operand.vmem [shape: f32[18,64], index: 1, kind: input, shape index: {}]
  %s2 = inlined_call_operand.vmem [shape: bf16[8,512], index: 2, kind: input, shape index: {}]
  %s3 = inlined_call_operand.vmem [shape: bf16[128,512], index: 3, kind: input, shape index: {}]
  %s4 = inlined_call_operand.vmem [shape: f32[1,512], index: 4, kind: input, shape index: {}]
  %s5 = inlined_call_operand.vmem [shape: bf16[64,128], index: 5, kind: input, shape index: {}]
  %s6 = inlined_call_operand.hbm [shape: f32[1,128], index: 6, kind: input, shape index: {}]
  %s7 = inlined_call_operand.hbm [shape: f32[1,128], index: 7, kind: input, shape index: {}]
  %s8 = inlined_call_operand.hbm [shape: bf16[128,8], index: 8, kind: input, shape index: {}]
  %s9 = inlined_call_operand.vmem [shape: bf16[8,128], index: 9, kind: input, shape index: {}]
  %s10 = inlined_call_operand.vmem [shape: bf16[640,256], index: 10, kind: input, shape index: {}]
  %s11 = inlined_call_operand.vmem [shape: f32[1,256], index: 11, kind: input, shape index: {}]
  %s12 = inlined_call_operand.vmem [shape: f32[1,256], index: 12, kind: input, shape index: {}]
  %s13 = inlined_call_operand.hbm [shape: bf16[256,16], index: 13, kind: input, shape index: {}]
  %s14 = inlined_call_operand.hbm [shape: bf16[16,256], index: 14, kind: input, shape index: {}]
  %s15 = inlined_call_operand.hbm [shape: bf16[768,128], index: 15, kind: input, shape index: {}]
  %s16 = inlined_call_operand.hbm [shape: f32[1,128], index: 16, kind: input, shape index: {}]
  %s17 = inlined_call_operand.hbm [shape: f32[1,128], index: 17, kind: input, shape index: {}]
  %s18 = inlined_call_operand.hbm [shape: bf16[128,128], index: 18, kind: input, shape index: {}]
  %s19 = inlined_call_operand.hbm [shape: bf16[128,128], index: 19, kind: input, shape index: {}]
  %s20 = inlined_call_operand.hbm [shape: f32[1,128], index: 20, kind: input, shape index: {}]
  %s21 = inlined_call_operand.hbm [shape: f32[2,128], index: 21, kind: output, shape index: {}]
  %s22 = sld [smem:[#allocation0]]
  $region138: #{_lambda_.1} parent=0
    _
  %s24 = ssub.s32 1, %s22
  %s25 = scalar_select 0, %s24, %s22
  $region1: #{_lambda_.1} parent=0
    #allocation2 [shape = 'u8[512]{0}', space=vmem, size = 0x400, scoped, tag = 'input window, operand 6, single buffered']
    #allocation3 [shape = 's32[1]{0}', space=sflag, size = 0x4, scoped, tag = 'scoped memory for _lambda_.1']
    #allocation4 [shape = 's32[1]{0}', space=sflag, size = 0x4, scoped, tag = 'scoped memory for _lambda_.1']
    #allocation5 [shape = 'u8[512]{0}', space=vmem, size = 0x400, scoped, tag = 'input window, operand 7, single buffered']
    #allocation6 [shape = 's32[1]{0}', space=sflag, size = 0x4, scoped, tag = 'scoped memory for _lambda_.1']
    #allocation7 [shape = 'u8[32768]{0}', space=vmem, size = 0x8000, scoped, tag = 'input window, operand 8, single buffered']
    #allocation8 [shape = 'u8[65536]{0}', space=vmem, size = 0x10000, scoped, tag = 'input window, operand 13, single buffered']
    #allocation9 [shape = 's32[1]{0}', space=sflag, size = 0x4, scoped, tag = 'scoped memory for _lambda_.1']
    #allocation10 [shape = 'u8[8192]{0}', space=vmem, size = 0x2000, scoped, tag = 'input window, operand 14, single buffered']
    #allocation11 [shape = 'u8[196608]{0}', space=vmem, size = 0x30000, scoped, tag = 'input window, operand 15, single buffered']
    #allocation12 [shape = 's32[1]{0}', space=sflag, size = 0x4, scoped, tag = 'scoped memory for _lambda_.1']
    #allocation13 [shape = 'u8[512]{0}', space=vmem, size = 0x400, scoped, tag = 'input window, operand 16, single buffered']
    #allocation14 [shape = 'u8[512]{0}', space=vmem, size = 0x400, scoped, tag = 'input window, operand 17, single buffered']
    #allocation15 [shape = 's32[1]{0}', space=sflag, size = 0x4, scoped, tag = 'scoped memory for _lambda_.1']
    #allocation16 [shape = 'u8[32768]{0}', space=vmem, size = 0x8000, scoped, tag = 'input window, operand 18, single buffered']
    #allocation17 [shape = 'u8[32768]{0}', space=vmem, size = 0x8000, scoped, tag = 'input window, operand 19, single buffered']
    #allocation18 [shape = 's32[1]{0}', space=sflag, size = 0x4, scoped, tag = 'scoped memory for _lambda_.1']
    #allocation19 [shape = 'u8[512]{0}', space=vmem, size = 0x400, scoped, tag = 'input window, operand 20, single buffered']
    #allocation20 [shape = 'u8[1024]{0}', space=vmem, size = 0x400, scoped, tag = 'output window, operand 0, single buffered']
    %26 = vsyncpa [#allocation3], 0
    %27 = vsyncpa [#allocation6], 0
    %28 = vsyncpa [#allocation9], 0
    %29 = vsyncpa [#allocation12], 0
    %30 = vsyncpa [#allocation15], 0
    %31 = vsyncpa [#allocation18], 0
    %32 = vsyncpa [#allocation4], 0
    // Predicated region
    $region2: #{_lambda_.1} parent=1 // pred_check
      _
    $region3: #{_lambda_.1} parent=1 // pred_check_branch
      %34 = sbr.rel (0) target = $region5
    $region4: #{_lambda_.1} parent=1 // pred_region
      _
    $region5: #{_lambda_.1} parent=1 // pred_fallthru
      _
    // Predicated region
    $region6: #{_lambda_.1} parent=1 // pred_check
      _
    $region7: #{_lambda_.1} parent=1 // pred_check_branch
      %36 = sbr.rel (0) target = $region9
    $region8: #{_lambda_.1} parent=1 // pred_region
      _
    $region9: #{_lambda_.1} parent=1 // pred_fallthru
      _
    // Predicated region
    $region10: #{_lambda_.1} parent=1 // pred_check
      _
    $region11: #{_lambda_.1} parent=1 // pred_check_branch
      %38 = sbr.rel (0) target = $region13
    $region12: #{_lambda_.1} parent=1 // pred_region
      _
    $region13: #{_lambda_.1} parent=1 // pred_fallthru
      _
    // Predicated region
    $region14: #{_lambda_.1} parent=1 // pred_check
      _
    $region15: #{_lambda_.1} parent=1 // pred_check_branch
      %40 = sbr.rel (0) target = $region17
    $region16: #{_lambda_.1} parent=1 // pred_region
      _
    $region17: #{_lambda_.1} parent=1 // pred_fallthru
      _
    // Predicated region
    $region18: #{_lambda_.1} parent=1 // pred_check
      _
    $region19: #{_lambda_.1} parent=1 // pred_check_branch
      %42 = sbr.rel (0) target = $region21
    $region20: #{_lambda_.1} parent=1 // pred_region
      _
    $region21: #{_lambda_.1} parent=1 // pred_fallthru
      _
    // Predicated region
    $region22: #{_lambda_.1} parent=1 // pred_check
      _
    $region23: #{_lambda_.1} parent=1 // pred_check_branch
      %44 = sbr.rel (0) target = $region25
    $region24: #{_lambda_.1} parent=1 // pred_region
      _
    $region25: #{_lambda_.1} parent=1 // pred_fallthru
      _
    // Predicated region
    $region26: #{_lambda_.1} parent=1 // pred_check
      _
    $region27: #{_lambda_.1} parent=1 // pred_check_branch
      %46 = sbr.rel (0) target = $region29
    $region28: #{_lambda_.1} parent=1 // pred_region
      %48 = vsyncadd [#allocation3], 0
      %s50 = sshll.u32 %s6, 4
      %s51 = int_to_ptr.hbm [resolvable:$true] %s50
      %s52 = sshll.u32 [#allocation2], 4
      %s53 = int_to_ptr.vmem [resolvable:$true] %s52
      %55 = dma.hbm_to_vmem [thread:$0]  %s51, 16, %s53, [#allocation3]
    $region29: #{_lambda_.1} parent=1 // pred_fallthru
      _
    // Predicated region
    $region30: #{_lambda_.1} parent=1 // pred_check
      _
    $region31: #{_lambda_.1} parent=1 // pred_check_branch
      %57 = sbr.rel (0) target = $region33
    $region32: #{_lambda_.1} parent=1 // pred_region
      %59 = vsyncadd [#allocation6], 0
      %s61 = sshll.u32 %s7, 4
      %s62 = int_to_ptr.hbm [resolvable:$true] %s61
      %s63 = sshll.u32 [#allocation5], 4
      %s64 = int_to_ptr.vmem [resolvable:$true] %s63
      %66 = dma.hbm_to_vmem [thread:$0]  %s62, 16, %s64, [#allocation6]
    $region33: #{_lambda_.1} parent=1 // pred_fallthru
      _
    // Predicated region
    $region34: #{_lambda_.1} parent=1 // pred_check
      _
    $region35: #{_lambda_.1} parent=1 // pred_check_branch
      %68 = sbr.rel (0) target = $region37
    $region36: #{_lambda_.1} parent=1 // pred_region
      %70 = vsyncadd [#allocation6], 0
      %s71 = sshll.u32 %s8, 4
      %s72 = int_to_ptr.hbm [resolvable:$true] %s71
      %s73 = sshll.u32 [#allocation7], 4
      %s74 = int_to_ptr.vmem [resolvable:$true] %s73
      %79 = dma.hbm_to_vmem [thread:$0]  %s72, 1024, %s74, [#allocation6], 64, 64, 4
    $region37: #{_lambda_.1} parent=1 // pred_fallthru
      _
    // Predicated region
    $region38: #{_lambda_.1} parent=1 // pred_check
      _
    $region39: #{_lambda_.1} parent=1 // pred_check_branch
      %81 = sbr.rel (0) target = $region41
    $region40: #{_lambda_.1} parent=1 // pred_region
      _
    $region41: #{_lambda_.1} parent=1 // pred_fallthru
      _
    // Predicated region
    $region42: #{_lambda_.1} parent=1 // pred_check
      _
    $region43: #{_lambda_.1} parent=1 // pred_check_branch
      %83 = sbr.rel (0) target = $region45
    $region44: #{_lambda_.1} parent=1 // pred_region
      _
    $region45: #{_lambda_.1} parent=1 // pred_fallthru
      _
    // Predicated region
    $region46: #{_lambda_.1} parent=1 // pred_check
      _
    $region47: #{_lambda_.1} parent=1 // pred_check_branch
      %85 = sbr.rel (0) target = $region49
    $region48: #{_lambda_.1} parent=1 // pred_region
      _
    $region49: #{_lambda_.1} parent=1 // pred_fallthru
      _
    // Predicated region
    $region50: #{_lambda_.1} parent=1 // pred_check
      _
    $region51: #{_lambda_.1} parent=1 // pred_check_branch
      %87 = sbr.rel (0) target = $region53
    $region52: #{_lambda_.1} parent=1 // pred_region
      _
    $region53: #{_lambda_.1} parent=1 // pred_fallthru
      _
    // Predicated region
    $region54: #{_lambda_.1} parent=1 // pred_check
      _
    $region55: #{_lambda_.1} parent=1 // pred_check_branch
      %89 = sbr.rel (0) target = $region57
    $region56: #{_lambda_.1} parent=1 // pred_region
      %91 = vsyncadd [#allocation9], 0
      %s92 = sshll.u32 %s13, 4
      %s93 = int_to_ptr.hbm [resolvable:$true] %s92
      %s94 = sshll.u32 [#allocation8], 4
      %s95 = int_to_ptr.vmem [resolvable:$true] %s94
      %100 = dma.hbm_to_vmem [thread:$0]  %s93, 2048, %s95, [#allocation9], 64, 64, 4
    $region57: #{_lambda_.1} parent=1 // pred_fallthru
      _
    // Predicated region
    $region58: #{_lambda_.1} parent=1 // pred_check
      _
    $region59: #{_lambda_.1} parent=1 // pred_check_branch
      %102 = sbr.rel (0) target = $region61
    $region60: #{_lambda_.1} parent=1 // pred_region
      %104 = vsyncadd [#allocation9], 0
      %s105 = sshll.u32 %s14, 4
      %s106 = int_to_ptr.hbm [resolvable:$true] %s105
      %s107 = sshll.u32 [#allocation10], 4
      %s108 = int_to_ptr.vmem [resolvable:$true] %s107
      %113 = dma.hbm_to_vmem [thread:$0]  %s106, 256, %s108, [#allocation9], 128, 128, 8
    $region61: #{_lambda_.1} parent=1 // pred_fallthru
      _
    // Predicated region
    $region62: #{_lambda_.1} parent=1 // pred_check
      _
    $region63: #{_lambda_.1} parent=1 // pred_check_branch
      %115 = sbr.rel (0) target = $region65
    $region64: #{_lambda_.1} parent=1 // pred_region
      %117 = vsyncadd [#allocation12], 0
      %s118 = sshll.u32 %s15, 4
      %s119 = int_to_ptr.hbm [resolvable:$true] %s118
      %s120 = sshll.u32 [#allocation11], 4
      %s121 = int_to_ptr.vmem [resolvable:$true] %s120
      %126 = dma.hbm_to_vmem [thread:$0]  %s119, 6144, %s121, [#allocation12], 64, 64, 4
    $region65: #{_lambda_.1} parent=1 // pred_fallthru
      _
    // Predicated region
    $region66: #{_lambda_.1} parent=1 // pred_check
      _
    $region67: #{_lambda_.1} parent=1 // pred_check_branch
      %128 = sbr.rel (0) target = $region69
    $region68: #{_lambda_.1} parent=1 // pred_region
      %130 = vsyncadd [#allocation12], 0
      %s132 = sshll.u32 %s16, 4
      %s133 = int_to_ptr.hbm [resolvable:$true] %s132
      %s134 = sshll.u32 [#allocation13], 4
      %s135 = int_to_ptr.vmem [resolvable:$true] %s134
      %137 = dma.hbm_to_vmem [thread:$0]  %s133, 16, %s135, [#allocation12]
    $region69: #{_lambda_.1} parent=1 // pred_fallthru
      _
    // Predicated region
    $region70: #{_lambda_.1} parent=1 // pred_check
      _
    $region71: #{_lambda_.1} parent=1 // pred_check_branch
      %139 = sbr.rel (0) target = $region73
    $region72: #{_lambda_.1} parent=1 // pred_region
      %141 = vsyncadd [#allocation15], 0
      %s143 = sshll.u32 %s17, 4
      %s144 = int_to_ptr.hbm [resolvable:$true] %s143
      %s145 = sshll.u32 [#allocation14], 4
      %s146 = int_to_ptr.vmem [resolvable:$true] %s145
      %148 = dma.hbm_to_vmem [thread:$0]  %s144, 16, %s146, [#allocation15]
    $region73: #{_lambda_.1} parent=1 // pred_fallthru
      _
    // Predicated region
    $region74: #{_lambda_.1} parent=1 // pred_check
      _
    $region75: #{_lambda_.1} parent=1 // pred_check_branch
      %150 = sbr.rel (0) target = $region77
    $region76: #{_lambda_.1} parent=1 // pred_region
      %152 = vsyncadd [#allocation15], 0
      %s153 = sshll.u32 %s18, 4
      %s154 = int_to_ptr.hbm [resolvable:$true] %s153
      %s155 = sshll.u32 [#allocation16], 4
      %s156 = int_to_ptr.vmem [resolvable:$true] %s155
      %161 = dma.hbm_to_vmem [thread:$0]  %s154, 1024, %s156, [#allocation15], 64, 64, 4
    $region77: #{_lambda_.1} parent=1 // pred_fallthru
      _
    // Predicated region
    $region78: #{_lambda_.1} parent=1 // pred_check
      _
    $region79: #{_lambda_.1} parent=1 // pred_check_branch
      %163 = sbr.rel (0) target = $region81
    $region80: #{_lambda_.1} parent=1 // pred_region
      %165 = vsyncadd [#allocation18], 0
      %s166 = sshll.u32 %s19, 4
      %s167 = int_to_ptr.hbm [resolvable:$true] %s166
      %s168 = sshll.u32 [#allocation17], 4
      %s169 = int_to_ptr.vmem [resolvable:$true] %s168
      %174 = dma.hbm_to_vmem [thread:$0]  %s167, 1024, %s169, [#allocation18], 64, 64, 4
    $region81: #{_lambda_.1} parent=1 // pred_fallthru
      _
    // Predicated region
    $region82: #{_lambda_.1} parent=1 // pred_check
      _
    $region83: #{_lambda_.1} parent=1 // pred_check_branch
      %176 = sbr.rel (0) target = $region85
    $region84: #{_lambda_.1} parent=1 // pred_region
      %178 = vsyncadd [#allocation18], 0
      %s180 = sshll.u32 %s20, 4
      %s181 = int_to_ptr.hbm [resolvable:$true] %s180
      %s182 = sshll.u32 [#allocation19], 4
      %s183 = int_to_ptr.vmem [resolvable:$true] %s182
      %185 = dma.hbm_to_vmem [thread:$0]  %s181, 16, %s183, [#allocation18]
    $region85: #{_lambda_.1} parent=1 // pred_fallthru
      _
    // Predicated region
    $region86: #{_lambda_.1} parent=1 // pred_check
      _
    $region87: #{_lambda_.1} parent=1 // pred_check_branch
      %187 = sbr.rel (0) target = $region89
    $region88: #{_lambda_.1} parent=1 // pred_region
      %189 = dma.done [#allocation3], 16
    $region89: #{_lambda_.1} parent=1 // pred_fallthru
      _
    // Predicated region
    $region90: #{_lambda_.1} parent=1 // pred_check
      _
    $region91: #{_lambda_.1} parent=1 // pred_check_branch
      %191 = sbr.rel (0) target = $region93
    $region92: #{_lambda_.1} parent=1 // pred_region
      %193 = dma.done [#allocation6], 16
    $region93: #{_lambda_.1} parent=1 // pred_fallthru
      _
    // Predicated region
    $region94: #{_lambda_.1} parent=1 // pred_check
      _
    $region95: #{_lambda_.1} parent=1 // pred_check_branch
      %195 = sbr.rel (0) target = $region97
    $region96: #{_lambda_.1} parent=1 // pred_region
      %197 = dma.done [#allocation6], 1024
    $region97: #{_lambda_.1} parent=1 // pred_fallthru
      _
    // Predicated region
    $region98: #{_lambda_.1} parent=1 // pred_check
      _
    $region99: #{_lambda_.1} parent=1 // pred_check_branch
      %199 = sbr.rel (0) target = $region101
    $region100: #{_lambda_.1} parent=1 // pred_region
      %201 = dma.done [#allocation9], 2048
    $region101: #{_lambda_.1} parent=1 // pred_fallthru
      _
    // Predicated region
    $region102: #{_lambda_.1} parent=1 // pred_check
      _
    $region103: #{_lambda_.1} parent=1 // pred_check_branch
      %203 = sbr.rel (0) target = $region105
    $region104: #{_lambda_.1} parent=1 // pred_region
      %205 = dma.done [#allocation9], 256
    $region105: #{_lambda_.1} parent=1 // pred_fallthru
      _
    // Predicated region
    $region106: #{_lambda_.1} parent=1 // pred_check
      _
    $region107: #{_lambda_.1} parent=1 // pred_check_branch
      %207 = sbr.rel (0) target = $region109
    $region108: #{_lambda_.1} parent=1 // pred_region
      %209 = dma.done [#allocation12], 6144
    $region109: #{_lambda_.1} parent=1 // pred_fallthru
      _
    // Predicated region
    $region110: #{_lambda_.1} parent=1 // pred_check
      _
    $region111: #{_lambda_.1} parent=1 // pred_check_branch
      %211 = sbr.rel (0) target = $region113
    $region112: #{_lambda_.1} parent=1 // pred_region
      %213 = dma.done [#allocation12], 16
    $region113: #{_lambda_.1} parent=1 // pred_fallthru
      _
    // Predicated region
    $region114: #{_lambda_.1} parent=1 // pred_check
      _
    $region115: #{_lambda_.1} parent=1 // pred_check_branch
      %215 = sbr.rel (0) target = $region117
    $region116: #{_lambda_.1} parent=1 // pred_region
      %217 = dma.done [#allocation15], 16
    $region117: #{_lambda_.1} parent=1 // pred_fallthru
      _
    // Predicated region
    $region118: #{_lambda_.1} parent=1 // pred_check
      _
    $region119: #{_lambda_.1} parent=1 // pred_check_branch
      %219 = sbr.rel (0) target = $region121
    $region120: #{_lambda_.1} parent=1 // pred_region
      %221 = dma.done [#allocation15], 1024
    $region121: #{_lambda_.1} parent=1 // pred_fallthru
      _
    // Predicated region
    $region122: #{_lambda_.1} parent=1 // pred_check
      _
    $region123: #{_lambda_.1} parent=1 // pred_check_branch
      %223 = sbr.rel (0) target = $region125
    $region124: #{_lambda_.1} parent=1 // pred_region
      %225 = dma.done [#allocation18], 1024
    $region125: #{_lambda_.1} parent=1 // pred_fallthru
      _
    // Predicated region
    $region126: #{_lambda_.1} parent=1 // pred_check
      _
    $region127: #{_lambda_.1} parent=1 // pred_check_branch
      %227 = sbr.rel (0) target = $region129
    $region128: #{_lambda_.1} parent=1 // pred_region
      %229 = dma.done [#allocation18], 16
    $region129: #{_lambda_.1} parent=1 // pred_fallthru
      _
    %v231 = vld [vmem:[%s2] sm:$0xff]
    %v232 = vld [vmem:[%s2 + $0x8] sm:$0xff]
    %v233 = vld [vmem:[%s3] sm:$0xff]
    %v234 = vld [vmem:[%s3 + $0x8] sm:$0xff]
    %v235 = vld [vmem:[%s3 + $0x10] sm:$0xff]
    %v236 = vld [vmem:[%s3 + $0x18] sm:$0xff]
    %v237 = vld [vmem:[%s3 + $0x20] sm:$0xff]
    %v238 = vld [vmem:[%s3 + $0x28] sm:$0xff]
    %v239 = vld [vmem:[%s3 + $0x30] sm:$0xff]
    %v240 = vld [vmem:[%s3 + $0x38] sm:$0xff]
    %v241 = vld [vmem:[%s3 + $0x40] sm:$0xff]
    %v242 = vld [vmem:[%s3 + $0x48] sm:$0xff]
    %v243 = vld [vmem:[%s3 + $0x50] sm:$0xff]
    %v244 = vld [vmem:[%s3 + $0x58] sm:$0xff]
    %v245 = vld [vmem:[%s3 + $0x60] sm:$0xff]
    %v246 = vld [vmem:[%s3 + $0x68] sm:$0xff]
    %v247 = vld [vmem:[%s3 + $0x70] sm:$0xff]
    %v248 = vld [vmem:[%s3 + $0x78] sm:$0xff]
    %v249 = vld [vmem:[%s3 + $0x80] sm:$0xff]
    %v250 = vld [vmem:[%s3 + $0x88] sm:$0xff]
    %v251 = vld [vmem:[%s3 + $0x90] sm:$0xff]
    %v252 = vld [vmem:[%s3 + $0x98] sm:$0xff]
    %v253 = vld [vmem:[%s3 + $0xa0] sm:$0xff]
    %v254 = vld [vmem:[%s3 + $0xa8] sm:$0xff]
    %v255 = vld [vmem:[%s3 + $0xb0] sm:$0xff]
    %v256 = vld [vmem:[%s3 + $0xb8] sm:$0xff]
    %v257 = vld [vmem:[%s3 + $0xc0] sm:$0xff]
    %v258 = vld [vmem:[%s3 + $0xc8] sm:$0xff]
    %v259 = vld [vmem:[%s3 + $0xd0] sm:$0xff]
    %v260 = vld [vmem:[%s3 + $0xd8] sm:$0xff]
    %v261 = vld [vmem:[%s3 + $0xe0] sm:$0xff]
    %v262 = vld [vmem:[%s3 + $0xe8] sm:$0xff]
    %v263 = vld [vmem:[%s3 + $0xf0] sm:$0xff]
    %v264 = vld [vmem:[%s3 + $0xf8] sm:$0xff]
    %v265 = vld [vmem:[%s0] sm:$0xff]
    %v266 = vld [vmem:[%s0 + $0x8] sm:$0xff]
    %v267 = vld [vmem:[%s0 + $0x10] sm:$0xff]
    %v268 = vld [vmem:[%s0 + $0x18] sm:$0xff]
    %v269 = vpack.c.bf16 %v266, %v265
    %v270 = vpack.c.bf16 %v268, %v267
    %v271 = vld [vmem:[%s4] sm:$0xf]
    %v273 = vperm.slane %v271, 0
    %v274 = vperm.slane %v271, 1
    %v275 = vperm.slane %v271, 2
    %v276 = vperm.slane %v271, 3
    %v283 = vunpack.c.l.b16 %v231
    %v284 = vunpack.c.h.b16 %v231
    %v285 = vunpack.c.l.b16 %v232
    %v286 = vunpack.c.h.b16 %v232
    %v287 = vpack.c.b16 %v283, %v283
    %v288 = vpack.c.b16 %v284, %v284
    %v289 = vpack.c.b16 %v285, %v285
    %v290 = vpack.c.b16 %v286, %v286
    %vm291 = vcmask 64512
    %v293 = vsel %vm291, %v269, 0
    %v296 = vsel %vm291, %v270, 0
    %vm298 = vcmask 1043456
    %v300 = vsel %vm298, %v287, 0
    %v303 = vsel %vm298, %v288, 0
    %v306 = vsel %vm298, %v289, 0
    %v309 = vsel %vm298, %v290, 0
    %311 = vmatpush.bf16.msra.mxu0 0
    %312 = vmatpush.bf16.msra.mxu0 0
    %313 = vmatpush.bf16.msra.mxu0 0
    %314 = vmatpush.bf16.msra.mxu0 0
    %315 = vmatpush.bf16.msra.mxu0 0
    %316 = vmatpush.bf16.msra.mxu0 0
    %317 = vmatpush.bf16.msra.mxu0 0
    %318 = vmatpush.bf16.msra.mxu0 %v300
    %319 = vmatmul.bf16.gmra.mxu0 %v293
    %v320 = vpop.f32.mrf.mxu0
    %v321 = vadd.f32 %v273, %v320
    %v322 = vpop.f32.mrf.mxu0
    %v323 = vadd.f32 %v273, %v322
    %324 = vmatmul.bf16.gmra.mxu0 %v296
    %v325 = vpop.f32.mrf.mxu0
    %v326 = vadd.f32 %v273, %v325
    %v327 = vpop.f32.mrf.mxu0
    %v328 = vadd.f32 %v273, %v327
    %329 = vdwg.mxu0
    %330 = vmatpush.bf16.msra.mxu0 0
    %331 = vmatpush.bf16.msra.mxu0 0
    %332 = vmatpush.bf16.msra.mxu0 0
    %333 = vmatpush.bf16.msra.mxu0 0
    %334 = vmatpush.bf16.msra.mxu0 0
    %335 = vmatpush.bf16.msra.mxu0 0
    %336 = vmatpush.bf16.msra.mxu0 0
    %337 = vmatpush.bf16.msra.mxu0 %v303
    %338 = vmatmul.bf16.gmra.mxu0 %v293
    %v339 = vpop.f32.mrf.mxu0
    %v340 = vadd.f32 %v274, %v339
    %v341 = vpop.f32.mrf.mxu0
    %v342 = vadd.f32 %v274, %v341
    %343 = vmatmul.bf16.gmra.mxu0 %v296
    %v344 = vpop.f32.mrf.mxu0
    %v345 = vadd.f32 %v274, %v344
    %v346 = vpop.f32.mrf.mxu0
    %v347 = vadd.f32 %v274, %v346
    %348 = vdwg.mxu0
    %349 = vmatpush.bf16.msra.mxu0 0
    %350 = vmatpush.bf16.msra.mxu0 0
    %351 = vmatpush.bf16.msra.mxu0 0
    %352 = vmatpush.bf16.msra.mxu0 0
    %353 = vmatpush.bf16.msra.mxu0 0
    %354 = vmatpush.bf16.msra.mxu0 0
    %355 = vmatpush.bf16.msra.mxu0 0
    %356 = vmatpush.bf16.msra.mxu0 %v306
    %357 = vmatmul.bf16.gmra.mxu0 %v293
    %v358 = vpop.f32.mrf.mxu0
    %v359 = vadd.f32 %v275, %v358
    %v360 = vpop.f32.mrf.mxu0
    %v361 = vadd.f32 %v275, %v360
    %362 = vmatmul.bf16.gmra.mxu0 %v296
    %v363 = vpop.f32.mrf.mxu0
    %v364 = vadd.f32 %v275, %v363
    %v365 = vpop.f32.mrf.mxu0
    %v366 = vadd.f32 %v275, %v365
    %367 = vdwg.mxu0
    %368 = vmatpush.bf16.msra.mxu0 0
    %369 = vmatpush.bf16.msra.mxu0 0
    %370 = vmatpush.bf16.msra.mxu0 0
    %371 = vmatpush.bf16.msra.mxu0 0
    %372 = vmatpush.bf16.msra.mxu0 0
    %373 = vmatpush.bf16.msra.mxu0 0
    %374 = vmatpush.bf16.msra.mxu0 0
    %375 = vmatpush.bf16.msra.mxu0 %v309
    %376 = vmatmul.bf16.gmra.mxu0 %v293
    %v377 = vpop.f32.mrf.mxu0
    %v378 = vadd.f32 %v276, %v377
    %v379 = vpop.f32.mrf.mxu0
    %v380 = vadd.f32 %v276, %v379
    %381 = vmatmul.bf16.gmra.mxu0 %v296
    %v382 = vpop.f32.mrf.mxu0
    %v383 = vadd.f32 %v276, %v382
    %v384 = vpop.f32.mrf.mxu0
    %v385 = vadd.f32 %v276, %v384
    %386 = vdwg.mxu0
    %v419 = vunpack.c.l.b16 %v233
    %v420 = vunpack.c.h.b16 %v233
    %v421 = vunpack.c.l.b16 %v234
    %v422 = vunpack.c.h.b16 %v234
    %v423 = vunpack.c.l.b16 %v235
    %v424 = vunpack.c.h.b16 %v235
    %v425 = vunpack.c.l.b16 %v236
    %v426 = vunpack.c.h.b16 %v236
    %v427 = vunpack.c.l.b16 %v237
    %v428 = vunpack.c.h.b16 %v237
    %v429 = vunpack.c.l.b16 %v238
    %v430 = vunpack.c.h.b16 %v238
    %v431 = vunpack.c.l.b16 %v239
    %v432 = vunpack.c.h.b16 %v239
    %v433 = vunpack.c.l.b16 %v240
    %v434 = vunpack.c.h.b16 %v240
    %v435 = vunpack.c.l.b16 %v241
    %v436 = vunpack.c.h.b16 %v241
    %v437 = vunpack.c.l.b16 %v242
    %v438 = vunpack.c.h.b16 %v242
    %v439 = vunpack.c.l.b16 %v243
    %v440 = vunpack.c.h.b16 %v243
    %v441 = vunpack.c.l.b16 %v244
    %v442 = vunpack.c.h.b16 %v244
    %v443 = vunpack.c.l.b16 %v245
    %v444 = vunpack.c.h.b16 %v245
    %v445 = vunpack.c.l.b16 %v246
    %v446 = vunpack.c.h.b16 %v246
    %v447 = vunpack.c.l.b16 %v247
    %v448 = vunpack.c.h.b16 %v247
    %v449 = vunpack.c.l.b16 %v248
    %v450 = vunpack.c.h.b16 %v248
    %v451 = vunpack.c.l.b16 %v249
    %v452 = vunpack.c.h.b16 %v249
    %v453 = vunpack.c.l.b16 %v250
    %v454 = vunpack.c.h.b16 %v250
    %v455 = vunpack.c.l.b16 %v251
    %v456 = vunpack.c.h.b16 %v251
    %v457 = vunpack.c.l.b16 %v252
    %v458 = vunpack.c.h.b16 %v252
    %v459 = vunpack.c.l.b16 %v253
    %v460 = vunpack.c.h.b16 %v253
    %v461 = vunpack.c.l.b16 %v254
    %v462 = vunpack.c.h.b16 %v254
    %v463 = vunpack.c.l.b16 %v255
    %v464 = vunpack.c.h.b16 %v255
    %v465 = vunpack.c.l.b16 %v256
    %v466 = vunpack.c.h.b16 %v256
    %v467 = vunpack.c.l.b16 %v257
    %v468 = vunpack.c.h.b16 %v257
    %v469 = vunpack.c.l.b16 %v258
    %v470 = vunpack.c.h.b16 %v258
    %v471 = vunpack.c.l.b16 %v259
    %v472 = vunpack.c.h.b16 %v259
    %v473 = vunpack.c.l.b16 %v260
    %v474 = vunpack.c.h.b16 %v260
    %v475 = vunpack.c.l.b16 %v261
    %v476 = vunpack.c.h.b16 %v261
    %v477 = vunpack.c.l.b16 %v262
    %v478 = vunpack.c.h.b16 %v262
    %v479 = vunpack.c.l.b16 %v263
    %v480 = vunpack.c.h.b16 %v263
    %v481 = vunpack.c.l.b16 %v264
    %v482 = vunpack.c.h.b16 %v264
    %v483 = vpack.c.b16 %v423, %v419
    %v484 = vpack.c.b16 %v424, %v420
    %v485 = vpack.c.b16 %v425, %v421
    %v486 = vpack.c.b16 %v426, %v422
    %v487 = vpack.c.b16 %v431, %v427
    %v488 = vpack.c.b16 %v432, %v428
    %v489 = vpack.c.b16 %v433, %v429
    %v490 = vpack.c.b16 %v434, %v430
    %v491 = vpack.c.b16 %v439, %v435
    %v492 = vpack.c.b16 %v440, %v436
    %v493 = vpack.c.b16 %v441, %v437
    %v494 = vpack.c.b16 %v442, %v438
    %v495 = vpack.c.b16 %v447, %v443
    %v496 = vpack.c.b16 %v448, %v444
    %v497 = vpack.c.b16 %v449, %v445
    %v498 = vpack.c.b16 %v450, %v446
    %v499 = vpack.c.b16 %v455, %v451
    %v500 = vpack.c.b16 %v456, %v452
    %v501 = vpack.c.b16 %v457, %v453
    %v502 = vpack.c.b16 %v458, %v454
    %v503 = vpack.c.b16 %v463, %v459
    %v504 = vpack.c.b16 %v464, %v460
    %v505 = vpack.c.b16 %v465, %v461
    %v506 = vpack.c.b16 %v466, %v462
    %v507 = vpack.c.b16 %v471, %v467
    %v508 = vpack.c.b16 %v472, %v468
    %v509 = vpack.c.b16 %v473, %v469
    %v510 = vpack.c.b16 %v474, %v470
    %v511 = vpack.c.b16 %v479, %v475
    %v512 = vpack.c.b16 %v480, %v476
    %v513 = vpack.c.b16 %v481, %v477
    %v514 = vpack.c.b16 %v482, %v478
    %547 = vmatpush.bf16.msra.mxu0 %v511
    %548 = vmatpush.bf16.msra.mxu0 %v507
    %549 = vmatpush.bf16.msra.mxu0 %v503
    %550 = vmatpush.bf16.msra.mxu0 %v499
    %551 = vmatpush.bf16.msra.mxu0 %v495
    %552 = vmatpush.bf16.msra.mxu0 %v491
    %553 = vmatpush.bf16.msra.mxu0 %v487
    %554 = vmatpush.bf16.msra.mxu0 %v483
    %555 = vmatmul.bf16.gmra.mxu0 0
    %v556 = vpop.f32.mrf.mxu0
    %v557 = vadd.f32 0.0, %v556
    %v558 = vpop.f32.mrf.mxu0
    %559 = vdwg.mxu0
    %560 = vmatpush.bf16.msra.mxu0 %v512
    %561 = vmatpush.bf16.msra.mxu0 %v508
    %562 = vmatpush.bf16.msra.mxu0 %v504
    %563 = vmatpush.bf16.msra.mxu0 %v500
    %564 = vmatpush.bf16.msra.mxu0 %v496
    %565 = vmatpush.bf16.msra.mxu0 %v492
    %566 = vmatpush.bf16.msra.mxu0 %v488
    %567 = vmatpush.bf16.msra.mxu0 %v484
    %568 = vmatmul.bf16.gmra.mxu0 0
    %v569 = vpop.f32.mrf.mxu0
    %v570 = vadd.f32 0.0, %v569
    %v571 = vpop.f32.mrf.mxu0
    %572 = vdwg.mxu0
    %573 = vmatpush.bf16.msra.mxu0 %v513
    %574 = vmatpush.bf16.msra.mxu0 %v509
    %575 = vmatpush.bf16.msra.mxu0 %v505
    %576 = vmatpush.bf16.msra.mxu0 %v501
    %577 = vmatpush.bf16.msra.mxu0 %v497
    %578 = vmatpush.bf16.msra.mxu0 %v493
    %579 = vmatpush.bf16.msra.mxu0 %v489
    %580 = vmatpush.bf16.msra.mxu0 %v485
    %581 = vmatmul.bf16.gmra.mxu0 0
    %v582 = vpop.f32.mrf.mxu0
    %v583 = vadd.f32 0.0, %v582
    %v584 = vpop.f32.mrf.mxu0
    %585 = vdwg.mxu0
    %586 = vmatpush.bf16.msra.mxu0 %v514
    %587 = vmatpush.bf16.msra.mxu0 %v510
    %588 = vmatpush.bf16.msra.mxu0 %v506
    %589 = vmatpush.bf16.msra.mxu0 %v502
    %590 = vmatpush.bf16.msra.mxu0 %v498
    %591 = vmatpush.bf16.msra.mxu0 %v494
    %592 = vmatpush.bf16.msra.mxu0 %v490
    %593 = vmatpush.bf16.msra.mxu0 %v486
    %594 = vmatmul.bf16.gmra.mxu0 0
    %v595 = vpop.f32.mrf.mxu0
    %v596 = vadd.f32 0.0, %v595
    %v597 = vpop.f32.mrf.mxu0
    %598 = vdwg.mxu0
    %v599 = vadd.f32 %v321, %v557
    %v600 = vadd.f32 %v340, %v570
    %v601 = vadd.f32 %v359, %v583
    %v602 = vadd.f32 %v378, %v596
    %v603 = vxor.u32 %v599, 2147483648
    %v604 = vxor.u32 %v600, 2147483648
    %v605 = vxor.u32 %v601, 2147483648
    %v606 = vmul.f32 %v603, 1.442695
    %v607 = vpow.pop %v606
    %v608 = vmul.f32 %v604, 1.442695
    %v609 = vpow.pop %v608
    %v610 = vmul.f32 %v605, 1.442695
    %v611 = vpow.pop %v610
    %v612 = vadd.f32 %v607, 1.0
    %v613 = vadd.f32 %v609, 1.0
    %v614 = vadd.f32 %v611, 1.0
    %v615 = vrcp.pop %v612
    %v616 = vmul.f32 %v612, %v615
    %v617 = vsub.f32 1.0, %v616
    %v618 = vmul.f32 %v615, %v617
    %v619 = vadd.f32 %v615, %v618
    %vm620 = vweird.f32 %v612
    %vm621 = vweird.f32 %v615
    %vm622 = vmor %vm620, %vm621
    %v623 = vsel %vm622, %v615, %v619
    %v624 = vand.u32 2147483647, %v612
    %vm625 = vcmp.eq.f32.partialorder %v624, 8.507059e+37
    %v626 = vand.u32 %v612, 2147483648
    %v627 = vor.u32 1.1754944e-38, %v626
    %v628 = vsel %vm625, %v627, %v623
    %v629 = vmul.f32 1.0, %v628
    %v630 = vrcp.pop %v613
    %v631 = vmul.f32 %v613, %v630
    %v632 = vsub.f32 1.0, %v631
    %v633 = vmul.f32 %v630, %v632
    %v634 = vadd.f32 %v630, %v633
    %vm635 = vweird.f32 %v613
    %vm636 = vweird.f32 %v630
    %vm637 = vmor %vm635, %vm636
    %v638 = vsel %vm637, %v630, %v634
    %v639 = vand.u32 2147483647, %v613
    %vm640 = vcmp.eq.f32.partialorder %v639, 8.507059e+37
    %v641 = vand.u32 %v613, 2147483648
    %v642 = vor.u32 1.1754944e-38, %v641
    %v643 = vsel %vm640, %v642, %v638
    %v644 = vmul.f32 1.0, %v643
    %v645 = vrcp.pop %v614
    %v646 = vmul.f32 %v614, %v645
    %v647 = vsub.f32 1.0, %v646
    %v648 = vmul.f32 %v645, %v647
    %v649 = vadd.f32 %v645, %v648
    %vm650 = vweird.f32 %v614
    %vm651 = vweird.f32 %v645
    %vm652 = vmor %vm650, %vm651
    %v653 = vsel %vm652, %v645, %v649
    %v654 = vand.u32 2147483647, %v614
    %vm655 = vcmp.eq.f32.partialorder %v654, 8.507059e+37
    %v656 = vand.u32 %v614, 2147483648
    %v657 = vor.u32 1.1754944e-38, %v656
    %v658 = vsel %vm655, %v657, %v653
    %v659 = vmul.f32 1.0, %v658
    %v660 = vtanh.pop %v602
    %v661 = vmul.f32 %v644, 0.0
    %v662 = vmul.f32 %v629, %v660
    %v663 = vadd.f32 %v661, %v662
    %v664 = vtanh.pop %v663
    %v665 = vmul.f32 %v659, %v664
    %v666 = vpack.c.bf16 %v665, %v665
    %667 = vmatpush.bf16.msra.mxu0 %v511
    %668 = vmatpush.bf16.msra.mxu0 %v507
    %669 = vmatpush.bf16.msra.mxu0 %v503
    %670 = vmatpush.bf16.msra.mxu0 %v499
    %671 = vmatpush.bf16.msra.mxu0 %v495
    %672 = vmatpush.bf16.msra.mxu0 %v491
    %673 = vmatpush.bf16.msra.mxu0 %v487
    %674 = vmatpush.bf16.msra.mxu0 %v483
    %675 = vmatmul.bf16.gmra.mxu0 %v666
    %v676 = vpop.f32.mrf.mxu0
    %v677 = vadd.f32 0.0, %v676
    %v678 = vpop.f32.mrf.mxu0
    %679 = vdwg.mxu0
    %680 = vmatpush.bf16.msra.mxu0 %v512
    %681 = vmatpush.bf16.msra.mxu0 %v508
    %682 = vmatpush.bf16.msra.mxu0 %v504
    %683 = vmatpush.bf16.msra.mxu0 %v500
    %684 = vmatpush.bf16.msra.mxu0 %v496
    %685 = vmatpush.bf16.msra.mxu0 %v492
    %686 = vmatpush.bf16.msra.mxu0 %v488
    %687 = vmatpush.bf16.msra.mxu0 %v484
    %688 = vmatmul.bf16.gmra.mxu0 %v666
    %v689 = vpop.f32.mrf.mxu0
    %v690 = vadd.f32 0.0, %v689
    %v691 = vpop.f32.mrf.mxu0
    %692 = vdwg.mxu0
    %693 = vmatpush.bf16.msra.mxu0 %v513
    %694 = vmatpush.bf16.msra.mxu0 %v509
    %695 = vmatpush.bf16.msra.mxu0 %v505
    %696 = vmatpush.bf16.msra.mxu0 %v501
    %697 = vmatpush.bf16.msra.mxu0 %v497
    %698 = vmatpush.bf16.msra.mxu0 %v493
    %699 = vmatpush.bf16.msra.mxu0 %v489
    %700 = vmatpush.bf16.msra.mxu0 %v485
    %701 = vmatmul.bf16.gmra.mxu0 %v666
    %v702 = vpop.f32.mrf.mxu0
    %v703 = vadd.f32 0.0, %v702
    %v704 = vpop.f32.mrf.mxu0
    %705 = vdwg.mxu0
    %706 = vmatpush.bf16.msra.mxu0 %v514
    %707 = vmatpush.bf16.msra.mxu0 %v510
    %708 = vmatpush.bf16.msra.mxu0 %v506
    %709 = vmatpush.bf16.msra.mxu0 %v502
    %710 = vmatpush.bf16.msra.mxu0 %v498
    %711 = vmatpush.bf16.msra.mxu0 %v494
    %712 = vmatpush.bf16.msra.mxu0 %v490
    %713 = vmatpush.bf16.msra.mxu0 %v486
    %714 = vmatmul.bf16.gmra.mxu0 %v666
    %v715 = vpop.f32.mrf.mxu0
    %v716 = vadd.f32 0.0, %v715
    %v717 = vpop.f32.mrf.mxu0
    %718 = vdwg.mxu0
    %v723 = vrot.slane %v677, 6
    %v724 = vrot.slane %v690, 6
    %v725 = vrot.slane %v703, 6
    %v726 = vrot.slane %v716, 6
    %v731 = vadd.f32 %v321, %v723
    %v732 = vadd.f32 %v340, %v724
    %v733 = vadd.f32 %v359, %v725
    %v734 = vadd.f32 %v378, %v726
    %v735 = vxor.u32 %v731, 2147483648
    %v736 = vxor.u32 %v732, 2147483648
    %v737 = vxor.u32 %v733, 2147483648
    %v738 = vmul.f32 %v735, 1.442695
    %v739 = vpow.pop %v738
    %v740 = vmul.f32 %v736, 1.442695
    %v741 = vpow.pop %v740
    %v742 = vmul.f32 %v737, 1.442695
    %v743 = vpow.pop %v742
    %v744 = vadd.f32 %v739, 1.0
    %v745 = vadd.f32 %v741, 1.0
    %v746 = vadd.f32 %v743, 1.0
    %v747 = vrcp.pop %v744
    %v748 = vmul.f32 %v744, %v747
    %v749 = vsub.f32 1.0, %v748
    %v750 = vmul.f32 %v747, %v749
    %v751 = vadd.f32 %v747, %v750
    %vm752 = vweird.f32 %v744
    %vm753 = vweird.f32 %v747
    %vm754 = vmor %vm752, %vm753
    %v755 = vsel %vm754, %v747, %v751
    %v756 = vand.u32 2147483647, %v744
    %vm757 = vcmp.eq.f32.partialorder %v756, 8.507059e+37
    %v758 = vand.u32 %v744, 2147483648
    %v759 = vor.u32 1.1754944e-38, %v758
    %v760 = vsel %vm757, %v759, %v755
    %v761 = vmul.f32 1.0, %v760
    %v762 = vrcp.pop %v745
    %v763 = vmul.f32 %v745, %v762
    %v764 = vsub.f32 1.0, %v763
    %v765 = vmul.f32 %v762, %v764
    %v766 = vadd.f32 %v762, %v765
    %vm767 = vweird.f32 %v745
    %vm768 = vweird.f32 %v762
    %vm769 = vmor %vm767, %vm768
    %v770 = vsel %vm769, %v762, %v766
    %v771 = vand.u32 2147483647, %v745
    %vm772 = vcmp.eq.f32.partialorder %v771, 8.507059e+37
    %v773 = vand.u32 %v745, 2147483648
    %v774 = vor.u32 1.1754944e-38, %v773
    %v775 = vsel %vm772, %v774, %v770
    %v776 = vmul.f32 1.0, %v775
    %v777 = vrcp.pop %v746
    %v778 = vmul.f32 %v746, %v777
    %v779 = vsub.f32 1.0, %v778
    %v780 = vmul.f32 %v777, %v779
    %v781 = vadd.f32 %v777, %v780
    %vm782 = vweird.f32 %v746
    %vm783 = vweird.f32 %v777
    %vm784 = vmor %vm782, %vm783
    %v785 = vsel %vm784, %v777, %v781
    %v786 = vand.u32 2147483647, %v746
    %vm787 = vcmp.eq.f32.partialorder %v786, 8.507059e+37
    %v788 = vand.u32 %v746, 2147483648
    %v789 = vor.u32 1.1754944e-38, %v788
    %v790 = vsel %vm787, %v789, %v785
    %v791 = vmul.f32 1.0, %v790
    %v792 = vtanh.pop %v734
    %v794 = vrot.slane %v663, 6
    %v796 = vmul.f32 %v776, %v794
    %v797 = vmul.f32 %v761, %v792
    %v798 = vadd.f32 %v796, %v797
    %v799 = vtanh.pop %v798
    %v800 = vmul.f32 %v791, %v799
    %v801 = vpack.c.bf16 %v800, %v800
    %v803 = vrot.slane %v801, 1
    %805 = vmatpush.bf16.msra.mxu0 %v511
    %806 = vmatpush.bf16.msra.mxu0 %v507
    %807 = vmatpush.bf16.msra.mxu0 %v503
    %808 = vmatpush.bf16.msra.mxu0 %v499
    %809 = vmatpush.bf16.msra.mxu0 %v495
    %810 = vmatpush.bf16.msra.mxu0 %v491
    %811 = vmatpush.bf16.msra.mxu0 %v487
    %812 = vmatpush.bf16.msra.mxu0 %v483
    %813 = vmatmul.bf16.gmra.mxu0 %v803
    %v814 = vpop.f32.mrf.mxu0
    %v815 = vadd.f32 0.0, %v814
    %v816 = vpop.f32.mrf.mxu0
    %817 = vdwg.mxu0
    %818 = vmatpush.bf16.msra.mxu0 %v512
    %819 = vmatpush.bf16.msra.mxu0 %v508
    %820 = vmatpush.bf16.msra.mxu0 %v504
    %821 = vmatpush.bf16.msra.mxu0 %v500
    %822 = vmatpush.bf16.msra.mxu0 %v496
    %823 = vmatpush.bf16.msra.mxu0 %v492
    %824 = vmatpush.bf16.msra.mxu0 %v488
    %825 = vmatpush.bf16.msra.mxu0 %v484
    %826 = vmatmul.bf16.gmra.mxu0 %v803
    %v827 = vpop.f32.mrf.mxu0
    %v828 = vadd.f32 0.0, %v827
    %v829 = vpop.f32.mrf.mxu0
    %830 = vdwg.mxu0
    %831 = vmatpush.bf16.msra.mxu0 %v513
    %832 = vmatpush.bf16.msra.mxu0 %v509
    %833 = vmatpush.bf16.msra.mxu0 %v505
    %834 = vmatpush.bf16.msra.mxu0 %v501
    %835 = vmatpush.bf16.msra.mxu0 %v497
    %836 = vmatpush.bf16.msra.mxu0 %v493
    %837 = vmatpush.bf16.msra.mxu0 %v489
    %838 = vmatpush.bf16.msra.mxu0 %v485
    %839 = vmatmul.bf16.gmra.mxu0 %v803
    %v840 = vpop.f32.mrf.mxu0
    %v841 = vadd.f32 0.0, %v840
    %v842 = vpop.f32.mrf.mxu0
    %843 = vdwg.mxu0
    %844 = vmatpush.bf16.msra.mxu0 %v514
    %845 = vmatpush.bf16.msra.mxu0 %v510
    %846 = vmatpush.bf16.msra.mxu0 %v506
    %847 = vmatpush.bf16.msra.mxu0 %v502
    %848 = vmatpush.bf16.msra.mxu0 %v498
    %849 = vmatpush.bf16.msra.mxu0 %v494
    %850 = vmatpush.bf16.msra.mxu0 %v490
    %851 = vmatpush.bf16.msra.mxu0 %v486
    %852 = vmatmul.bf16.gmra.mxu0 %v803
    %v853 = vpop.f32.mrf.mxu0
    %v854 = vadd.f32 0.0, %v853
    %v855 = vpop.f32.mrf.mxu0
    %856 = vdwg.mxu0
    %v861 = vrot.slane %v815, 4
    %v862 = vrot.slane %v828, 4
    %v863 = vrot.slane %v841, 4
    %v864 = vrot.slane %v854, 4
    %v869 = vadd.f32 %v321, %v861
    %v870 = vadd.f32 %v340, %v862
    %v871 = vadd.f32 %v359, %v863
    %v872 = vadd.f32 %v378, %v864
    %v873 = vxor.u32 %v869, 2147483648
    %v874 = vxor.u32 %v870, 2147483648
    %v875 = vxor.u32 %v871, 2147483648
    %v876 = vmul.f32 %v873, 1.442695
    %v877 = vpow.pop %v876
    %v878 = vmul.f32 %v874, 1.442695
    %v879 = vpow.pop %v878
    %v880 = vmul.f32 %v875, 1.442695
    %v881 = vpow.pop %v880
    %v882 = vadd.f32 %v877, 1.0
    %v883 = vadd.f32 %v879, 1.0
    %v884 = vadd.f32 %v881, 1.0
    %v885 = vrcp.pop %v882
    %v886 = vmul.f32 %v882, %v885
    %v887 = vsub.f32 1.0, %v886
    %v888 = vmul.f32 %v885, %v887
    %v889 = vadd.f32 %v885, %v888
    %vm890 = vweird.f32 %v882
    %vm891 = vweird.f32 %v885
    %vm892 = vmor %vm890, %vm891
    %v893 = vsel %vm892, %v885, %v889
    %v894 = vand.u32 2147483647, %v882
    %vm895 = vcmp.eq.f32.partialorder %v894, 8.507059e+37
    %v896 = vand.u32 %v882, 2147483648
    %v897 = vor.u32 1.1754944e-38, %v896
    %v898 = vsel %vm895, %v897, %v893
    %v899 = vmul.f32 1.0, %v898
    %v900 = vrcp.pop %v883
    %v901 = vmul.f32 %v883, %v900
    %v902 = vsub.f32 1.0, %v901
    %v903 = vmul.f32 %v900, %v902
    %v904 = vadd.f32 %v900, %v903
    %vm905 = vweird.f32 %v883
    %vm906 = vweird.f32 %v900
    %vm907 = vmor %vm905, %vm906
    %v908 = vsel %vm907, %v900, %v904
    %v909 = vand.u32 2147483647, %v883
    %vm910 = vcmp.eq.f32.partialorder %v909, 8.507059e+37
    %v911 = vand.u32 %v883, 2147483648
    %v912 = vor.u32 1.1754944e-38, %v911
    %v913 = vsel %vm910, %v912, %v908
    %v914 = vmul.f32 1.0, %v913
    %v915 = vrcp.pop %v884
    %v916 = vmul.f32 %v884, %v915
    %v917 = vsub.f32 1.0, %v916
    %v918 = vmul.f32 %v915, %v917
    %v919 = vadd.f32 %v915, %v918
    %vm920 = vweird.f32 %v884
    %vm921 = vweird.f32 %v915
    %vm922 = vmor %vm920, %vm921
    %v923 = vsel %vm922, %v915, %v919
    %v924 = vand.u32 2147483647, %v884
    %vm925 = vcmp.eq.f32.partialorder %v924, 8.507059e+37
    %v926 = vand.u32 %v884, 2147483648
    %v927 = vor.u32 1.1754944e-38, %v926
    %v928 = vsel %vm925, %v927, %v923
    %v929 = vmul.f32 1.0, %v928
    %v930 = vtanh.pop %v872
    %v932 = vrot.slane %v798, 6
    %v934 = vmul.f32 %v914, %v932
    %v935 = vmul.f32 %v899, %v930
    %v936 = vadd.f32 %v934, %v935
    %v937 = vtanh.pop %v936
    %v938 = vmul.f32 %v929, %v937
    %v939 = vpack.c.bf16 %v938, %v938
    %v941 = vrot.slane %v939, 2
    %943 = vmatpush.bf16.msra.mxu0 %v511
    %944 = vmatpush.bf16.msra.mxu0 %v507
    %945 = vmatpush.bf16.msra.mxu0 %v503
    %946 = vmatpush.bf16.msra.mxu0 %v499
    %947 = vmatpush.bf16.msra.mxu0 %v495
    %948 = vmatpush.bf16.msra.mxu0 %v491
    %949 = vmatpush.bf16.msra.mxu0 %v487
    %950 = vmatpush.bf16.msra.mxu0 %v483
    %951 = vmatmul.bf16.gmra.mxu0 %v941
    %v952 = vpop.f32.mrf.mxu0
    %v953 = vadd.f32 0.0, %v952
    %v954 = vpop.f32.mrf.mxu0
    %955 = vdwg.mxu0
    %956 = vmatpush.bf16.msra.mxu0 %v512
    %957 = vmatpush.bf16.msra.mxu0 %v508
    %958 = vmatpush.bf16.msra.mxu0 %v504
    %959 = vmatpush.bf16.msra.mxu0 %v500
    %960 = vmatpush.bf16.msra.mxu0 %v496
    %961 = vmatpush.bf16.msra.mxu0 %v492
    %962 = vmatpush.bf16.msra.mxu0 %v488
    %963 = vmatpush.bf16.msra.mxu0 %v484
    %964 = vmatmul.bf16.gmra.mxu0 %v941
    %v965 = vpop.f32.mrf.mxu0
    %v966 = vadd.f32 0.0, %v965
    %v967 = vpop.f32.mrf.mxu0
    %968 = vdwg.mxu0
    %969 = vmatpush.bf16.msra.mxu0 %v513
    %970 = vmatpush.bf16.msra.mxu0 %v509
    %971 = vmatpush.bf16.msra.mxu0 %v505
    %972 = vmatpush.bf16.msra.mxu0 %v501
    %973 = vmatpush.bf16.msra.mxu0 %v497
    %974 = vmatpush.bf16.msra.mxu0 %v493
    %975 = vmatpush.bf16.msra.mxu0 %v489
    %976 = vmatpush.bf16.msra.mxu0 %v485
    %977 = vmatmul.bf16.gmra.mxu0 %v941
    %v978 = vpop.f32.mrf.mxu0
    %v979 = vadd.f32 0.0, %v978
    %v980 = vpop.f32.mrf.mxu0
    %981 = vdwg.mxu0
    %982 = vmatpush.bf16.msra.mxu0 %v514
    %983 = vmatpush.bf16.msra.mxu0 %v510
    %984 = vmatpush.bf16.msra.mxu0 %v506
    %985 = vmatpush.bf16.msra.mxu0 %v502
    %986 = vmatpush.bf16.msra.mxu0 %v498
    %987 = vmatpush.bf16.msra.mxu0 %v494
    %988 = vmatpush.bf16.msra.mxu0 %v490
    %989 = vmatpush.bf16.msra.mxu0 %v486
    %990 = vmatmul.bf16.gmra.mxu0 %v941
    %v991 = vpop.f32.mrf.mxu0
    %v992 = vadd.f32 0.0, %v991
    %v993 = vpop.f32.mrf.mxu0
    %994 = vdwg.mxu0
    %v999 = vrot.slane %v953, 2
    %v1000 = vrot.slane %v966, 2
    %v1001 = vrot.slane %v979, 2
    %v1002 = vrot.slane %v992, 2
    %v1007 = vadd.f32 %v321, %v999
    %v1008 = vadd.f32 %v340, %v1000
    %v1009 = vadd.f32 %v359, %v1001
    %v1010 = vadd.f32 %v378, %v1002
    %v1011 = vxor.u32 %v1007, 2147483648
    %v1012 = vxor.u32 %v1008, 2147483648
    %v1013 = vxor.u32 %v1009, 2147483648
    %v1014 = vmul.f32 %v1011, 1.442695
    %v1015 = vpow.pop %v1014
    %v1016 = vmul.f32 %v1012, 1.442695
    %v1017 = vpow.pop %v1016
    %v1018 = vmul.f32 %v1013, 1.442695
    %v1019 = vpow.pop %v1018
    %v1020 = vadd.f32 %v1015, 1.0
    %v1021 = vadd.f32 %v1017, 1.0
    %v1022 = vadd.f32 %v1019, 1.0
    %v1023 = vrcp.pop %v1020
    %v1024 = vmul.f32 %v1020, %v1023
    %v1025 = vsub.f32 1.0, %v1024
    %v1026 = vmul.f32 %v1023, %v1025
    %v1027 = vadd.f32 %v1023, %v1026
    %vm1028 = vweird.f32 %v1020
    %vm1029 = vweird.f32 %v1023
    %vm1030 = vmor %vm1028, %vm1029
    %v1031 = vsel %vm1030, %v1023, %v1027
    %v1032 = vand.u32 2147483647, %v1020
    %vm1033 = vcmp.eq.f32.partialorder %v1032, 8.507059e+37
    %v1034 = vand.u32 %v1020, 2147483648
    %v1035 = vor.u32 1.1754944e-38, %v1034
    %v1036 = vsel %vm1033, %v1035, %v1031
    %v1037 = vmul.f32 1.0, %v1036
    %v1038 = vrcp.pop %v1021
    %v1039 = vmul.f32 %v1021, %v1038
    %v1040 = vsub.f32 1.0, %v1039
    %v1041 = vmul.f32 %v1038, %v1040
    %v1042 = vadd.f32 %v1038, %v1041
    %vm1043 = vweird.f32 %v1021
    %vm1044 = vweird.f32 %v1038
    %vm1045 = vmor %vm1043, %vm1044
    %v1046 = vsel %vm1045, %v1038, %v1042
    %v1047 = vand.u32 2147483647, %v1021
    %vm1048 = vcmp.eq.f32.partialorder %v1047, 8.507059e+37
    %v1049 = vand.u32 %v1021, 2147483648
    %v1050 = vor.u32 1.1754944e-38, %v1049
    %v1051 = vsel %vm1048, %v1050, %v1046
    %v1052 = vmul.f32 1.0, %v1051
    %v1053 = vrcp.pop %v1022
    %v1054 = vmul.f32 %v1022, %v1053
    %v1055 = vsub.f32 1.0, %v1054
    %v1056 = vmul.f32 %v1053, %v1055
    %v1057 = vadd.f32 %v1053, %v1056
    %vm1058 = vweird.f32 %v1022
    %vm1059 = vweird.f32 %v1053
    %vm1060 = vmor %vm1058, %vm1059
    %v1061 = vsel %vm1060, %v1053, %v1057
    %v1062 = vand.u32 2147483647, %v1022
    %vm1063 = vcmp.eq.f32.partialorder %v1062, 8.507059e+37
    %v1064 = vand.u32 %v1022, 2147483648
    %v1065 = vor.u32 1.1754944e-38, %v1064
    %v1066 = vsel %vm1063, %v1065, %v1061
    %v1067 = vmul.f32 1.0, %v1066
    %v1068 = vtanh.pop %v1010
    %v1070 = vrot.slane %v936, 6
    %v1072 = vmul.f32 %v1052, %v1070
    %v1073 = vmul.f32 %v1037, %v1068
    %v1074 = vadd.f32 %v1072, %v1073
    %v1075 = vtanh.pop %v1074
    %v1076 = vmul.f32 %v1067, %v1075
    %v1077 = vpack.c.bf16 %v1076, %v1076
    %v1079 = vrot.slane %v1077, 3
    %1081 = vmatpush.bf16.msra.mxu0 %v511
    %1082 = vmatpush.bf16.msra.mxu0 %v507
    %1083 = vmatpush.bf16.msra.mxu0 %v503
    %1084 = vmatpush.bf16.msra.mxu0 %v499
    %1085 = vmatpush.bf16.msra.mxu0 %v495
    %1086 = vmatpush.bf16.msra.mxu0 %v491
    %1087 = vmatpush.bf16.msra.mxu0 %v487
    %1088 = vmatpush.bf16.msra.mxu0 %v483
    %1089 = vmatmul.bf16.gmra.mxu0 %v1079
    %v1090 = vpop.f32.mrf.mxu0
    %v1091 = vadd.f32 0.0, %v1090
    %v1092 = vpop.f32.mrf.mxu0
    %1093 = vdwg.mxu0
    %1094 = vmatpush.bf16.msra.mxu0 %v512
    %1095 = vmatpush.bf16.msra.mxu0 %v508
    %1096 = vmatpush.bf16.msra.mxu0 %v504
    %1097 = vmatpush.bf16.msra.mxu0 %v500
    %1098 = vmatpush.bf16.msra.mxu0 %v496
    %1099 = vmatpush.bf16.msra.mxu0 %v492
    %1100 = vmatpush.bf16.msra.mxu0 %v488
    %1101 = vmatpush.bf16.msra.mxu0 %v484
    %1102 = vmatmul.bf16.gmra.mxu0 %v1079
    %v1103 = vpop.f32.mrf.mxu0
    %v1104 = vadd.f32 0.0, %v1103
    %v1105 = vpop.f32.mrf.mxu0
    %1106 = vdwg.mxu0
    %1107 = vmatpush.bf16.msra.mxu0 %v513
    %1108 = vmatpush.bf16.msra.mxu0 %v509
    %1109 = vmatpush.bf16.msra.mxu0 %v505
    %1110 = vmatpush.bf16.msra.mxu0 %v501
    %1111 = vmatpush.bf16.msra.mxu0 %v497
    %1112 = vmatpush.bf16.msra.mxu0 %v493
    %1113 = vmatpush.bf16.msra.mxu0 %v489
    %1114 = vmatpush.bf16.msra.mxu0 %v485
    %1115 = vmatmul.bf16.gmra.mxu0 %v1079
    %v1116 = vpop.f32.mrf.mxu0
    %v1117 = vadd.f32 0.0, %v1116
    %v1118 = vpop.f32.mrf.mxu0
    %1119 = vdwg.mxu0
    %1120 = vmatpush.bf16.msra.mxu0 %v514
    %1121 = vmatpush.bf16.msra.mxu0 %v510
    %1122 = vmatpush.bf16.msra.mxu0 %v506
    %1123 = vmatpush.bf16.msra.mxu0 %v502
    %1124 = vmatpush.bf16.msra.mxu0 %v498
    %1125 = vmatpush.bf16.msra.mxu0 %v494
    %1126 = vmatpush.bf16.msra.mxu0 %v490
    %1127 = vmatpush.bf16.msra.mxu0 %v486
    %1128 = vmatmul.bf16.gmra.mxu0 %v1079
    %v1129 = vpop.f32.mrf.mxu0
    %v1130 = vadd.f32 0.0, %v1129
    %v1131 = vpop.f32.mrf.mxu0
    %1132 = vdwg.mxu0
    %v1133 = vadd.f32 %v323, %v1091
    %v1134 = vadd.f32 %v342, %v1104
    %v1135 = vadd.f32 %v361, %v1117
    %v1136 = vadd.f32 %v380, %v1130
    %v1137 = vxor.u32 %v1133, 2147483648
    %v1138 = vxor.u32 %v1134, 2147483648
    %v1139 = vxor.u32 %v1135, 2147483648
    %v1140 = vmul.f32 %v1137, 1.442695
    %v1141 = vpow.pop %v1140
    %v1142 = vmul.f32 %v1138, 1.442695
    %v1143 = vpow.pop %v1142
    %v1144 = vmul.f32 %v1139, 1.442695
    %v1145 = vpow.pop %v1144
    %v1146 = vadd.f32 %v1141, 1.0
    %v1147 = vadd.f32 %v1143, 1.0
    %v1148 = vadd.f32 %v1145, 1.0
    %v1149 = vrcp.pop %v1146
    %v1150 = vmul.f32 %v1146, %v1149
    %v1151 = vsub.f32 1.0, %v1150
    %v1152 = vmul.f32 %v1149, %v1151
    %v1153 = vadd.f32 %v1149, %v1152
    %vm1154 = vweird.f32 %v1146
    %vm1155 = vweird.f32 %v1149
    %vm1156 = vmor %vm1154, %vm1155
    %v1157 = vsel %vm1156, %v1149, %v1153
    %v1158 = vand.u32 2147483647, %v1146
    %vm1159 = vcmp.eq.f32.partialorder %v1158, 8.507059e+37
    %v1160 = vand.u32 %v1146, 2147483648
    %v1161 = vor.u32 1.1754944e-38, %v1160
    %v1162 = vsel %vm1159, %v1161, %v1157
    %v1163 = vmul.f32 1.0, %v1162
    %v1164 = vrcp.pop %v1147
    %v1165 = vmul.f32 %v1147, %v1164
    %v1166 = vsub.f32 1.0, %v1165
    %v1167 = vmul.f32 %v1164, %v1166
    %v1168 = vadd.f32 %v1164, %v1167
    %vm1169 = vweird.f32 %v1147
    %vm1170 = vweird.f32 %v1164
    %vm1171 = vmor %vm1169, %vm1170
    %v1172 = vsel %vm1171, %v1164, %v1168
    %v1173 = vand.u32 2147483647, %v1147
    %vm1174 = vcmp.eq.f32.partialorder %v1173, 8.507059e+37
    %v1175 = vand.u32 %v1147, 2147483648
    %v1176 = vor.u32 1.1754944e-38, %v1175
    %v1177 = vsel %vm1174, %v1176, %v1172
    %v1178 = vmul.f32 1.0, %v1177
    %v1179 = vrcp.pop %v1148
    %v1180 = vmul.f32 %v1148, %v1179
    %v1181 = vsub.f32 1.0, %v1180
    %v1182 = vmul.f32 %v1179, %v1181
    %v1183 = vadd.f32 %v1179, %v1182
    %vm1184 = vweird.f32 %v1148
    %vm1185 = vweird.f32 %v1179
    %vm1186 = vmor %vm1184, %vm1185
    %v1187 = vsel %vm1186, %v1179, %v1183
    %v1188 = vand.u32 2147483647, %v1148
    %vm1189 = vcmp.eq.f32.partialorder %v1188, 8.507059e+37
    %v1190 = vand.u32 %v1148, 2147483648
    %v1191 = vor.u32 1.1754944e-38, %v1190
    %v1192 = vsel %vm1189, %v1191, %v1187
    %v1193 = vmul.f32 1.0, %v1192
    %v1194 = vtanh.pop %v1136
    %v1196 = vrot.slane %v1074, 6
    %v1198 = vmul.f32 %v1178, %v1196
    %v1199 = vmul.f32 %v1163, %v1194
    %v1200 = vadd.f32 %v1198, %v1199
    %v1201 = vtanh.pop %v1200
    %v1202 = vmul.f32 %v1193, %v1201
    %v1203 = vpack.c.bf16 %v1202, %v1202
    %1204 = vmatpush.bf16.msra.mxu0 %v511
    %1205 = vmatpush.bf16.msra.mxu0 %v507
    %1206 = vmatpush.bf16.msra.mxu0 %v503
    %1207 = vmatpush.bf16.msra.mxu0 %v499
    %1208 = vmatpush.bf16.msra.mxu0 %v495
    %1209 = vmatpush.bf16.msra.mxu0 %v491
    %1210 = vmatpush.bf16.msra.mxu0 %v487
    %1211 = vmatpush.bf16.msra.mxu0 %v483
    %1212 = vmatmul.bf16.gmra.mxu0 %v1203
    %v1213 = vpop.f32.mrf.mxu0
    %v1214 = vadd.f32 0.0, %v1213
    %v1215 = vpop.f32.mrf.mxu0
    %1216 = vdwg.mxu0
    %1217 = vmatpush.bf16.msra.mxu0 %v512
    %1218 = vmatpush.bf16.msra.mxu0 %v508
    %1219 = vmatpush.bf16.msra.mxu0 %v504
    %1220 = vmatpush.bf16.msra.mxu0 %v500
    %1221 = vmatpush.bf16.msra.mxu0 %v496
    %1222 = vmatpush.bf16.msra.mxu0 %v492
    %1223 = vmatpush.bf16.msra.mxu0 %v488
    %1224 = vmatpush.bf16.msra.mxu0 %v484
    %1225 = vmatmul.bf16.gmra.mxu0 %v1203
    %v1226 = vpop.f32.mrf.mxu0
    %v1227 = vadd.f32 0.0, %v1226
    %v1228 = vpop.f32.mrf.mxu0
    %1229 = vdwg.mxu0
    %1230 = vmatpush.bf16.msra.mxu0 %v513
    %1231 = vmatpush.bf16.msra.mxu0 %v509
    %1232 = vmatpush.bf16.msra.mxu0 %v505
    %1233 = vmatpush.bf16.msra.mxu0 %v501
    %1234 = vmatpush.bf16.msra.mxu0 %v497
    %1235 = vmatpush.bf16.msra.mxu0 %v493
    %1236 = vmatpush.bf16.msra.mxu0 %v489
    %1237 = vmatpush.bf16.msra.mxu0 %v485
    %1238 = vmatmul.bf16.gmra.mxu0 %v1203
    %v1239 = vpop.f32.mrf.mxu0
    %v1240 = vadd.f32 0.0, %v1239
    %v1241 = vpop.f32.mrf.mxu0
    %1242 = vdwg.mxu0
    %1243 = vmatpush.bf16.msra.mxu0 %v514
    %1244 = vmatpush.bf16.msra.mxu0 %v510
    %1245 = vmatpush.bf16.msra.mxu0 %v506
    %1246 = vmatpush.bf16.msra.mxu0 %v502
    %1247 = vmatpush.bf16.msra.mxu0 %v498
    %1248 = vmatpush.bf16.msra.mxu0 %v494
    %1249 = vmatpush.bf16.msra.mxu0 %v490
    %1250 = vmatpush.bf16.msra.mxu0 %v486
    %1251 = vmatmul.bf16.gmra.mxu0 %v1203
    %v1252 = vpop.f32.mrf.mxu0
    %v1253 = vadd.f32 0.0, %v1252
    %v1254 = vpop.f32.mrf.mxu0
    %1255 = vdwg.mxu0
    %v1260 = vrot.slane %v1214, 6
    %v1261 = vrot.slane %v1227, 6
    %v1262 = vrot.slane %v1240, 6
    %v1263 = vrot.slane %v1253, 6
    %v1268 = vadd.f32 %v323, %v1260
    %v1269 = vadd.f32 %v342, %v1261
    %v1270 = vadd.f32 %v361, %v1262
    %v1271 = vadd.f32 %v380, %v1263
    %v1272 = vxor.u32 %v1268, 2147483648
    %v1273 = vxor.u32 %v1269, 2147483648
    %v1274 = vxor.u32 %v1270, 2147483648
    %v1275 = vmul.f32 %v1272, 1.442695
    %v1276 = vpow.pop %v1275
    %v1277 = vmul.f32 %v1273, 1.442695
    %v1278 = vpow.pop %v1277
    %v1279 = vmul.f32 %v1274, 1.442695
    %v1280 = vpow.pop %v1279
    %v1281 = vadd.f32 %v1276, 1.0
    %v1282 = vadd.f32 %v1278, 1.0
    %v1283 = vadd.f32 %v1280, 1.0
    %v1284 = vrcp.pop %v1281
    %v1285 = vmul.f32 %v1281, %v1284
    %v1286 = vsub.f32 1.0, %v1285
    %v1287 = vmul.f32 %v1284, %v1286
    %v1288 = vadd.f32 %v1284, %v1287
    %vm1289 = vweird.f32 %v1281
    %vm1290 = vweird.f32 %v1284
    %vm1291 = vmor %vm1289, %vm1290
    %v1292 = vsel %vm1291, %v1284, %v1288
    %v1293 = vand.u32 2147483647, %v1281
    %vm1294 = vcmp.eq.f32.partialorder %v1293, 8.507059e+37
    %v1295 = vand.u32 %v1281, 2147483648
    %v1296 = vor.u32 1.1754944e-38, %v1295
    %v1297 = vsel %vm1294, %v1296, %v1292
    %v1298 = vmul.f32 1.0, %v1297
    %v1299 = vrcp.pop %v1282
    %v1300 = vmul.f32 %v1282, %v1299
    %v1301 = vsub.f32 1.0, %v1300
    %v1302 = vmul.f32 %v1299, %v1301
    %v1303 = vadd.f32 %v1299, %v1302
    %vm1304 = vweird.f32 %v1282
    %vm1305 = vweird.f32 %v1299
    %vm1306 = vmor %vm1304, %vm1305
    %v1307 = vsel %vm1306, %v1299, %v1303
    %v1308 = vand.u32 2147483647, %v1282
    %vm1309 = vcmp.eq.f32.partialorder %v1308, 8.507059e+37
    %v1310 = vand.u32 %v1282, 2147483648
    %v1311 = vor.u32 1.1754944e-38, %v1310
    %v1312 = vsel %vm1309, %v1311, %v1307
    %v1313 = vmul.f32 1.0, %v1312
    %v1314 = vrcp.pop %v1283
    %v1315 = vmul.f32 %v1283, %v1314
    %v1316 = vsub.f32 1.0, %v1315
    %v1317 = vmul.f32 %v1314, %v1316
    %v1318 = vadd.f32 %v1314, %v1317
    %vm1319 = vweird.f32 %v1283
    %vm1320 = vweird.f32 %v1314
    %vm1321 = vmor %vm1319, %vm1320
    %v1322 = vsel %vm1321, %v1314, %v1318
    %v1323 = vand.u32 2147483647, %v1283
    %vm1324 = vcmp.eq.f32.partialorder %v1323, 8.507059e+37
    %v1325 = vand.u32 %v1283, 2147483648
    %v1326 = vor.u32 1.1754944e-38, %v1325
    %v1327 = vsel %vm1324, %v1326, %v1322
    %v1328 = vmul.f32 1.0, %v1327
    %v1329 = vtanh.pop %v1271
    %v1331 = vrot.slane %v1200, 6
    %v1333 = vmul.f32 %v1313, %v1331
    %v1334 = vmul.f32 %v1298, %v1329
    %v1335 = vadd.f32 %v1333, %v1334
    %v1336 = vtanh.pop %v1335
    %v1337 = vmul.f32 %v1328, %v1336
    %v1338 = vpack.c.bf16 %v1337, %v1337
    %v1340 = vrot.slane %v1338, 1
    %1342 = vmatpush.bf16.msra.mxu0 %v511
    %1343 = vmatpush.bf16.msra.mxu0 %v507
    %1344 = vmatpush.bf16.msra.mxu0 %v503
    %1345 = vmatpush.bf16.msra.mxu0 %v499
    %1346 = vmatpush.bf16.msra.mxu0 %v495
    %1347 = vmatpush.bf16.msra.mxu0 %v491
    %1348 = vmatpush.bf16.msra.mxu0 %v487
    %1349 = vmatpush.bf16.msra.mxu0 %v483
    %1350 = vmatmul.bf16.gmra.mxu0 %v1340
    %v1351 = vpop.f32.mrf.mxu0
    %v1352 = vadd.f32 0.0, %v1351
    %v1353 = vpop.f32.mrf.mxu0
    %1354 = vdwg.mxu0
    %1355 = vmatpush.bf16.msra.mxu0 %v512
    %1356 = vmatpush.bf16.msra.mxu0 %v508
    %1357 = vmatpush.bf16.msra.mxu0 %v504
    %1358 = vmatpush.bf16.msra.mxu0 %v500
    %1359 = vmatpush.bf16.msra.mxu0 %v496
    %1360 = vmatpush.bf16.msra.mxu0 %v492
    %1361 = vmatpush.bf16.msra.mxu0 %v488
    %1362 = vmatpush.bf16.msra.mxu0 %v484
    %1363 = vmatmul.bf16.gmra.mxu0 %v1340
    %v1364 = vpop.f32.mrf.mxu0
    %v1365 = vadd.f32 0.0, %v1364
    %v1366 = vpop.f32.mrf.mxu0
    %1367 = vdwg.mxu0
    %1368 = vmatpush.bf16.msra.mxu0 %v513
    %1369 = vmatpush.bf16.msra.mxu0 %v509
    %1370 = vmatpush.bf16.msra.mxu0 %v505
    %1371 = vmatpush.bf16.msra.mxu0 %v501
    %1372 = vmatpush.bf16.msra.mxu0 %v497
    %1373 = vmatpush.bf16.msra.mxu0 %v493
    %1374 = vmatpush.bf16.msra.mxu0 %v489
    %1375 = vmatpush.bf16.msra.mxu0 %v485
    %1376 = vmatmul.bf16.gmra.mxu0 %v1340
    %v1377 = vpop.f32.mrf.mxu0
    %v1378 = vadd.f32 0.0, %v1377
    %v1379 = vpop.f32.mrf.mxu0
    %1380 = vdwg.mxu0
    %1381 = vmatpush.bf16.msra.mxu0 %v514
    %1382 = vmatpush.bf16.msra.mxu0 %v510
    %1383 = vmatpush.bf16.msra.mxu0 %v506
    %1384 = vmatpush.bf16.msra.mxu0 %v502
    %1385 = vmatpush.bf16.msra.mxu0 %v498
    %1386 = vmatpush.bf16.msra.mxu0 %v494
    %1387 = vmatpush.bf16.msra.mxu0 %v490
    %1388 = vmatpush.bf16.msra.mxu0 %v486
    %1389 = vmatmul.bf16.gmra.mxu0 %v1340
    %v1390 = vpop.f32.mrf.mxu0
    %v1391 = vadd.f32 0.0, %v1390
    %v1392 = vpop.f32.mrf.mxu0
    %1393 = vdwg.mxu0
    %v1398 = vrot.slane %v1352, 4
    %v1399 = vrot.slane %v1365, 4
    %v1400 = vrot.slane %v1378, 4
    %v1401 = vrot.slane %v1391, 4
    %v1406 = vadd.f32 %v323, %v1398
    %v1407 = vadd.f32 %v342, %v1399
    %v1408 = vadd.f32 %v361, %v1400
    %v1409 = vadd.f32 %v380, %v1401
    %v1410 = vxor.u32 %v1406, 2147483648
    %v1411 = vxor.u32 %v1407, 2147483648
    %v1412 = vxor.u32 %v1408, 2147483648
    %v1413 = vmul.f32 %v1410, 1.442695
    %v1414 = vpow.pop %v1413
    %v1415 = vmul.f32 %v1411, 1.442695
    %v1416 = vpow.pop %v1415
    %v1417 = vmul.f32 %v1412, 1.442695
    %v1418 = vpow.pop %v1417
    %v1419 = vadd.f32 %v1414, 1.0
    %v1420 = vadd.f32 %v1416, 1.0
    %v1421 = vadd.f32 %v1418, 1.0
    %v1422 = vrcp.pop %v1419
    %v1423 = vmul.f32 %v1419, %v1422
    %v1424 = vsub.f32 1.0, %v1423
    %v1425 = vmul.f32 %v1422, %v1424
    %v1426 = vadd.f32 %v1422, %v1425
    %vm1427 = vweird.f32 %v1419
    %vm1428 = vweird.f32 %v1422
    %vm1429 = vmor %vm1427, %vm1428
    %v1430 = vsel %vm1429, %v1422, %v1426
    %v1431 = vand.u32 2147483647, %v1419
    %vm1432 = vcmp.eq.f32.partialorder %v1431, 8.507059e+37
    %v1433 = vand.u32 %v1419, 2147483648
    %v1434 = vor.u32 1.1754944e-38, %v1433
    %v1435 = vsel %vm1432, %v1434, %v1430
    %v1436 = vmul.f32 1.0, %v1435
    %v1437 = vrcp.pop %v1420
    %v1438 = vmul.f32 %v1420, %v1437
    %v1439 = vsub.f32 1.0, %v1438
    %v1440 = vmul.f32 %v1437, %v1439
    %v1441 = vadd.f32 %v1437, %v1440
    %vm1442 = vweird.f32 %v1420
    %vm1443 = vweird.f32 %v1437
    %vm1444 = vmor %vm1442, %vm1443
    %v1445 = vsel %vm1444, %v1437, %v1441
    %v1446 = vand.u32 2147483647, %v1420
    %vm1447 = vcmp.eq.f32.partialorder %v1446, 8.507059e+37
    %v1448 = vand.u32 %v1420, 2147483648
    %v1449 = vor.u32 1.1754944e-38, %v1448
    %v1450 = vsel %vm1447, %v1449, %v1445
    %v1451 = vmul.f32 1.0, %v1450
    %v1452 = vrcp.pop %v1421
    %v1453 = vmul.f32 %v1421, %v1452
    %v1454 = vsub.f32 1.0, %v1453
    %v1455 = vmul.f32 %v1452, %v1454
    %v1456 = vadd.f32 %v1452, %v1455
    %vm1457 = vweird.f32 %v1421
    %vm1458 = vweird.f32 %v1452
    %vm1459 = vmor %vm1457, %vm1458
    %v1460 = vsel %vm1459, %v1452, %v1456
    %v1461 = vand.u32 2147483647, %v1421
    %vm1462 = vcmp.eq.f32.partialorder %v1461, 8.507059e+37
    %v1463 = vand.u32 %v1421, 2147483648
    %v1464 = vor.u32 1.1754944e-38, %v1463
    %v1465 = vsel %vm1462, %v1464, %v1460
    %v1466 = vmul.f32 1.0, %v1465
    %v1467 = vtanh.pop %v1409
    %v1469 = vrot.slane %v1335, 6
    %v1471 = vmul.f32 %v1451, %v1469
    %v1472 = vmul.f32 %v1436, %v1467
    %v1473 = vadd.f32 %v1471, %v1472
    %v1474 = vtanh.pop %v1473
    %v1475 = vmul.f32 %v1466, %v1474
    %v1476 = vpack.c.bf16 %v1475, %v1475
    %v1478 = vrot.slane %v1476, 2
    %1480 = vmatpush.bf16.msra.mxu0 %v511
    %1481 = vmatpush.bf16.msra.mxu0 %v507
    %1482 = vmatpush.bf16.msra.mxu0 %v503
    %1483 = vmatpush.bf16.msra.mxu0 %v499
    %1484 = vmatpush.bf16.msra.mxu0 %v495
    %1485 = vmatpush.bf16.msra.mxu0 %v491
    %1486 = vmatpush.bf16.msra.mxu0 %v487
    %1487 = vmatpush.bf16.msra.mxu0 %v483
    %1488 = vmatmul.bf16.gmra.mxu0 %v1478
    %v1489 = vpop.f32.mrf.mxu0
    %v1490 = vadd.f32 0.0, %v1489
    %v1491 = vpop.f32.mrf.mxu0
    %1492 = vdwg.mxu0
    %1493 = vmatpush.bf16.msra.mxu0 %v512
    %1494 = vmatpush.bf16.msra.mxu0 %v508
    %1495 = vmatpush.bf16.msra.mxu0 %v504
    %1496 = vmatpush.bf16.msra.mxu0 %v500
    %1497 = vmatpush.bf16.msra.mxu0 %v496
    %1498 = vmatpush.bf16.msra.mxu0 %v492
    %1499 = vmatpush.bf16.msra.mxu0 %v488
    %1500 = vmatpush.bf16.msra.mxu0 %v484
    %1501 = vmatmul.bf16.gmra.mxu0 %v1478
    %v1502 = vpop.f32.mrf.mxu0
    %v1503 = vadd.f32 0.0, %v1502
    %v1504 = vpop.f32.mrf.mxu0
    %1505 = vdwg.mxu0
    %1506 = vmatpush.bf16.msra.mxu0 %v513
    %1507 = vmatpush.bf16.msra.mxu0 %v509
    %1508 = vmatpush.bf16.msra.mxu0 %v505
    %1509 = vmatpush.bf16.msra.mxu0 %v501
    %1510 = vmatpush.bf16.msra.mxu0 %v497
    %1511 = vmatpush.bf16.msra.mxu0 %v493
    %1512 = vmatpush.bf16.msra.mxu0 %v489
    %1513 = vmatpush.bf16.msra.mxu0 %v485
    %1514 = vmatmul.bf16.gmra.mxu0 %v1478
    %v1515 = vpop.f32.mrf.mxu0
    %v1516 = vadd.f32 0.0, %v1515
    %v1517 = vpop.f32.mrf.mxu0
    %1518 = vdwg.mxu0
    %1519 = vmatpush.bf16.msra.mxu0 %v514
    %1520 = vmatpush.bf16.msra.mxu0 %v510
    %1521 = vmatpush.bf16.msra.mxu0 %v506
    %1522 = vmatpush.bf16.msra.mxu0 %v502
    %1523 = vmatpush.bf16.msra.mxu0 %v498
    %1524 = vmatpush.bf16.msra.mxu0 %v494
    %1525 = vmatpush.bf16.msra.mxu0 %v490
    %1526 = vmatpush.bf16.msra.mxu0 %v486
    %1527 = vmatmul.bf16.gmra.mxu0 %v1478
    %v1528 = vpop.f32.mrf.mxu0
    %v1529 = vadd.f32 0.0, %v1528
    %v1530 = vpop.f32.mrf.mxu0
    %1531 = vdwg.mxu0
    %v1536 = vrot.slane %v1490, 2
    %v1537 = vrot.slane %v1503, 2
    %v1538 = vrot.slane %v1516, 2
    %v1539 = vrot.slane %v1529, 2
    %v1544 = vadd.f32 %v323, %v1536
    %v1545 = vadd.f32 %v342, %v1537
    %v1546 = vadd.f32 %v361, %v1538
    %v1547 = vadd.f32 %v380, %v1539
    %v1548 = vxor.u32 %v1544, 2147483648
    %v1549 = vxor.u32 %v1545, 2147483648
    %v1550 = vxor.u32 %v1546, 2147483648
    %v1551 = vmul.f32 %v1548, 1.442695
    %v1552 = vpow.pop %v1551
    %v1553 = vmul.f32 %v1549, 1.442695
    %v1554 = vpow.pop %v1553
    %v1555 = vmul.f32 %v1550, 1.442695
    %v1556 = vpow.pop %v1555
    %v1557 = vadd.f32 %v1552, 1.0
    %v1558 = vadd.f32 %v1554, 1.0
    %v1559 = vadd.f32 %v1556, 1.0
    %v1560 = vrcp.pop %v1557
    %v1561 = vmul.f32 %v1557, %v1560
    %v1562 = vsub.f32 1.0, %v1561
    %v1563 = vmul.f32 %v1560, %v1562
    %v1564 = vadd.f32 %v1560, %v1563
    %vm1565 = vweird.f32 %v1557
    %vm1566 = vweird.f32 %v1560
    %vm1567 = vmor %vm1565, %vm1566
    %v1568 = vsel %vm1567, %v1560, %v1564
    %v1569 = vand.u32 2147483647, %v1557
    %vm1570 = vcmp.eq.f32.partialorder %v1569, 8.507059e+37
    %v1571 = vand.u32 %v1557, 2147483648
    %v1572 = vor.u32 1.1754944e-38, %v1571
    %v1573 = vsel %vm1570, %v1572, %v1568
    %v1574 = vmul.f32 1.0, %v1573
    %v1575 = vrcp.pop %v1558
    %v1576 = vmul.f32 %v1558, %v1575
    %v1577 = vsub.f32 1.0, %v1576
    %v1578 = vmul.f32 %v1575, %v1577
    %v1579 = vadd.f32 %v1575, %v1578
    %vm1580 = vweird.f32 %v1558
    %vm1581 = vweird.f32 %v1575
    %vm1582 = vmor %vm1580, %vm1581
    %v1583 = vsel %vm1582, %v1575, %v1579
    %v1584 = vand.u32 2147483647, %v1558
    %vm1585 = vcmp.eq.f32.partialorder %v1584, 8.507059e+37
    %v1586 = vand.u32 %v1558, 2147483648
    %v1587 = vor.u32 1.1754944e-38, %v1586
    %v1588 = vsel %vm1585, %v1587, %v1583
    %v1589 = vmul.f32 1.0, %v1588
    %v1590 = vrcp.pop %v1559
    %v1591 = vmul.f32 %v1559, %v1590
    %v1592 = vsub.f32 1.0, %v1591
    %v1593 = vmul.f32 %v1590, %v1592
    %v1594 = vadd.f32 %v1590, %v1593
    %vm1595 = vweird.f32 %v1559
    %vm1596 = vweird.f32 %v1590
    %vm1597 = vmor %vm1595, %vm1596
    %v1598 = vsel %vm1597, %v1590, %v1594
    %v1599 = vand.u32 2147483647, %v1559
    %vm1600 = vcmp.eq.f32.partialorder %v1599, 8.507059e+37
    %v1601 = vand.u32 %v1559, 2147483648
    %v1602 = vor.u32 1.1754944e-38, %v1601
    %v1603 = vsel %vm1600, %v1602, %v1598
    %v1604 = vmul.f32 1.0, %v1603
    %v1605 = vtanh.pop %v1547
    %v1607 = vrot.slane %v1473, 6
    %v1609 = vmul.f32 %v1589, %v1607
    %v1610 = vmul.f32 %v1574, %v1605
    %v1611 = vadd.f32 %v1609, %v1610
    %v1612 = vtanh.pop %v1611
    %v1613 = vmul.f32 %v1604, %v1612
    %v1614 = vpack.c.bf16 %v1613, %v1613
    %v1616 = vrot.slane %v1614, 3
    %1618 = vmatpush.bf16.msra.mxu0 %v511
    %1619 = vmatpush.bf16.msra.mxu0 %v507
    %1620 = vmatpush.bf16.msra.mxu0 %v503
    %1621 = vmatpush.bf16.msra.mxu0 %v499
    %1622 = vmatpush.bf16.msra.mxu0 %v495
    %1623 = vmatpush.bf16.msra.mxu0 %v491
    %1624 = vmatpush.bf16.msra.mxu0 %v487
    %1625 = vmatpush.bf16.msra.mxu0 %v483
    %1626 = vmatmul.bf16.gmra.mxu0 %v1616
    %v1627 = vpop.f32.mrf.mxu0
    %v1628 = vadd.f32 0.0, %v1627
    %v1629 = vpop.f32.mrf.mxu0
    %1630 = vdwg.mxu0
    %1631 = vmatpush.bf16.msra.mxu0 %v512
    %1632 = vmatpush.bf16.msra.mxu0 %v508
    %1633 = vmatpush.bf16.msra.mxu0 %v504
    %1634 = vmatpush.bf16.msra.mxu0 %v500
    %1635 = vmatpush.bf16.msra.mxu0 %v496
    %1636 = vmatpush.bf16.msra.mxu0 %v492
    %1637 = vmatpush.bf16.msra.mxu0 %v488
    %1638 = vmatpush.bf16.msra.mxu0 %v484
    %1639 = vmatmul.bf16.gmra.mxu0 %v1616
    %v1640 = vpop.f32.mrf.mxu0
    %v1641 = vadd.f32 0.0, %v1640
    %v1642 = vpop.f32.mrf.mxu0
    %1643 = vdwg.mxu0
    %1644 = vmatpush.bf16.msra.mxu0 %v513
    %1645 = vmatpush.bf16.msra.mxu0 %v509
    %1646 = vmatpush.bf16.msra.mxu0 %v505
    %1647 = vmatpush.bf16.msra.mxu0 %v501
    %1648 = vmatpush.bf16.msra.mxu0 %v497
    %1649 = vmatpush.bf16.msra.mxu0 %v493
    %1650 = vmatpush.bf16.msra.mxu0 %v489
    %1651 = vmatpush.bf16.msra.mxu0 %v485
    %1652 = vmatmul.bf16.gmra.mxu0 %v1616
    %v1653 = vpop.f32.mrf.mxu0
    %v1654 = vadd.f32 0.0, %v1653
    %v1655 = vpop.f32.mrf.mxu0
    %1656 = vdwg.mxu0
    %1657 = vmatpush.bf16.msra.mxu0 %v514
    %1658 = vmatpush.bf16.msra.mxu0 %v510
    %1659 = vmatpush.bf16.msra.mxu0 %v506
    %1660 = vmatpush.bf16.msra.mxu0 %v502
    %1661 = vmatpush.bf16.msra.mxu0 %v498
    %1662 = vmatpush.bf16.msra.mxu0 %v494
    %1663 = vmatpush.bf16.msra.mxu0 %v490
    %1664 = vmatpush.bf16.msra.mxu0 %v486
    %1665 = vmatmul.bf16.gmra.mxu0 %v1616
    %v1666 = vpop.f32.mrf.mxu0
    %v1667 = vadd.f32 0.0, %v1666
    %v1668 = vpop.f32.mrf.mxu0
    %1669 = vdwg.mxu0
    %v1670 = vadd.f32 %v326, %v1628
    %v1671 = vadd.f32 %v345, %v1641
    %v1672 = vadd.f32 %v364, %v1654
    %v1673 = vadd.f32 %v383, %v1667
    %v1674 = vxor.u32 %v1670, 2147483648
    %v1675 = vxor.u32 %v1671, 2147483648
    %v1676 = vxor.u32 %v1672, 2147483648
    %v1677 = vmul.f32 %v1674, 1.442695
    %v1678 = vpow.pop %v1677
    %v1679 = vmul.f32 %v1675, 1.442695
    %v1680 = vpow.pop %v1679
    %v1681 = vmul.f32 %v1676, 1.442695
    %v1682 = vpow.pop %v1681
    %v1683 = vadd.f32 %v1678, 1.0
    %v1684 = vadd.f32 %v1680, 1.0
    %v1685 = vadd.f32 %v1682, 1.0
    %v1686 = vrcp.pop %v1683
    %v1687 = vmul.f32 %v1683, %v1686
    %v1688 = vsub.f32 1.0, %v1687
    %v1689 = vmul.f32 %v1686, %v1688
    %v1690 = vadd.f32 %v1686, %v1689
    %vm1691 = vweird.f32 %v1683
    %vm1692 = vweird.f32 %v1686
    %vm1693 = vmor %vm1691, %vm1692
    %v1694 = vsel %vm1693, %v1686, %v1690
    %v1695 = vand.u32 2147483647, %v1683
    %vm1696 = vcmp.eq.f32.partialorder %v1695, 8.507059e+37
    %v1697 = vand.u32 %v1683, 2147483648
    %v1698 = vor.u32 1.1754944e-38, %v1697
    %v1699 = vsel %vm1696, %v1698, %v1694
    %v1700 = vmul.f32 1.0, %v1699
    %v1701 = vrcp.pop %v1684
    %v1702 = vmul.f32 %v1684, %v1701
    %v1703 = vsub.f32 1.0, %v1702
    %v1704 = vmul.f32 %v1701, %v1703
    %v1705 = vadd.f32 %v1701, %v1704
    %vm1706 = vweird.f32 %v1684
    %vm1707 = vweird.f32 %v1701
    %vm1708 = vmor %vm1706, %vm1707
    %v1709 = vsel %vm1708, %v1701, %v1705
    %v1710 = vand.u32 2147483647, %v1684
    %vm1711 = vcmp.eq.f32.partialorder %v1710, 8.507059e+37
    %v1712 = vand.u32 %v1684, 2147483648
    %v1713 = vor.u32 1.1754944e-38, %v1712
    %v1714 = vsel %vm1711, %v1713, %v1709
    %v1715 = vmul.f32 1.0, %v1714
    %v1716 = vrcp.pop %v1685
    %v1717 = vmul.f32 %v1685, %v1716
    %v1718 = vsub.f32 1.0, %v1717
    %v1719 = vmul.f32 %v1716, %v1718
    %v1720 = vadd.f32 %v1716, %v1719
    %vm1721 = vweird.f32 %v1685
    %vm1722 = vweird.f32 %v1716
    %vm1723 = vmor %vm1721, %vm1722
    %v1724 = vsel %vm1723, %v1716, %v1720
    %v1725 = vand.u32 2147483647, %v1685
    %vm1726 = vcmp.eq.f32.partialorder %v1725, 8.507059e+37
    %v1727 = vand.u32 %v1685, 2147483648
    %v1728 = vor.u32 1.1754944e-38, %v1727
    %v1729 = vsel %vm1726, %v1728, %v1724
    %v1730 = vmul.f32 1.0, %v1729
    %v1731 = vtanh.pop %v1673
    %v1733 = vrot.slane %v1611, 6
    %v1735 = vmul.f32 %v1715, %v1733
    %v1736 = vmul.f32 %v1700, %v1731
    %v1737 = vadd.f32 %v1735, %v1736
    %v1738 = vtanh.pop %v1737
    %v1739 = vmul.f32 %v1730, %v1738
    %v1740 = vpack.c.bf16 %v1739, %v1739
    %1741 = vmatpush.bf16.msra.mxu0 %v511
    %1742 = vmatpush.bf16.msra.mxu0 %v507
    %1743 = vmatpush.bf16.msra.mxu0 %v503
    %1744 = vmatpush.bf16.msra.mxu0 %v499
    %1745 = vmatpush.bf16.msra.mxu0 %v495
    %1746 = vmatpush.bf16.msra.mxu0 %v491
    %1747 = vmatpush.bf16.msra.mxu0 %v487
    %1748 = vmatpush.bf16.msra.mxu0 %v483
    %1749 = vmatmul.bf16.gmra.mxu0 %v1740
    %v1750 = vpop.f32.mrf.mxu0
    %v1751 = vadd.f32 0.0, %v1750
    %v1752 = vpop.f32.mrf.mxu0
    %1753 = vdwg.mxu0
    %1754 = vmatpush.bf16.msra.mxu0 %v512
    %1755 = vmatpush.bf16.msra.mxu0 %v508
    %1756 = vmatpush.bf16.msra.mxu0 %v504
    %1757 = vmatpush.bf16.msra.mxu0 %v500
    %1758 = vmatpush.bf16.msra.mxu0 %v496
    %1759 = vmatpush.bf16.msra.mxu0 %v492
    %1760 = vmatpush.bf16.msra.mxu0 %v488
    %1761 = vmatpush.bf16.msra.mxu0 %v484
    %1762 = vmatmul.bf16.gmra.mxu0 %v1740
    %v1763 = vpop.f32.mrf.mxu0
    %v1764 = vadd.f32 0.0, %v1763
    %v1765 = vpop.f32.mrf.mxu0
    %1766 = vdwg.mxu0
    %1767 = vmatpush.bf16.msra.mxu0 %v513
    %1768 = vmatpush.bf16.msra.mxu0 %v509
    %1769 = vmatpush.bf16.msra.mxu0 %v505
    %1770 = vmatpush.bf16.msra.mxu0 %v501
    %1771 = vmatpush.bf16.msra.mxu0 %v497
    %1772 = vmatpush.bf16.msra.mxu0 %v493
    %1773 = vmatpush.bf16.msra.mxu0 %v489
    %1774 = vmatpush.bf16.msra.mxu0 %v485
    %1775 = vmatmul.bf16.gmra.mxu0 %v1740
    %v1776 = vpop.f32.mrf.mxu0
    %v1777 = vadd.f32 0.0, %v1776
    %v1778 = vpop.f32.mrf.mxu0
    %1779 = vdwg.mxu0
    %1780 = vmatpush.bf16.msra.mxu0 %v514
    %1781 = vmatpush.bf16.msra.mxu0 %v510
    %1782 = vmatpush.bf16.msra.mxu0 %v506
    %1783 = vmatpush.bf16.msra.mxu0 %v502
    %1784 = vmatpush.bf16.msra.mxu0 %v498
    %1785 = vmatpush.bf16.msra.mxu0 %v494
    %1786 = vmatpush.bf16.msra.mxu0 %v490
    %1787 = vmatpush.bf16.msra.mxu0 %v486
    %1788 = vmatmul.bf16.gmra.mxu0 %v1740
    %v1789 = vpop.f32.mrf.mxu0
    %v1790 = vadd.f32 0.0, %v1789
    %v1791 = vpop.f32.mrf.mxu0
    %1792 = vdwg.mxu0
    %v1797 = vrot.slane %v1751, 6
    %v1798 = vrot.slane %v1764, 6
    %v1799 = vrot.slane %v1777, 6
    %v1800 = vrot.slane %v1790, 6
    %v1805 = vadd.f32 %v326, %v1797
    %v1806 = vadd.f32 %v345, %v1798
    %v1807 = vadd.f32 %v364, %v1799
    %v1808 = vadd.f32 %v383, %v1800
    %v1809 = vxor.u32 %v1805, 2147483648
    %v1810 = vxor.u32 %v1806, 2147483648
    %v1811 = vxor.u32 %v1807, 2147483648
    %v1812 = vmul.f32 %v1809, 1.442695
    %v1813 = vpow.pop %v1812
    %v1814 = vmul.f32 %v1810, 1.442695
    %v1815 = vpow.pop %v1814
    %v1816 = vmul.f32 %v1811, 1.442695
    %v1817 = vpow.pop %v1816
    %v1818 = vadd.f32 %v1813, 1.0
    %v1819 = vadd.f32 %v1815, 1.0
    %v1820 = vadd.f32 %v1817, 1.0
    %v1821 = vrcp.pop %v1818
    %v1822 = vmul.f32 %v1818, %v1821
    %v1823 = vsub.f32 1.0, %v1822
    %v1824 = vmul.f32 %v1821, %v1823
    %v1825 = vadd.f32 %v1821, %v1824
    %vm1826 = vweird.f32 %v1818
    %vm1827 = vweird.f32 %v1821
    %vm1828 = vmor %vm1826, %vm1827
    %v1829 = vsel %vm1828, %v1821, %v1825
    %v1830 = vand.u32 2147483647, %v1818
    %vm1831 = vcmp.eq.f32.partialorder %v1830, 8.507059e+37
    %v1832 = vand.u32 %v1818, 2147483648
    %v1833 = vor.u32 1.1754944e-38, %v1832
    %v1834 = vsel %vm1831, %v1833, %v1829
    %v1835 = vmul.f32 1.0, %v1834
    %v1836 = vrcp.pop %v1819
    %v1837 = vmul.f32 %v1819, %v1836
    %v1838 = vsub.f32 1.0, %v1837
    %v1839 = vmul.f32 %v1836, %v1838
    %v1840 = vadd.f32 %v1836, %v1839
    %vm1841 = vweird.f32 %v1819
    %vm1842 = vweird.f32 %v1836
    %vm1843 = vmor %vm1841, %vm1842
    %v1844 = vsel %vm1843, %v1836, %v1840
    %v1845 = vand.u32 2147483647, %v1819
    %vm1846 = vcmp.eq.f32.partialorder %v1845, 8.507059e+37
    %v1847 = vand.u32 %v1819, 2147483648
    %v1848 = vor.u32 1.1754944e-38, %v1847
    %v1849 = vsel %vm1846, %v1848, %v1844
    %v1850 = vmul.f32 1.0, %v1849
    %v1851 = vrcp.pop %v1820
    %v1852 = vmul.f32 %v1820, %v1851
    %v1853 = vsub.f32 1.0, %v1852
    %v1854 = vmul.f32 %v1851, %v1853
    %v1855 = vadd.f32 %v1851, %v1854
    %vm1856 = vweird.f32 %v1820
    %vm1857 = vweird.f32 %v1851
    %vm1858 = vmor %vm1856, %vm1857
    %v1859 = vsel %vm1858, %v1851, %v1855
    %v1860 = vand.u32 2147483647, %v1820
    %vm1861 = vcmp.eq.f32.partialorder %v1860, 8.507059e+37
    %v1862 = vand.u32 %v1820, 2147483648
    %v1863 = vor.u32 1.1754944e-38, %v1862
    %v1864 = vsel %vm1861, %v1863, %v1859
    %v1865 = vmul.f32 1.0, %v1864
    %v1866 = vtanh.pop %v1808
    %v1868 = vrot.slane %v1737, 6
    %v1870 = vmul.f32 %v1850, %v1868
    %v1871 = vmul.f32 %v1835, %v1866
    %v1872 = vadd.f32 %v1870, %v1871
    %v1873 = vtanh.pop %v1872
    %v1874 = vmul.f32 %v1865, %v1873
    %v1875 = vpack.c.bf16 %v1874, %v1874
    %v1877 = vrot.slane %v1875, 1
    %1879 = vmatpush.bf16.msra.mxu0 %v511
    %1880 = vmatpush.bf16.msra.mxu0 %v507
    %1881 = vmatpush.bf16.msra.mxu0 %v503
    %1882 = vmatpush.bf16.msra.mxu0 %v499
    %1883 = vmatpush.bf16.msra.mxu0 %v495
    %1884 = vmatpush.bf16.msra.mxu0 %v491
    %1885 = vmatpush.bf16.msra.mxu0 %v487
    %1886 = vmatpush.bf16.msra.mxu0 %v483
    %1887 = vmatmul.bf16.gmra.mxu0 %v1877
    %v1888 = vpop.f32.mrf.mxu0
    %v1889 = vadd.f32 0.0, %v1888
    %v1890 = vpop.f32.mrf.mxu0
    %1891 = vdwg.mxu0
    %1892 = vmatpush.bf16.msra.mxu0 %v512
    %1893 = vmatpush.bf16.msra.mxu0 %v508
    %1894 = vmatpush.bf16.msra.mxu0 %v504
    %1895 = vmatpush.bf16.msra.mxu0 %v500
    %1896 = vmatpush.bf16.msra.mxu0 %v496
    %1897 = vmatpush.bf16.msra.mxu0 %v492
    %1898 = vmatpush.bf16.msra.mxu0 %v488
    %1899 = vmatpush.bf16.msra.mxu0 %v484
    %1900 = vmatmul.bf16.gmra.mxu0 %v1877
    %v1901 = vpop.f32.mrf.mxu0
    %v1902 = vadd.f32 0.0, %v1901
    %v1903 = vpop.f32.mrf.mxu0
    %1904 = vdwg.mxu0
    %1905 = vmatpush.bf16.msra.mxu0 %v513
    %1906 = vmatpush.bf16.msra.mxu0 %v509
    %1907 = vmatpush.bf16.msra.mxu0 %v505
    %1908 = vmatpush.bf16.msra.mxu0 %v501
    %1909 = vmatpush.bf16.msra.mxu0 %v497
    %1910 = vmatpush.bf16.msra.mxu0 %v493
    %1911 = vmatpush.bf16.msra.mxu0 %v489
    %1912 = vmatpush.bf16.msra.mxu0 %v485
    %1913 = vmatmul.bf16.gmra.mxu0 %v1877
    %v1914 = vpop.f32.mrf.mxu0
    %v1915 = vadd.f32 0.0, %v1914
    %v1916 = vpop.f32.mrf.mxu0
    %1917 = vdwg.mxu0
    %1918 = vmatpush.bf16.msra.mxu0 %v514
    %1919 = vmatpush.bf16.msra.mxu0 %v510
    %1920 = vmatpush.bf16.msra.mxu0 %v506
    %1921 = vmatpush.bf16.msra.mxu0 %v502
    %1922 = vmatpush.bf16.msra.mxu0 %v498
    %1923 = vmatpush.bf16.msra.mxu0 %v494
    %1924 = vmatpush.bf16.msra.mxu0 %v490
    %1925 = vmatpush.bf16.msra.mxu0 %v486
    %1926 = vmatmul.bf16.gmra.mxu0 %v1877
    %v1927 = vpop.f32.mrf.mxu0
    %v1928 = vadd.f32 0.0, %v1927
    %v1929 = vpop.f32.mrf.mxu0
    %1930 = vdwg.mxu0
    %v1935 = vrot.slane %v1889, 4
    %v1936 = vrot.slane %v1902, 4
    %v1937 = vrot.slane %v1915, 4
    %v1938 = vrot.slane %v1928, 4
    %v1943 = vadd.f32 %v326, %v1935
    %v1944 = vadd.f32 %v345, %v1936
    %v1945 = vadd.f32 %v364, %v1937
    %v1946 = vadd.f32 %v383, %v1938
    %v1947 = vxor.u32 %v1943, 2147483648
    %v1948 = vxor.u32 %v1944, 2147483648
    %v1949 = vxor.u32 %v1945, 2147483648
    %v1950 = vmul.f32 %v1947, 1.442695
    %v1951 = vpow.pop %v1950
    %v1952 = vmul.f32 %v1948, 1.442695
    %v1953 = vpow.pop %v1952
    %v1954 = vmul.f32 %v1949, 1.442695
    %v1955 = vpow.pop %v1954
    %v1956 = vadd.f32 %v1951, 1.0
    %v1957 = vadd.f32 %v1953, 1.0
    %v1958 = vadd.f32 %v1955, 1.0
    %v1959 = vrcp.pop %v1956
    %v1960 = vmul.f32 %v1956, %v1959
    %v1961 = vsub.f32 1.0, %v1960
    %v1962 = vmul.f32 %v1959, %v1961
    %v1963 = vadd.f32 %v1959, %v1962
    %vm1964 = vweird.f32 %v1956
    %vm1965 = vweird.f32 %v1959
    %vm1966 = vmor %vm1964, %vm1965
    %v1967 = vsel %vm1966, %v1959, %v1963
    %v1968 = vand.u32 2147483647, %v1956
    %vm1969 = vcmp.eq.f32.partialorder %v1968, 8.507059e+37
    %v1970 = vand.u32 %v1956, 2147483648
    %v1971 = vor.u32 1.1754944e-38, %v1970
    %v1972 = vsel %vm1969, %v1971, %v1967
    %v1973 = vmul.f32 1.0, %v1972
    %v1974 = vrcp.pop %v1957
    %v1975 = vmul.f32 %v1957, %v1974
    %v1976 = vsub.f32 1.0, %v1975
    %v1977 = vmul.f32 %v1974, %v1976
    %v1978 = vadd.f32 %v1974, %v1977
    %vm1979 = vweird.f32 %v1957
    %vm1980 = vweird.f32 %v1974
    %vm1981 = vmor %vm1979, %vm1980
    %v1982 = vsel %vm1981, %v1974, %v1978
    %v1983 = vand.u32 2147483647, %v1957
    %vm1984 = vcmp.eq.f32.partialorder %v1983, 8.507059e+37
    %v1985 = vand.u32 %v1957, 2147483648
    %v1986 = vor.u32 1.1754944e-38, %v1985
    %v1987 = vsel %vm1984, %v1986, %v1982
    %v1988 = vmul.f32 1.0, %v1987
    %v1989 = vrcp.pop %v1958
    %v1990 = vmul.f32 %v1958, %v1989
    %v1991 = vsub.f32 1.0, %v1990
    %v1992 = vmul.f32 %v1989, %v1991
    %v1993 = vadd.f32 %v1989, %v1992
    %vm1994 = vweird.f32 %v1958
    %vm1995 = vweird.f32 %v1989
    %vm1996 = vmor %vm1994, %vm1995
    %v1997 = vsel %vm1996, %v1989, %v1993
    %v1998 = vand.u32 2147483647, %v1958
    %vm1999 = vcmp.eq.f32.partialorder %v1998, 8.507059e+37
    %v2000 = vand.u32 %v1958, 2147483648
    %v2001 = vor.u32 1.1754944e-38, %v2000
    %v2002 = vsel %vm1999, %v2001, %v1997
    %v2003 = vmul.f32 1.0, %v2002
    %v2004 = vtanh.pop %v1946
    %v2006 = vrot.slane %v1872, 6
    %v2008 = vmul.f32 %v1988, %v2006
    %v2009 = vmul.f32 %v1973, %v2004
    %v2010 = vadd.f32 %v2008, %v2009
    %v2011 = vtanh.pop %v2010
    %v2012 = vmul.f32 %v2003, %v2011
    %v2013 = vpack.c.bf16 %v2012, %v2012
    %v2015 = vrot.slane %v2013, 2
    %2017 = vmatpush.bf16.msra.mxu0 %v511
    %2018 = vmatpush.bf16.msra.mxu0 %v507
    %2019 = vmatpush.bf16.msra.mxu0 %v503
    %2020 = vmatpush.bf16.msra.mxu0 %v499
    %2021 = vmatpush.bf16.msra.mxu0 %v495
    %2022 = vmatpush.bf16.msra.mxu0 %v491
    %2023 = vmatpush.bf16.msra.mxu0 %v487
    %2024 = vmatpush.bf16.msra.mxu0 %v483
    %2025 = vmatmul.bf16.gmra.mxu0 %v2015
    %v2026 = vpop.f32.mrf.mxu0
    %v2027 = vadd.f32 0.0, %v2026
    %v2028 = vpop.f32.mrf.mxu0
    %2029 = vdwg.mxu0
    %2030 = vmatpush.bf16.msra.mxu0 %v512
    %2031 = vmatpush.bf16.msra.mxu0 %v508
    %2032 = vmatpush.bf16.msra.mxu0 %v504
    %2033 = vmatpush.bf16.msra.mxu0 %v500
    %2034 = vmatpush.bf16.msra.mxu0 %v496
    %2035 = vmatpush.bf16.msra.mxu0 %v492
    %2036 = vmatpush.bf16.msra.mxu0 %v488
    %2037 = vmatpush.bf16.msra.mxu0 %v484
    %2038 = vmatmul.bf16.gmra.mxu0 %v2015
    %v2039 = vpop.f32.mrf.mxu0
    %v2040 = vadd.f32 0.0, %v2039
    %v2041 = vpop.f32.mrf.mxu0
    %2042 = vdwg.mxu0
    %2043 = vmatpush.bf16.msra.mxu0 %v513
    %2044 = vmatpush.bf16.msra.mxu0 %v509
    %2045 = vmatpush.bf16.msra.mxu0 %v505
    %2046 = vmatpush.bf16.msra.mxu0 %v501
    %2047 = vmatpush.bf16.msra.mxu0 %v497
    %2048 = vmatpush.bf16.msra.mxu0 %v493
    %2049 = vmatpush.bf16.msra.mxu0 %v489
    %2050 = vmatpush.bf16.msra.mxu0 %v485
    %2051 = vmatmul.bf16.gmra.mxu0 %v2015
    %v2052 = vpop.f32.mrf.mxu0
    %v2053 = vadd.f32 0.0, %v2052
    %v2054 = vpop.f32.mrf.mxu0
    %2055 = vdwg.mxu0
    %2056 = vmatpush.bf16.msra.mxu0 %v514
    %2057 = vmatpush.bf16.msra.mxu0 %v510
    %2058 = vmatpush.bf16.msra.mxu0 %v506
    %2059 = vmatpush.bf16.msra.mxu0 %v502
    %2060 = vmatpush.bf16.msra.mxu0 %v498
    %2061 = vmatpush.bf16.msra.mxu0 %v494
    %2062 = vmatpush.bf16.msra.mxu0 %v490
    %2063 = vmatpush.bf16.msra.mxu0 %v486
    %2064 = vmatmul.bf16.gmra.mxu0 %v2015
    %v2065 = vpop.f32.mrf.mxu0
    %v2066 = vadd.f32 0.0, %v2065
    %v2067 = vpop.f32.mrf.mxu0
    %2068 = vdwg.mxu0
    %v2073 = vrot.slane %v2027, 2
    %v2074 = vrot.slane %v2040, 2
    %v2075 = vrot.slane %v2053, 2
    %v2076 = vrot.slane %v2066, 2
    %v2081 = vadd.f32 %v326, %v2073
    %v2082 = vadd.f32 %v345, %v2074
    %v2083 = vadd.f32 %v364, %v2075
    %v2084 = vadd.f32 %v383, %v2076
    %v2085 = vxor.u32 %v2081, 2147483648
    %v2086 = vxor.u32 %v2082, 2147483648
    %v2087 = vxor.u32 %v2083, 2147483648
    %v2088 = vmul.f32 %v2085, 1.442695
    %v2089 = vpow.pop %v2088
    %v2090 = vmul.f32 %v2086, 1.442695
    %v2091 = vpow.pop %v2090
    %v2092 = vmul.f32 %v2087, 1.442695
    %v2093 = vpow.pop %v2092
    %v2094 = vadd.f32 %v2089, 1.0
    %v2095 = vadd.f32 %v2091, 1.0
    %v2096 = vadd.f32 %v2093, 1.0
    %v2097 = vrcp.pop %v2094
    %v2098 = vmul.f32 %v2094, %v2097
    %v2099 = vsub.f32 1.0, %v2098
    %v2100 = vmul.f32 %v2097, %v2099
    %v2101 = vadd.f32 %v2097, %v2100
    %vm2102 = vweird.f32 %v2094
    %vm2103 = vweird.f32 %v2097
    %vm2104 = vmor %vm2102, %vm2103
    %v2105 = vsel %vm2104, %v2097, %v2101
    %v2106 = vand.u32 2147483647, %v2094
    %vm2107 = vcmp.eq.f32.partialorder %v2106, 8.507059e+37
    %v2108 = vand.u32 %v2094, 2147483648
    %v2109 = vor.u32 1.1754944e-38, %v2108
    %v2110 = vsel %vm2107, %v2109, %v2105
    %v2111 = vmul.f32 1.0, %v2110
    %v2112 = vrcp.pop %v2095
    %v2113 = vmul.f32 %v2095, %v2112
    %v2114 = vsub.f32 1.0, %v2113
    %v2115 = vmul.f32 %v2112, %v2114
    %v2116 = vadd.f32 %v2112, %v2115
    %vm2117 = vweird.f32 %v2095
    %vm2118 = vweird.f32 %v2112
    %vm2119 = vmor %vm2117, %vm2118
    %v2120 = vsel %vm2119, %v2112, %v2116
    %v2121 = vand.u32 2147483647, %v2095
    %vm2122 = vcmp.eq.f32.partialorder %v2121, 8.507059e+37
    %v2123 = vand.u32 %v2095, 2147483648
    %v2124 = vor.u32 1.1754944e-38, %v2123
    %v2125 = vsel %vm2122, %v2124, %v2120
    %v2126 = vmul.f32 1.0, %v2125
    %v2127 = vrcp.pop %v2096
    %v2128 = vmul.f32 %v2096, %v2127
    %v2129 = vsub.f32 1.0, %v2128
    %v2130 = vmul.f32 %v2127, %v2129
    %v2131 = vadd.f32 %v2127, %v2130
    %vm2132 = vweird.f32 %v2096
    %vm2133 = vweird.f32 %v2127
    %vm2134 = vmor %vm2132, %vm2133
    %v2135 = vsel %vm2134, %v2127, %v2131
    %v2136 = vand.u32 2147483647, %v2096
    %vm2137 = vcmp.eq.f32.partialorder %v2136, 8.507059e+37
    %v2138 = vand.u32 %v2096, 2147483648
    %v2139 = vor.u32 1.1754944e-38, %v2138
    %v2140 = vsel %vm2137, %v2139, %v2135
    %v2141 = vmul.f32 1.0, %v2140
    %v2142 = vtanh.pop %v2084
    %v2144 = vrot.slane %v2010, 6
    %v2146 = vmul.f32 %v2126, %v2144
    %v2147 = vmul.f32 %v2111, %v2142
    %v2148 = vadd.f32 %v2146, %v2147
    %v2149 = vtanh.pop %v2148
    %v2150 = vmul.f32 %v2141, %v2149
    %v2151 = vpack.c.bf16 %v2150, %v2150
    %v2153 = vrot.slane %v2151, 3
    %2155 = vmatpush.bf16.msra.mxu0 %v511
    %2156 = vmatpush.bf16.msra.mxu0 %v507
    %2157 = vmatpush.bf16.msra.mxu0 %v503
    %2158 = vmatpush.bf16.msra.mxu0 %v499
    %2159 = vmatpush.bf16.msra.mxu0 %v495
    %2160 = vmatpush.bf16.msra.mxu0 %v491
    %2161 = vmatpush.bf16.msra.mxu0 %v487
    %2162 = vmatpush.bf16.msra.mxu0 %v483
    %2163 = vmatmul.bf16.gmra.mxu0 %v2153
    %v2164 = vpop.f32.mrf.mxu0
    %v2165 = vadd.f32 0.0, %v2164
    %v2166 = vpop.f32.mrf.mxu0
    %2167 = vdwg.mxu0
    %2168 = vmatpush.bf16.msra.mxu0 %v512
    %2169 = vmatpush.bf16.msra.mxu0 %v508
    %2170 = vmatpush.bf16.msra.mxu0 %v504
    %2171 = vmatpush.bf16.msra.mxu0 %v500
    %2172 = vmatpush.bf16.msra.mxu0 %v496
    %2173 = vmatpush.bf16.msra.mxu0 %v492
    %2174 = vmatpush.bf16.msra.mxu0 %v488
    %2175 = vmatpush.bf16.msra.mxu0 %v484
    %2176 = vmatmul.bf16.gmra.mxu0 %v2153
    %v2177 = vpop.f32.mrf.mxu0
    %v2178 = vadd.f32 0.0, %v2177
    %v2179 = vpop.f32.mrf.mxu0
    %2180 = vdwg.mxu0
    %2181 = vmatpush.bf16.msra.mxu0 %v513
    %2182 = vmatpush.bf16.msra.mxu0 %v509
    %2183 = vmatpush.bf16.msra.mxu0 %v505
    %2184 = vmatpush.bf16.msra.mxu0 %v501
    %2185 = vmatpush.bf16.msra.mxu0 %v497
    %2186 = vmatpush.bf16.msra.mxu0 %v493
    %2187 = vmatpush.bf16.msra.mxu0 %v489
    %2188 = vmatpush.bf16.msra.mxu0 %v485
    %2189 = vmatmul.bf16.gmra.mxu0 %v2153
    %v2190 = vpop.f32.mrf.mxu0
    %v2191 = vadd.f32 0.0, %v2190
    %v2192 = vpop.f32.mrf.mxu0
    %2193 = vdwg.mxu0
    %2194 = vmatpush.bf16.msra.mxu0 %v514
    %2195 = vmatpush.bf16.msra.mxu0 %v510
    %2196 = vmatpush.bf16.msra.mxu0 %v506
    %2197 = vmatpush.bf16.msra.mxu0 %v502
    %2198 = vmatpush.bf16.msra.mxu0 %v498
    %2199 = vmatpush.bf16.msra.mxu0 %v494
    %2200 = vmatpush.bf16.msra.mxu0 %v490
    %2201 = vmatpush.bf16.msra.mxu0 %v486
    %2202 = vmatmul.bf16.gmra.mxu0 %v2153
    %v2203 = vpop.f32.mrf.mxu0
    %v2204 = vadd.f32 0.0, %v2203
    %v2205 = vpop.f32.mrf.mxu0
    %2206 = vdwg.mxu0
    %v2207 = vadd.f32 %v328, %v2165
    %v2208 = vadd.f32 %v347, %v2178
    %v2209 = vadd.f32 %v366, %v2191
    %v2210 = vadd.f32 %v385, %v2204
    %v2211 = vxor.u32 %v2207, 2147483648
    %v2212 = vxor.u32 %v2208, 2147483648
    %v2213 = vxor.u32 %v2209, 2147483648
    %v2214 = vmul.f32 %v2211, 1.442695
    %v2215 = vpow.pop %v2214
    %v2216 = vmul.f32 %v2212, 1.442695
    %v2217 = vpow.pop %v2216
    %v2218 = vmul.f32 %v2213, 1.442695
    %v2219 = vpow.pop %v2218
    %v2220 = vadd.f32 %v2215, 1.0
    %v2221 = vadd.f32 %v2217, 1.0
    %v2222 = vadd.f32 %v2219, 1.0
    %v2223 = vrcp.pop %v2220
    %v2224 = vmul.f32 %v2220, %v2223
    %v2225 = vsub.f32 1.0, %v2224
    %v2226 = vmul.f32 %v2223, %v2225
    %v2227 = vadd.f32 %v2223, %v2226
    %vm2228 = vweird.f32 %v2220
    %vm2229 = vweird.f32 %v2223
    %vm2230 = vmor %vm2228, %vm2229
    %v2231 = vsel %vm2230, %v2223, %v2227
    %v2232 = vand.u32 2147483647, %v2220
    %vm2233 = vcmp.eq.f32.partialorder %v2232, 8.507059e+37
    %v2234 = vand.u32 %v2220, 2147483648
    %v2235 = vor.u32 1.1754944e-38, %v2234
    %v2236 = vsel %vm2233, %v2235, %v2231
    %v2237 = vmul.f32 1.0, %v2236
    %v2238 = vrcp.pop %v2221
    %v2239 = vmul.f32 %v2221, %v2238
    %v2240 = vsub.f32 1.0, %v2239
    %v2241 = vmul.f32 %v2238, %v2240
    %v2242 = vadd.f32 %v2238, %v2241
    %vm2243 = vweird.f32 %v2221
    %vm2244 = vweird.f32 %v2238
    %vm2245 = vmor %vm2243, %vm2244
    %v2246 = vsel %vm2245, %v2238, %v2242
    %v2247 = vand.u32 2147483647, %v2221
    %vm2248 = vcmp.eq.f32.partialorder %v2247, 8.507059e+37
    %v2249 = vand.u32 %v2221, 2147483648
    %v2250 = vor.u32 1.1754944e-38, %v2249
    %v2251 = vsel %vm2248, %v2250, %v2246
    %v2252 = vmul.f32 1.0, %v2251
    %v2253 = vrcp.pop %v2222
    %v2254 = vmul.f32 %v2222, %v2253
    %v2255 = vsub.f32 1.0, %v2254
    %v2256 = vmul.f32 %v2253, %v2255
    %v2257 = vadd.f32 %v2253, %v2256
    %vm2258 = vweird.f32 %v2222
    %vm2259 = vweird.f32 %v2253
    %vm2260 = vmor %vm2258, %vm2259
    %v2261 = vsel %vm2260, %v2253, %v2257
    %v2262 = vand.u32 2147483647, %v2222
    %vm2263 = vcmp.eq.f32.partialorder %v2262, 8.507059e+37
    %v2264 = vand.u32 %v2222, 2147483648
    %v2265 = vor.u32 1.1754944e-38, %v2264
    %v2266 = vsel %vm2263, %v2265, %v2261
    %v2267 = vmul.f32 1.0, %v2266
    %v2268 = vtanh.pop %v2210
    %v2270 = vrot.slane %v2148, 6
    %v2272 = vmul.f32 %v2252, %v2270
    %v2273 = vmul.f32 %v2237, %v2268
    %v2274 = vadd.f32 %v2272, %v2273
    %v2275 = vtanh.pop %v2274
    %v2276 = vmul.f32 %v2267, %v2275
    %v2277 = vpack.c.bf16 %v2276, %v2276
    %2278 = vmatpush.bf16.msra.mxu0 %v511
    %2279 = vmatpush.bf16.msra.mxu0 %v507
    %2280 = vmatpush.bf16.msra.mxu0 %v503
    %2281 = vmatpush.bf16.msra.mxu0 %v499
    %2282 = vmatpush.bf16.msra.mxu0 %v495
    %2283 = vmatpush.bf16.msra.mxu0 %v491
    %2284 = vmatpush.bf16.msra.mxu0 %v487
    %2285 = vmatpush.bf16.msra.mxu0 %v483
    %2286 = vmatmul.bf16.gmra.mxu0 %v2277
    %v2287 = vpop.f32.mrf.mxu0
    %v2288 = vadd.f32 0.0, %v2287
    %v2289 = vpop.f32.mrf.mxu0
    %2290 = vdwg.mxu0
    %2291 = vmatpush.bf16.msra.mxu0 %v512
    %2292 = vmatpush.bf16.msra.mxu0 %v508
    %2293 = vmatpush.bf16.msra.mxu0 %v504
    %2294 = vmatpush.bf16.msra.mxu0 %v500
    %2295 = vmatpush.bf16.msra.mxu0 %v496
    %2296 = vmatpush.bf16.msra.mxu0 %v492
    %2297 = vmatpush.bf16.msra.mxu0 %v488
    %2298 = vmatpush.bf16.msra.mxu0 %v484
    %2299 = vmatmul.bf16.gmra.mxu0 %v2277
    %v2300 = vpop.f32.mrf.mxu0
    %v2301 = vadd.f32 0.0, %v2300
    %v2302 = vpop.f32.mrf.mxu0
    %2303 = vdwg.mxu0
    %2304 = vmatpush.bf16.msra.mxu0 %v513
    %2305 = vmatpush.bf16.msra.mxu0 %v509
    %2306 = vmatpush.bf16.msra.mxu0 %v505
    %2307 = vmatpush.bf16.msra.mxu0 %v501
    %2308 = vmatpush.bf16.msra.mxu0 %v497
    %2309 = vmatpush.bf16.msra.mxu0 %v493
    %2310 = vmatpush.bf16.msra.mxu0 %v489
    %2311 = vmatpush.bf16.msra.mxu0 %v485
    %2312 = vmatmul.bf16.gmra.mxu0 %v2277
    %v2313 = vpop.f32.mrf.mxu0
    %v2314 = vadd.f32 0.0, %v2313
    %v2315 = vpop.f32.mrf.mxu0
    %2316 = vdwg.mxu0
    %2317 = vmatpush.bf16.msra.mxu0 %v514
    %2318 = vmatpush.bf16.msra.mxu0 %v510
    %2319 = vmatpush.bf16.msra.mxu0 %v506
    %2320 = vmatpush.bf16.msra.mxu0 %v502
    %2321 = vmatpush.bf16.msra.mxu0 %v498
    %2322 = vmatpush.bf16.msra.mxu0 %v494
    %2323 = vmatpush.bf16.msra.mxu0 %v490
    %2324 = vmatpush.bf16.msra.mxu0 %v486
    %2325 = vmatmul.bf16.gmra.mxu0 %v2277
    %v2326 = vpop.f32.mrf.mxu0
    %v2327 = vadd.f32 0.0, %v2326
    %v2328 = vpop.f32.mrf.mxu0
    %2329 = vdwg.mxu0
    %v2334 = vrot.slane %v2288, 6
    %v2335 = vrot.slane %v2301, 6
    %v2336 = vrot.slane %v2314, 6
    %v2337 = vrot.slane %v2327, 6
    %v2342 = vadd.f32 %v328, %v2334
    %v2343 = vadd.f32 %v347, %v2335
    %v2344 = vadd.f32 %v366, %v2336
    %v2345 = vadd.f32 %v385, %v2337
    %v2346 = vxor.u32 %v2342, 2147483648
    %v2347 = vxor.u32 %v2343, 2147483648
    %v2348 = vxor.u32 %v2344, 2147483648
    %v2349 = vmul.f32 %v2346, 1.442695
    %v2350 = vpow.pop %v2349
    %v2351 = vmul.f32 %v2347, 1.442695
    %v2352 = vpow.pop %v2351
    %v2353 = vmul.f32 %v2348, 1.442695
    %v2354 = vpow.pop %v2353
    %v2355 = vadd.f32 %v2350, 1.0
    %v2356 = vadd.f32 %v2352, 1.0
    %v2357 = vadd.f32 %v2354, 1.0
    %v2358 = vrcp.pop %v2355
    %v2359 = vmul.f32 %v2355, %v2358
    %v2360 = vsub.f32 1.0, %v2359
    %v2361 = vmul.f32 %v2358, %v2360
    %v2362 = vadd.f32 %v2358, %v2361
    %vm2363 = vweird.f32 %v2355
    %vm2364 = vweird.f32 %v2358
    %vm2365 = vmor %vm2363, %vm2364
    %v2366 = vsel %vm2365, %v2358, %v2362
    %v2367 = vand.u32 2147483647, %v2355
    %vm2368 = vcmp.eq.f32.partialorder %v2367, 8.507059e+37
    %v2369 = vand.u32 %v2355, 2147483648
    %v2370 = vor.u32 1.1754944e-38, %v2369
    %v2371 = vsel %vm2368, %v2370, %v2366
    %v2372 = vmul.f32 1.0, %v2371
    %v2373 = vrcp.pop %v2356
    %v2374 = vmul.f32 %v2356, %v2373
    %v2375 = vsub.f32 1.0, %v2374
    %v2376 = vmul.f32 %v2373, %v2375
    %v2377 = vadd.f32 %v2373, %v2376
    %vm2378 = vweird.f32 %v2356
    %vm2379 = vweird.f32 %v2373
    %vm2380 = vmor %vm2378, %vm2379
    %v2381 = vsel %vm2380, %v2373, %v2377
    %v2382 = vand.u32 2147483647, %v2356
    %vm2383 = vcmp.eq.f32.partialorder %v2382, 8.507059e+37
    %v2384 = vand.u32 %v2356, 2147483648
    %v2385 = vor.u32 1.1754944e-38, %v2384
    %v2386 = vsel %vm2383, %v2385, %v2381
    %v2387 = vmul.f32 1.0, %v2386
    %v2388 = vrcp.pop %v2357
    %v2389 = vmul.f32 %v2357, %v2388
    %v2390 = vsub.f32 1.0, %v2389
    %v2391 = vmul.f32 %v2388, %v2390
    %v2392 = vadd.f32 %v2388, %v2391
    %vm2393 = vweird.f32 %v2357
    %vm2394 = vweird.f32 %v2388
    %vm2395 = vmor %vm2393, %vm2394
    %v2396 = vsel %vm2395, %v2388, %v2392
    %v2397 = vand.u32 2147483647, %v2357
    %vm2398 = vcmp.eq.f32.partialorder %v2397, 8.507059e+37
    %v2399 = vand.u32 %v2357, 2147483648
    %v2400 = vor.u32 1.1754944e-38, %v2399
    %v2401 = vsel %vm2398, %v2400, %v2396
    %v2402 = vmul.f32 1.0, %v2401
    %v2403 = vtanh.pop %v2345
    %v2405 = vrot.slane %v2274, 6
    %v2407 = vmul.f32 %v2387, %v2405
    %v2408 = vmul.f32 %v2372, %v2403
    %v2409 = vadd.f32 %v2407, %v2408
    %v2410 = vtanh.pop %v2409
    %v2411 = vmul.f32 %v2402, %v2410
    %v2412 = vpack.c.bf16 %v2411, %v2411
    %v2414 = vrot.slane %v2412, 1
    %2416 = vmatpush.bf16.msra.mxu0 %v511
    %2417 = vmatpush.bf16.msra.mxu0 %v507
    %2418 = vmatpush.bf16.msra.mxu0 %v503
    %2419 = vmatpush.bf16.msra.mxu0 %v499
    %2420 = vmatpush.bf16.msra.mxu0 %v495
    %2421 = vmatpush.bf16.msra.mxu0 %v491
    %2422 = vmatpush.bf16.msra.mxu0 %v487
    %2423 = vmatpush.bf16.msra.mxu0 %v483
    %2424 = vmatmul.bf16.gmra.mxu0 %v2414
    %v2425 = vpop.f32.mrf.mxu0
    %v2426 = vadd.f32 0.0, %v2425
    %v2427 = vpop.f32.mrf.mxu0
    %2428 = vdwg.mxu0
    %2429 = vmatpush.bf16.msra.mxu0 %v512
    %2430 = vmatpush.bf16.msra.mxu0 %v508
    %2431 = vmatpush.bf16.msra.mxu0 %v504
    %2432 = vmatpush.bf16.msra.mxu0 %v500
    %2433 = vmatpush.bf16.msra.mxu0 %v496
    %2434 = vmatpush.bf16.msra.mxu0 %v492
    %2435 = vmatpush.bf16.msra.mxu0 %v488
    %2436 = vmatpush.bf16.msra.mxu0 %v484
    %2437 = vmatmul.bf16.gmra.mxu0 %v2414
    %v2438 = vpop.f32.mrf.mxu0
    %v2439 = vadd.f32 0.0, %v2438
    %v2440 = vpop.f32.mrf.mxu0
    %2441 = vdwg.mxu0
    %2442 = vmatpush.bf16.msra.mxu0 %v513
    %2443 = vmatpush.bf16.msra.mxu0 %v509
    %2444 = vmatpush.bf16.msra.mxu0 %v505
    %2445 = vmatpush.bf16.msra.mxu0 %v501
    %2446 = vmatpush.bf16.msra.mxu0 %v497
    %2447 = vmatpush.bf16.msra.mxu0 %v493
    %2448 = vmatpush.bf16.msra.mxu0 %v489
    %2449 = vmatpush.bf16.msra.mxu0 %v485
    %2450 = vmatmul.bf16.gmra.mxu0 %v2414
    %v2451 = vpop.f32.mrf.mxu0
    %v2452 = vadd.f32 0.0, %v2451
    %v2453 = vpop.f32.mrf.mxu0
    %2454 = vdwg.mxu0
    %2455 = vmatpush.bf16.msra.mxu0 %v514
    %2456 = vmatpush.bf16.msra.mxu0 %v510
    %2457 = vmatpush.bf16.msra.mxu0 %v506
    %2458 = vmatpush.bf16.msra.mxu0 %v502
    %2459 = vmatpush.bf16.msra.mxu0 %v498
    %2460 = vmatpush.bf16.msra.mxu0 %v494
    %2461 = vmatpush.bf16.msra.mxu0 %v490
    %2462 = vmatpush.bf16.msra.mxu0 %v486
    %2463 = vmatmul.bf16.gmra.mxu0 %v2414
    %v2464 = vpop.f32.mrf.mxu0
    %v2465 = vadd.f32 0.0, %v2464
    %v2466 = vpop.f32.mrf.mxu0
    %2467 = vdwg.mxu0
    %v2472 = vrot.slane %v2426, 4
    %v2473 = vrot.slane %v2439, 4
    %v2474 = vrot.slane %v2452, 4
    %v2475 = vrot.slane %v2465, 4
    %v2480 = vadd.f32 %v328, %v2472
    %v2481 = vadd.f32 %v347, %v2473
    %v2482 = vadd.f32 %v366, %v2474
    %v2483 = vadd.f32 %v385, %v2475
    %v2484 = vxor.u32 %v2480, 2147483648
    %v2485 = vxor.u32 %v2481, 2147483648
    %v2486 = vxor.u32 %v2482, 2147483648
    %v2487 = vmul.f32 %v2484, 1.442695
    %v2488 = vpow.pop %v2487
    %v2489 = vmul.f32 %v2485, 1.442695
    %v2490 = vpow.pop %v2489
    %v2491 = vmul.f32 %v2486, 1.442695
    %v2492 = vpow.pop %v2491
    %v2493 = vadd.f32 %v2488, 1.0
    %v2494 = vadd.f32 %v2490, 1.0
    %v2495 = vadd.f32 %v2492, 1.0
    %v2496 = vrcp.pop %v2493
    %v2497 = vmul.f32 %v2493, %v2496
    %v2498 = vsub.f32 1.0, %v2497
    %v2499 = vmul.f32 %v2496, %v2498
    %v2500 = vadd.f32 %v2496, %v2499
    %vm2501 = vweird.f32 %v2493
    %vm2502 = vweird.f32 %v2496
    %vm2503 = vmor %vm2501, %vm2502
    %v2504 = vsel %vm2503, %v2496, %v2500
    %v2505 = vand.u32 2147483647, %v2493
    %vm2506 = vcmp.eq.f32.partialorder %v2505, 8.507059e+37
    %v2507 = vand.u32 %v2493, 2147483648
    %v2508 = vor.u32 1.1754944e-38, %v2507
    %v2509 = vsel %vm2506, %v2508, %v2504
    %v2510 = vmul.f32 1.0, %v2509
    %v2511 = vrcp.pop %v2494
    %v2512 = vmul.f32 %v2494, %v2511
    %v2513 = vsub.f32 1.0, %v2512
    %v2514 = vmul.f32 %v2511, %v2513
    %v2515 = vadd.f32 %v2511, %v2514
    %vm2516 = vweird.f32 %v2494
    %vm2517 = vweird.f32 %v2511
    %vm2518 = vmor %vm2516, %vm2517
    %v2519 = vsel %vm2518, %v2511, %v2515
    %v2520 = vand.u32 2147483647, %v2494
    %vm2521 = vcmp.eq.f32.partialorder %v2520, 8.507059e+37
    %v2522 = vand.u32 %v2494, 2147483648
    %v2523 = vor.u32 1.1754944e-38, %v2522
    %v2524 = vsel %vm2521, %v2523, %v2519
    %v2525 = vmul.f32 1.0, %v2524
    %v2526 = vrcp.pop %v2495
    %v2527 = vmul.f32 %v2495, %v2526
    %v2528 = vsub.f32 1.0, %v2527
    %v2529 = vmul.f32 %v2526, %v2528
    %v2530 = vadd.f32 %v2526, %v2529
    %vm2531 = vweird.f32 %v2495
    %vm2532 = vweird.f32 %v2526
    %vm2533 = vmor %vm2531, %vm2532
    %v2534 = vsel %vm2533, %v2526, %v2530
    %v2535 = vand.u32 2147483647, %v2495
    %vm2536 = vcmp.eq.f32.partialorder %v2535, 8.507059e+37
    %v2537 = vand.u32 %v2495, 2147483648
    %v2538 = vor.u32 1.1754944e-38, %v2537
    %v2539 = vsel %vm2536, %v2538, %v2534
    %v2540 = vmul.f32 1.0, %v2539
    %v2541 = vtanh.pop %v2483
    %v2543 = vrot.slane %v2409, 6
    %v2545 = vmul.f32 %v2525, %v2543
    %v2546 = vmul.f32 %v2510, %v2541
    %v2547 = vadd.f32 %v2545, %v2546
    %v2548 = vtanh.pop %v2547
    %v2549 = vmul.f32 %v2540, %v2548
    %v2550 = vpack.c.bf16 %v2549, %v2549
    %v2552 = vrot.slane %v2550, 2
    %2554 = vmatpush.bf16.msra.mxu0 %v511
    %2555 = vmatpush.bf16.msra.mxu0 %v507
    %2556 = vmatpush.bf16.msra.mxu0 %v503
    %2557 = vmatpush.bf16.msra.mxu0 %v499
    %2558 = vmatpush.bf16.msra.mxu0 %v495
    %2559 = vmatpush.bf16.msra.mxu0 %v491
    %2560 = vmatpush.bf16.msra.mxu0 %v487
    %2561 = vmatpush.bf16.msra.mxu0 %v483
    %2562 = vmatmul.bf16.gmra.mxu0 %v2552
    %v2563 = vpop.f32.mrf.mxu0
    %v2564 = vadd.f32 0.0, %v2563
    %v2565 = vpop.f32.mrf.mxu0
    %2566 = vdwg.mxu0
    %2567 = vmatpush.bf16.msra.mxu0 %v512
    %2568 = vmatpush.bf16.msra.mxu0 %v508
    %2569 = vmatpush.bf16.msra.mxu0 %v504
    %2570 = vmatpush.bf16.msra.mxu0 %v500
    %2571 = vmatpush.bf16.msra.mxu0 %v496
    %2572 = vmatpush.bf16.msra.mxu0 %v492
    %2573 = vmatpush.bf16.msra.mxu0 %v488
    %2574 = vmatpush.bf16.msra.mxu0 %v484
    %2575 = vmatmul.bf16.gmra.mxu0 %v2552
    %v2576 = vpop.f32.mrf.mxu0
    %v2577 = vadd.f32 0.0, %v2576
    %v2578 = vpop.f32.mrf.mxu0
    %2579 = vdwg.mxu0
    %2580 = vmatpush.bf16.msra.mxu0 %v513
    %2581 = vmatpush.bf16.msra.mxu0 %v509
    %2582 = vmatpush.bf16.msra.mxu0 %v505
    %2583 = vmatpush.bf16.msra.mxu0 %v501
    %2584 = vmatpush.bf16.msra.mxu0 %v497
    %2585 = vmatpush.bf16.msra.mxu0 %v493
    %2586 = vmatpush.bf16.msra.mxu0 %v489
    %2587 = vmatpush.bf16.msra.mxu0 %v485
    %2588 = vmatmul.bf16.gmra.mxu0 %v2552
    %v2589 = vpop.f32.mrf.mxu0
    %v2590 = vadd.f32 0.0, %v2589
    %v2591 = vpop.f32.mrf.mxu0
    %2592 = vdwg.mxu0
    %2593 = vmatpush.bf16.msra.mxu0 %v514
    %2594 = vmatpush.bf16.msra.mxu0 %v510
    %2595 = vmatpush.bf16.msra.mxu0 %v506
    %2596 = vmatpush.bf16.msra.mxu0 %v502
    %2597 = vmatpush.bf16.msra.mxu0 %v498
    %2598 = vmatpush.bf16.msra.mxu0 %v494
    %2599 = vmatpush.bf16.msra.mxu0 %v490
    %2600 = vmatpush.bf16.msra.mxu0 %v486
    %2601 = vmatmul.bf16.gmra.mxu0 %v2552
    %v2602 = vpop.f32.mrf.mxu0
    %v2603 = vadd.f32 0.0, %v2602
    %v2604 = vpop.f32.mrf.mxu0
    %2605 = vdwg.mxu0
    %v2610 = vrot.slane %v2564, 2
    %v2611 = vrot.slane %v2577, 2
    %v2612 = vrot.slane %v2590, 2
    %v2613 = vrot.slane %v2603, 2
    %v2618 = vadd.f32 %v328, %v2610
    %v2619 = vadd.f32 %v347, %v2611
    %v2620 = vadd.f32 %v366, %v2612
    %v2621 = vadd.f32 %v385, %v2613
    %v2622 = vxor.u32 %v2618, 2147483648
    %v2623 = vxor.u32 %v2619, 2147483648
    %v2624 = vxor.u32 %v2620, 2147483648
    %v2625 = vmul.f32 %v2622, 1.442695
    %v2626 = vpow.pop %v2625
    %v2627 = vmul.f32 %v2623, 1.442695
    %v2628 = vpow.pop %v2627
    %v2629 = vmul.f32 %v2624, 1.442695
    %v2630 = vpow.pop %v2629
    %v2631 = vadd.f32 %v2626, 1.0
    %v2632 = vadd.f32 %v2628, 1.0
    %v2633 = vadd.f32 %v2630, 1.0
    %v2634 = vrcp.pop %v2631
    %v2635 = vmul.f32 %v2631, %v2634
    %v2636 = vsub.f32 1.0, %v2635
    %v2637 = vmul.f32 %v2634, %v2636
    %v2638 = vadd.f32 %v2634, %v2637
    %vm2639 = vweird.f32 %v2631
    %vm2640 = vweird.f32 %v2634
    %vm2641 = vmor %vm2639, %vm2640
    %v2642 = vsel %vm2641, %v2634, %v2638
    %v2643 = vand.u32 2147483647, %v2631
    %vm2644 = vcmp.eq.f32.partialorder %v2643, 8.507059e+37
    %v2645 = vand.u32 %v2631, 2147483648
    %v2646 = vor.u32 1.1754944e-38, %v2645
    %v2647 = vsel %vm2644, %v2646, %v2642
    %v2648 = vmul.f32 1.0, %v2647
    %v2649 = vrcp.pop %v2632
    %v2650 = vmul.f32 %v2632, %v2649
    %v2651 = vsub.f32 1.0, %v2650
    %v2652 = vmul.f32 %v2649, %v2651
    %v2653 = vadd.f32 %v2649, %v2652
    %vm2654 = vweird.f32 %v2632
    %vm2655 = vweird.f32 %v2649
    %vm2656 = vmor %vm2654, %vm2655
    %v2657 = vsel %vm2656, %v2649, %v2653
    %v2658 = vand.u32 2147483647, %v2632
    %vm2659 = vcmp.eq.f32.partialorder %v2658, 8.507059e+37
    %v2660 = vand.u32 %v2632, 2147483648
    %v2661 = vor.u32 1.1754944e-38, %v2660
    %v2662 = vsel %vm2659, %v2661, %v2657
    %v2663 = vmul.f32 1.0, %v2662
    %v2664 = vrcp.pop %v2633
    %v2665 = vmul.f32 %v2633, %v2664
    %v2666 = vsub.f32 1.0, %v2665
    %v2667 = vmul.f32 %v2664, %v2666
    %v2668 = vadd.f32 %v2664, %v2667
    %vm2669 = vweird.f32 %v2633
    %vm2670 = vweird.f32 %v2664
    %vm2671 = vmor %vm2669, %vm2670
    %v2672 = vsel %vm2671, %v2664, %v2668
    %v2673 = vand.u32 2147483647, %v2633
    %vm2674 = vcmp.eq.f32.partialorder %v2673, 8.507059e+37
    %v2675 = vand.u32 %v2633, 2147483648
    %v2676 = vor.u32 1.1754944e-38, %v2675
    %v2677 = vsel %vm2674, %v2676, %v2672
    %v2678 = vmul.f32 1.0, %v2677
    %v2679 = vtanh.pop %v2621
    %v2681 = vrot.slane %v2547, 6
    %v2683 = vmul.f32 %v2663, %v2681
    %v2684 = vmul.f32 %v2648, %v2679
    %v2685 = vadd.f32 %v2683, %v2684
    %v2686 = vtanh.pop %v2685
    %v2687 = vmul.f32 %v2678, %v2686
    %v2688 = vld [vmem:[%s1] sm:$0xff]
    %v2689 = vld [vmem:[%s1 + $0x8] sm:$0xff]
    %v2690 = vld [vmem:[%s1 + $0x10] sm:$0x3]
    %v2691 = vpack.c.bf16 %v2689, %v2688
    %v2692 = vpack.c.bf16 %v2690, %v2690
    %v2693 = vld [vmem:[%s5] sm:$0xf]
    %v2694 = vld [vmem:[%s5 + $0x4] sm:$0xf]
    %v2695 = vld [vmem:[%s5 + $0x8] sm:$0xf]
    %v2696 = vld [vmem:[%s5 + $0xc] sm:$0xf]
    %v2697 = vld [vmem:[%s5 + $0x10] sm:$0xf]
    %v2698 = vld [vmem:[%s5 + $0x14] sm:$0xf]
    %v2699 = vld [vmem:[%s5 + $0x18] sm:$0xf]
    %v2700 = vld [vmem:[%s5 + $0x1c] sm:$0xf]
    %v2709 = vunpack.c.l.b16 %v2693
    %v2710 = vunpack.c.l.b16 %v2694
    %v2711 = vunpack.c.l.b16 %v2695
    %v2712 = vunpack.c.l.b16 %v2696
    %v2713 = vunpack.c.l.b16 %v2697
    %v2714 = vunpack.c.l.b16 %v2698
    %v2715 = vunpack.c.l.b16 %v2699
    %v2716 = vunpack.c.l.b16 %v2700
    %v2717 = vpack.c.b16 %v2710, %v2709
    %v2718 = vpack.c.b16 %v2712, %v2711
    %v2719 = vpack.c.b16 %v2714, %v2713
    %v2720 = vpack.c.b16 %v2716, %v2715
    %vm2725 = vcmask 523264
    %v2727 = vsel %vm2725, %v2691, 0
    %v2730 = vsel %vm2725, %v2692, 0
    %2732 = vmatpush.bf16.msra.mxu0 0
    %2733 = vmatpush.bf16.msra.mxu0 0
    %2734 = vmatpush.bf16.msra.mxu0 0
    %2735 = vmatpush.bf16.msra.mxu0 0
    %2736 = vmatpush.bf16.msra.mxu0 %v2720
    %2737 = vmatpush.bf16.msra.mxu0 %v2719
    %2738 = vmatpush.bf16.msra.mxu0 %v2718
    %2739 = vmatpush.bf16.msra.mxu0 %v2717
    %2740 = vmatmul.bf16.gmra.mxu0 %v2727
    %v2741 = vpop.f32.mrf.mxu0
    %v2742 = vadd.f32 0.0, %v2741
    %v2743 = vpop.f32.mrf.mxu0
    %v2744 = vadd.f32 0.0, %v2743
    %2745 = vmatmul.bf16.gmra.mxu0 %v2730
    %v2746 = vpop.f32.mrf.mxu0
    %v2747 = vadd.f32 0.0, %v2746
    %v2748 = vpop.f32.mrf.mxu0
    %2749 = vdwg.mxu0
    %v2750 = vld [vmem:[#allocation2] sm:$0x1]
    %v2752 = vperm.slane %v2750, 0
    %v2754 = vmul.f32 %v2742, %v2752
    %v2755 = vmul.f32 %v2744, %v2752
    %v2756 = vmul.f32 %v2747, %v2752
    %v2757 = vld [vmem:[#allocation5] sm:$0x1]
    %v2759 = vperm.slane %v2757, 0
    %v2761 = vadd.f32 %v2754, %v2759
    %v2762 = vadd.f32 %v2755, %v2759
    %v2763 = vadd.f32 %v2756, %v2759
    %v2764 = vmax.f32 %v2761, 0.0
    %v2765 = vmax.f32 %v2762, 0.0
    %v2766 = vmax.f32 %v2763, 0.0
    %vm2767 = vcmask 1040384
    %v2768 = vsel %vm2767, %v2765, 0.0
    %v2769 = vadd.f32 %v2764, %v2768
    %v2770 = vrot.slane %v2769, 4
    %v2771 = vadd.f32 %v2769, %v2770
    %v2772 = vrot.slane %v2771, 2
    %v2773 = vadd.f32 %v2771, %v2772
    %v2774 = vrot.slane %v2773, 1
    %v2775 = vadd.f32 %v2773, %v2774
    %v2776 = vrcp.pop 9.0
    %v2777 = vmul.f32 9.0, %v2776
    %v2778 = vsub.f32 1.0, %v2777
    %v2779 = vmul.f32 %v2776, %v2778
    %v2780 = vadd.f32 %v2776, %v2779
    %vm2781 = vweird.f32 %v2776
    %v2782 = vsel %vm2781, %v2776, %v2780
    %v2783 = vmul.f32 %v2775, %v2782
    %vm2786 = vcmask 1046528
    %v2787 = vrot.slane %v2765, 1
    %v2788 = vrot.slane %v2766, 1
    %v2789 = vsel %vm2786, %v2787, %v2788
    %v2792 = vsel %vm2767, %v2788, 0.0
    %v2793 = vadd.f32 %v2789, %v2792
    %v2794 = vrot.slane %v2793, 4
    %v2795 = vadd.f32 %v2793, %v2794
    %v2796 = vrot.slane %v2795, 2
    %v2797 = vadd.f32 %v2795, %v2796
    %v2798 = vrot.slane %v2797, 1
    %v2799 = vadd.f32 %v2797, %v2798
    %v2800 = vmul.f32 %v2799, %v2782
    %v2801 = vsel %vm2767, %v2783, %v2800
    %v2802 = vpack.c.bf16 %v2801, %v2801
    %v2803 = vld [vmem:[#allocation7] sm:$0xf]
    %v2804 = vld [vmem:[#allocation7 + $0x4] sm:$0xf]
    %v2805 = vld [vmem:[#allocation7 + $0x8] sm:$0xf]
    %v2806 = vld [vmem:[#allocation7 + $0xc] sm:$0xf]
    %v2807 = vld [vmem:[#allocation7 + $0x10] sm:$0xf]
    %v2808 = vld [vmem:[#allocation7 + $0x14] sm:$0xf]
    %v2809 = vld [vmem:[#allocation7 + $0x18] sm:$0xf]
    %v2810 = vld [vmem:[#allocation7 + $0x1c] sm:$0xf]
    %v2811 = vld [vmem:[#allocation7 + $0x20] sm:$0xf]
    %v2812 = vld [vmem:[#allocation7 + $0x24] sm:$0xf]
    %v2813 = vld [vmem:[#allocation7 + $0x28] sm:$0xf]
    %v2814 = vld [vmem:[#allocation7 + $0x2c] sm:$0xf]
    %v2815 = vld [vmem:[#allocation7 + $0x30] sm:$0xf]
    %v2816 = vld [vmem:[#allocation7 + $0x34] sm:$0xf]
    %v2817 = vld [vmem:[#allocation7 + $0x38] sm:$0xf]
    %v2818 = vld [vmem:[#allocation7 + $0x3c] sm:$0xf]
    %v2835 = vunpack.c.l.b16 %v2803
    %v2836 = vunpack.c.l.b16 %v2804
    %v2837 = vunpack.c.l.b16 %v2805
    %v2838 = vunpack.c.l.b16 %v2806
    %v2839 = vunpack.c.l.b16 %v2807
    %v2840 = vunpack.c.l.b16 %v2808
    %v2841 = vunpack.c.l.b16 %v2809
    %v2842 = vunpack.c.l.b16 %v2810
    %v2843 = vunpack.c.l.b16 %v2811
    %v2844 = vunpack.c.l.b16 %v2812
    %v2845 = vunpack.c.l.b16 %v2813
    %v2846 = vunpack.c.l.b16 %v2814
    %v2847 = vunpack.c.l.b16 %v2815
    %v2848 = vunpack.c.l.b16 %v2816
    %v2849 = vunpack.c.l.b16 %v2817
    %v2850 = vunpack.c.l.b16 %v2818
    %v2851 = vpack.c.b16 %v2836, %v2835
    %v2852 = vpack.c.b16 %v2838, %v2837
    %v2853 = vpack.c.b16 %v2840, %v2839
    %v2854 = vpack.c.b16 %v2842, %v2841
    %v2855 = vpack.c.b16 %v2844, %v2843
    %v2856 = vpack.c.b16 %v2846, %v2845
    %v2857 = vpack.c.b16 %v2848, %v2847
    %v2858 = vpack.c.b16 %v2850, %v2849
    %2867 = vmatpush.bf16.msra.mxu0 %v2858
    %2868 = vmatpush.bf16.msra.mxu0 %v2857
    %2869 = vmatpush.bf16.msra.mxu0 %v2856
    %2870 = vmatpush.bf16.msra.mxu0 %v2855
    %2871 = vmatpush.bf16.msra.mxu0 %v2854
    %2872 = vmatpush.bf16.msra.mxu0 %v2853
    %2873 = vmatpush.bf16.msra.mxu0 %v2852
    %2874 = vmatpush.bf16.msra.mxu0 %v2851
    %2875 = vmatmul.bf16.gmra.mxu0 %v2802
    %v2876 = vpop.f32.mrf.mxu0
    %v2877 = vadd.f32 0.0, %v2876
    %v2878 = vpop.f32.mrf.mxu0
    %2879 = vdwg.mxu0
    %v2880 = vmax.f32 %v2877, 0.0
    %v2881 = vpack.c.bf16 %v2880, %v2880
    %v2882 = vld [vmem:[%s9] sm:$0xf]
    %v2884 = vsel %vm291, %v2881, 0
    %v2887 = vsel %vm298, %v2882, 0
    %2889 = vmatpush.bf16.msra.mxu0 0
    %2890 = vmatpush.bf16.msra.mxu0 0
    %2891 = vmatpush.bf16.msra.mxu0 0
    %2892 = vmatpush.bf16.msra.mxu0 0
    %2893 = vmatpush.bf16.msra.mxu0 0
    %2894 = vmatpush.bf16.msra.mxu0 0
    %2895 = vmatpush.bf16.msra.mxu0 0
    %2896 = vmatpush.bf16.msra.mxu0 %v2887
    %2897 = vmatmul.bf16.gmra.mxu0 %v2884
    %v2898 = vpop.f32.mrf.mxu0
    %v2899 = vadd.f32 0.0, %v2898
    %v2900 = vpop.f32.mrf.mxu0
    %2901 = vdwg.mxu0
    %v2902 = vxor.u32 %v2899, 2147483648
    %v2903 = vmul.f32 %v2902, 1.442695
    %v2904 = vpow.pop %v2903
    %v2905 = vadd.f32 %v2904, 1.0
    %v2906 = vrcp.pop %v2905
    %v2907 = vmul.f32 %v2905, %v2906
    %v2908 = vsub.f32 1.0, %v2907
    %v2909 = vmul.f32 %v2906, %v2908
    %v2910 = vadd.f32 %v2906, %v2909
    %vm2911 = vweird.f32 %v2905
    %vm2912 = vweird.f32 %v2906
    %vm2913 = vmor %vm2911, %vm2912
    %v2914 = vsel %vm2913, %v2906, %v2910
    %v2915 = vand.u32 2147483647, %v2905
    %vm2916 = vcmp.eq.f32.partialorder %v2915, 8.507059e+37
    %v2917 = vand.u32 %v2905, 2147483648
    %v2918 = vor.u32 1.1754944e-38, %v2917
    %v2919 = vsel %vm2916, %v2918, %v2914
    %v2920 = vmul.f32 1.0, %v2919
    %v2921 = vperm.slane %v2920, 0
    %v2922 = vmul.f32 %v2764, %v2921
    %v2923 = vmul.f32 %v2765, %v2921
    %v2924 = vperm.slane %v2920, 1
    %v2925 = vmul.f32 %v2765, %v2924
    %v2926 = vmul.f32 %v2766, %v2924
    %v2927 = vsel %vm2767, %v2923, %v2925
    %v2929 = vrot.slane %v2922, 1
    %v2931 = vrot.slane %v2922, 2
    %v2933 = vrot.slane %v2922, 3
    %v2936 = vrot.slane %v2922, 4
    %v2937 = vrot.slane %v2927, 4
    %v2938 = vsel %vm298, %v2936, %v2937
    %v2940 = vrot.slane %v2927, 1
    %v2941 = vrot.slane %v2927, 2
    %vm2943 = vcmask 1044480
    %v2944 = vrot.slane %v2927, 3
    %v2945 = vrot.slane %v2926, 3
    %v2946 = vsel %vm2943, %v2944, %v2945
    %v2947 = vrot.slane %v2926, 4
    %v2948 = vsel %vm298, %v2937, %v2947
    %v2949 = vrot.slane %v2940, 4
    %v2950 = vrot.slane %v2941, 4
    %v2951 = vrot.slane %v2946, 4
    %v2952 = vrot.slane %v2948, 4
    %v2958 = vsel %vm2943, %v2922, %v2937
    %v2959 = vsel %vm2943, %v2929, %v2949
    %v2960 = vsel %vm2943, %v2931, %v2950
    %v2961 = vsel %vm2943, %v2933, %v2951
    %v2962 = vsel %vm2943, %v2938, %v2952
    %v2963 = vpack.c.bf16 %v2937, %v2958
    %v2964 = vpack.c.bf16 %v2949, %v2959
    %v2965 = vpack.c.bf16 %v2950, %v2960
    %v2966 = vpack.c.bf16 %v2951, %v2961
    %v2967 = vpack.c.bf16 %v2952, %v2962
    %v2968 = vld [vmem:[%s10] sm:$0xff]
    %v2969 = vld [vmem:[%s10 + $0x8] sm:$0xff]
    %v2970 = vld [vmem:[%s10 + $0x10] sm:$0xff]
    %v2971 = vld [vmem:[%s10 + $0x18] sm:$0xff]
    %v2972 = vld [vmem:[%s10 + $0x20] sm:$0xff]
    %v2973 = vld [vmem:[%s10 + $0x28] sm:$0xff]
    %v2974 = vld [vmem:[%s10 + $0x30] sm:$0xff]
    %v2975 = vld [vmem:[%s10 + $0x38] sm:$0xff]
    %v2976 = vld [vmem:[%s10 + $0x40] sm:$0xff]
    %v2977 = vld [vmem:[%s10 + $0x48] sm:$0xff]
    %v2978 = vld [vmem:[%s10 + $0x50] sm:$0xff]
    %v2979 = vld [vmem:[%s10 + $0x58] sm:$0xff]
    %v2980 = vld [vmem:[%s10 + $0x60] sm:$0xff]
    %v2981 = vld [vmem:[%s10 + $0x68] sm:$0xff]
    %v2982 = vld [vmem:[%s10 + $0x70] sm:$0xff]
    %v2983 = vld [vmem:[%s10 + $0x78] sm:$0xff]
    %v2984 = vld [vmem:[%s10 + $0x80] sm:$0xff]
    %v2985 = vld [vmem:[%s10 + $0x88] sm:$0xff]
    %v2986 = vld [vmem:[%s10 + $0x90] sm:$0xff]
    %v2987 = vld [vmem:[%s10 + $0x98] sm:$0xff]
    %v2988 = vld [vmem:[%s10 + $0xa0] sm:$0xff]
    %v2989 = vld [vmem:[%s10 + $0xa8] sm:$0xff]
    %v2990 = vld [vmem:[%s10 + $0xb0] sm:$0xff]
    %v2991 = vld [vmem:[%s10 + $0xb8] sm:$0xff]
    %v2992 = vld [vmem:[%s10 + $0xc0] sm:$0xff]
    %v2993 = vld [vmem:[%s10 + $0xc8] sm:$0xff]
    %v2994 = vld [vmem:[%s10 + $0xd0] sm:$0xff]
    %v2995 = vld [vmem:[%s10 + $0xd8] sm:$0xff]
    %v2996 = vld [vmem:[%s10 + $0xe0] sm:$0xff]
    %v2997 = vld [vmem:[%s10 + $0xe8] sm:$0xff]
    %v2998 = vld [vmem:[%s10 + $0xf0] sm:$0xff]
    %v2999 = vld [vmem:[%s10 + $0xf8] sm:$0xff]
    %v3000 = vld [vmem:[%s10 + $0x100] sm:$0xff]
    %v3001 = vld [vmem:[%s10 + $0x108] sm:$0xff]
    %v3002 = vld [vmem:[%s10 + $0x110] sm:$0xff]
    %v3003 = vld [vmem:[%s10 + $0x118] sm:$0xff]
    %v3004 = vld [vmem:[%s10 + $0x120] sm:$0xff]
    %v3005 = vld [vmem:[%s10 + $0x128] sm:$0xff]
    %v3006 = vld [vmem:[%s10 + $0x130] sm:$0xff]
    %v3007 = vld [vmem:[%s10 + $0x138] sm:$0xff]
    %v3008 = vld [vmem:[%s10 + $0x140] sm:$0xff]
    %v3009 = vld [vmem:[%s10 + $0x148] sm:$0xff]
    %v3010 = vld [vmem:[%s10 + $0x150] sm:$0xff]
    %v3011 = vld [vmem:[%s10 + $0x158] sm:$0xff]
    %v3012 = vld [vmem:[%s10 + $0x160] sm:$0xff]
    %v3013 = vld [vmem:[%s10 + $0x168] sm:$0xff]
    %v3014 = vld [vmem:[%s10 + $0x170] sm:$0xff]
    %v3015 = vld [vmem:[%s10 + $0x178] sm:$0xff]
    %v3016 = vld [vmem:[%s10 + $0x180] sm:$0xff]
    %v3017 = vld [vmem:[%s10 + $0x188] sm:$0xff]
    %v3018 = vld [vmem:[%s10 + $0x190] sm:$0xff]
    %v3019 = vld [vmem:[%s10 + $0x198] sm:$0xff]
    %v3020 = vld [vmem:[%s10 + $0x1a0] sm:$0xff]
    %v3021 = vld [vmem:[%s10 + $0x1a8] sm:$0xff]
    %v3022 = vld [vmem:[%s10 + $0x1b0] sm:$0xff]
    %v3023 = vld [vmem:[%s10 + $0x1b8] sm:$0xff]
    %v3024 = vld [vmem:[%s10 + $0x1c0] sm:$0xff]
    %v3025 = vld [vmem:[%s10 + $0x1c8] sm:$0xff]
    %v3026 = vld [vmem:[%s10 + $0x1d0] sm:$0xff]
    %v3027 = vld [vmem:[%s10 + $0x1d8] sm:$0xff]
    %v3028 = vld [vmem:[%s10 + $0x1e0] sm:$0xff]
    %v3029 = vld [vmem:[%s10 + $0x1e8] sm:$0xff]
    %v3030 = vld [vmem:[%s10 + $0x1f0] sm:$0xff]
    %v3031 = vld [vmem:[%s10 + $0x1f8] sm:$0xff]
    %v3032 = vld [vmem:[%s10 + $0x200] sm:$0xff]
    %v3033 = vld [vmem:[%s10 + $0x208] sm:$0xff]
    %v3034 = vld [vmem:[%s10 + $0x210] sm:$0xff]
    %v3035 = vld [vmem:[%s10 + $0x218] sm:$0xff]
    %v3036 = vld [vmem:[%s10 + $0x220] sm:$0xff]
    %v3037 = vld [vmem:[%s10 + $0x228] sm:$0xff]
    %v3038 = vld [vmem:[%s10 + $0x230] sm:$0xff]
    %v3039 = vld [vmem:[%s10 + $0x238] sm:$0xff]
    %v3040 = vld [vmem:[%s10 + $0x240] sm:$0xff]
    %v3041 = vld [vmem:[%s10 + $0x248] sm:$0xff]
    %v3042 = vld [vmem:[%s10 + $0x250] sm:$0xff]
    %v3043 = vld [vmem:[%s10 + $0x258] sm:$0xff]
    %v3044 = vld [vmem:[%s10 + $0x260] sm:$0xff]
    %v3045 = vld [vmem:[%s10 + $0x268] sm:$0xff]
    %v3046 = vld [vmem:[%s10 + $0x270] sm:$0xff]
    %v3047 = vld [vmem:[%s10 + $0x278] sm:$0xff]
    %v3128 = vunpack.c.l.b16 %v2968
    %v3129 = vunpack.c.h.b16 %v2968
    %v3130 = vunpack.c.l.b16 %v2969
    %v3131 = vunpack.c.h.b16 %v2969
    %v3132 = vunpack.c.l.b16 %v2970
    %v3133 = vunpack.c.h.b16 %v2970
    %v3134 = vunpack.c.l.b16 %v2971
    %v3135 = vunpack.c.h.b16 %v2971
    %v3136 = vunpack.c.l.b16 %v2972
    %v3137 = vunpack.c.h.b16 %v2972
    %v3138 = vunpack.c.l.b16 %v2973
    %v3139 = vunpack.c.h.b16 %v2973
    %v3140 = vunpack.c.l.b16 %v2974
    %v3141 = vunpack.c.h.b16 %v2974
    %v3142 = vunpack.c.l.b16 %v2975
    %v3143 = vunpack.c.h.b16 %v2975
    %v3144 = vunpack.c.l.b16 %v2976
    %v3145 = vunpack.c.h.b16 %v2976
    %v3146 = vunpack.c.l.b16 %v2977
    %v3147 = vunpack.c.h.b16 %v2977
    %v3148 = vunpack.c.l.b16 %v2978
    %v3149 = vunpack.c.h.b16 %v2978
    %v3150 = vunpack.c.l.b16 %v2979
    %v3151 = vunpack.c.h.b16 %v2979
    %v3152 = vunpack.c.l.b16 %v2980
    %v3153 = vunpack.c.h.b16 %v2980
    %v3154 = vunpack.c.l.b16 %v2981
    %v3155 = vunpack.c.h.b16 %v2981
    %v3156 = vunpack.c.l.b16 %v2982
    %v3157 = vunpack.c.h.b16 %v2982
    %v3158 = vunpack.c.l.b16 %v2983
    %v3159 = vunpack.c.h.b16 %v2983
    %v3160 = vunpack.c.l.b16 %v2984
    %v3161 = vunpack.c.h.b16 %v2984
    %v3162 = vunpack.c.l.b16 %v2985
    %v3163 = vunpack.c.h.b16 %v2985
    %v3164 = vunpack.c.l.b16 %v2986
    %v3165 = vunpack.c.h.b16 %v2986
    %v3166 = vunpack.c.l.b16 %v2987
    %v3167 = vunpack.c.h.b16 %v2987
    %v3168 = vunpack.c.l.b16 %v2988
    %v3169 = vunpack.c.h.b16 %v2988
    %v3170 = vunpack.c.l.b16 %v2989
    %v3171 = vunpack.c.h.b16 %v2989
    %v3172 = vunpack.c.l.b16 %v2990
    %v3173 = vunpack.c.h.b16 %v2990
    %v3174 = vunpack.c.l.b16 %v2991
    %v3175 = vunpack.c.h.b16 %v2991
    %v3176 = vunpack.c.l.b16 %v2992
    %v3177 = vunpack.c.h.b16 %v2992
    %v3178 = vunpack.c.l.b16 %v2993
    %v3179 = vunpack.c.h.b16 %v2993
    %v3180 = vunpack.c.l.b16 %v2994
    %v3181 = vunpack.c.h.b16 %v2994
    %v3182 = vunpack.c.l.b16 %v2995
    %v3183 = vunpack.c.h.b16 %v2995
    %v3184 = vunpack.c.l.b16 %v2996
    %v3185 = vunpack.c.h.b16 %v2996
    %v3186 = vunpack.c.l.b16 %v2997
    %v3187 = vunpack.c.h.b16 %v2997
    %v3188 = vunpack.c.l.b16 %v2998
    %v3189 = vunpack.c.h.b16 %v2998
    %v3190 = vunpack.c.l.b16 %v2999
    %v3191 = vunpack.c.h.b16 %v2999
    %v3192 = vunpack.c.l.b16 %v3000
    %v3193 = vunpack.c.h.b16 %v3000
    %v3194 = vunpack.c.l.b16 %v3001
    %v3195 = vunpack.c.h.b16 %v3001
    %v3196 = vunpack.c.l.b16 %v3002
    %v3197 = vunpack.c.h.b16 %v3002
    %v3198 = vunpack.c.l.b16 %v3003
    %v3199 = vunpack.c.h.b16 %v3003
    %v3200 = vunpack.c.l.b16 %v3004
    %v3201 = vunpack.c.h.b16 %v3004
    %v3202 = vunpack.c.l.b16 %v3005
    %v3203 = vunpack.c.h.b16 %v3005
    %v3204 = vunpack.c.l.b16 %v3006
    %v3205 = vunpack.c.h.b16 %v3006
    %v3206 = vunpack.c.l.b16 %v3007
    %v3207 = vunpack.c.h.b16 %v3007
    %v3208 = vunpack.c.l.b16 %v3008
    %v3209 = vunpack.c.h.b16 %v3008
    %v3210 = vunpack.c.l.b16 %v3009
    %v3211 = vunpack.c.h.b16 %v3009
    %v3212 = vunpack.c.l.b16 %v3010
    %v3213 = vunpack.c.h.b16 %v3010
    %v3214 = vunpack.c.l.b16 %v3011
    %v3215 = vunpack.c.h.b16 %v3011
    %v3216 = vunpack.c.l.b16 %v3012
    %v3217 = vunpack.c.h.b16 %v3012
    %v3218 = vunpack.c.l.b16 %v3013
    %v3219 = vunpack.c.h.b16 %v3013
    %v3220 = vunpack.c.l.b16 %v3014
    %v3221 = vunpack.c.h.b16 %v3014
    %v3222 = vunpack.c.l.b16 %v3015
    %v3223 = vunpack.c.h.b16 %v3015
    %v3224 = vunpack.c.l.b16 %v3016
    %v3225 = vunpack.c.h.b16 %v3016
    %v3226 = vunpack.c.l.b16 %v3017
    %v3227 = vunpack.c.h.b16 %v3017
    %v3228 = vunpack.c.l.b16 %v3018
    %v3229 = vunpack.c.h.b16 %v3018
    %v3230 = vunpack.c.l.b16 %v3019
    %v3231 = vunpack.c.h.b16 %v3019
    %v3232 = vunpack.c.l.b16 %v3020
    %v3233 = vunpack.c.h.b16 %v3020
    %v3234 = vunpack.c.l.b16 %v3021
    %v3235 = vunpack.c.h.b16 %v3021
    %v3236 = vunpack.c.l.b16 %v3022
    %v3237 = vunpack.c.h.b16 %v3022
    %v3238 = vunpack.c.l.b16 %v3023
    %v3239 = vunpack.c.h.b16 %v3023
    %v3240 = vunpack.c.l.b16 %v3024
    %v3241 = vunpack.c.h.b16 %v3024
    %v3242 = vunpack.c.l.b16 %v3025
    %v3243 = vunpack.c.h.b16 %v3025
    %v3244 = vunpack.c.l.b16 %v3026
    %v3245 = vunpack.c.h.b16 %v3026
    %v3246 = vunpack.c.l.b16 %v3027
    %v3247 = vunpack.c.h.b16 %v3027
    %v3248 = vunpack.c.l.b16 %v3028
    %v3249 = vunpack.c.h.b16 %v3028
    %v3250 = vunpack.c.l.b16 %v3029
    %v3251 = vunpack.c.h.b16 %v3029
    %v3252 = vunpack.c.l.b16 %v3030
    %v3253 = vunpack.c.h.b16 %v3030
    %v3254 = vunpack.c.l.b16 %v3031
    %v3255 = vunpack.c.h.b16 %v3031
    %v3256 = vunpack.c.l.b16 %v3032
    %v3257 = vunpack.c.h.b16 %v3032
    %v3258 = vunpack.c.l.b16 %v3033
    %v3259 = vunpack.c.h.b16 %v3033
    %v3260 = vunpack.c.l.b16 %v3034
    %v3261 = vunpack.c.h.b16 %v3034
    %v3262 = vunpack.c.l.b16 %v3035
    %v3263 = vunpack.c.h.b16 %v3035
    %v3264 = vunpack.c.l.b16 %v3036
    %v3265 = vunpack.c.h.b16 %v3036
    %v3266 = vunpack.c.l.b16 %v3037
    %v3267 = vunpack.c.h.b16 %v3037
    %v3268 = vunpack.c.l.b16 %v3038
    %v3269 = vunpack.c.h.b16 %v3038
    %v3270 = vunpack.c.l.b16 %v3039
    %v3271 = vunpack.c.h.b16 %v3039
    %v3272 = vunpack.c.l.b16 %v3040
    %v3273 = vunpack.c.h.b16 %v3040
    %v3274 = vunpack.c.l.b16 %v3041
    %v3275 = vunpack.c.h.b16 %v3041
    %v3276 = vunpack.c.l.b16 %v3042
    %v3277 = vunpack.c.h.b16 %v3042
    %v3278 = vunpack.c.l.b16 %v3043
    %v3279 = vunpack.c.h.b16 %v3043
    %v3280 = vunpack.c.l.b16 %v3044
    %v3281 = vunpack.c.h.b16 %v3044
    %v3282 = vunpack.c.l.b16 %v3045
    %v3283 = vunpack.c.h.b16 %v3045
    %v3284 = vunpack.c.l.b16 %v3046
    %v3285 = vunpack.c.h.b16 %v3046
    %v3286 = vunpack.c.l.b16 %v3047
    %v3287 = vunpack.c.h.b16 %v3047
    %v3288 = vpack.c.b16 %v3130, %v3128
    %v3289 = vpack.c.b16 %v3131, %v3129
    %v3290 = vpack.c.b16 %v3134, %v3132
    %v3291 = vpack.c.b16 %v3135, %v3133
    %v3292 = vpack.c.b16 %v3138, %v3136
    %v3293 = vpack.c.b16 %v3139, %v3137
    %v3294 = vpack.c.b16 %v3142, %v3140
    %v3295 = vpack.c.b16 %v3143, %v3141
    %v3296 = vpack.c.b16 %v3146, %v3144
    %v3297 = vpack.c.b16 %v3147, %v3145
    %v3298 = vpack.c.b16 %v3150, %v3148
    %v3299 = vpack.c.b16 %v3151, %v3149
    %v3300 = vpack.c.b16 %v3154, %v3152
    %v3301 = vpack.c.b16 %v3155, %v3153
    %v3302 = vpack.c.b16 %v3158, %v3156
    %v3303 = vpack.c.b16 %v3159, %v3157
    %v3304 = vpack.c.b16 %v3162, %v3160
    %v3305 = vpack.c.b16 %v3163, %v3161
    %v3306 = vpack.c.b16 %v3166, %v3164
    %v3307 = vpack.c.b16 %v3167, %v3165
    %v3308 = vpack.c.b16 %v3170, %v3168
    %v3309 = vpack.c.b16 %v3171, %v3169
    %v3310 = vpack.c.b16 %v3174, %v3172
    %v3311 = vpack.c.b16 %v3175, %v3173
    %v3312 = vpack.c.b16 %v3178, %v3176
    %v3313 = vpack.c.b16 %v3179, %v3177
    %v3314 = vpack.c.b16 %v3182, %v3180
    %v3315 = vpack.c.b16 %v3183, %v3181
    %v3316 = vpack.c.b16 %v3186, %v3184
    %v3317 = vpack.c.b16 %v3187, %v3185
    %v3318 = vpack.c.b16 %v3190, %v3188
    %v3319 = vpack.c.b16 %v3191, %v3189
    %v3320 = vpack.c.b16 %v3194, %v3192
    %v3321 = vpack.c.b16 %v3195, %v3193
    %v3322 = vpack.c.b16 %v3198, %v3196
    %v3323 = vpack.c.b16 %v3199, %v3197
    %v3324 = vpack.c.b16 %v3202, %v3200
    %v3325 = vpack.c.b16 %v3203, %v3201
    %v3326 = vpack.c.b16 %v3206, %v3204
    %v3327 = vpack.c.b16 %v3207, %v3205
    %v3328 = vpack.c.b16 %v3210, %v3208
    %v3329 = vpack.c.b16 %v3211, %v3209
    %v3330 = vpack.c.b16 %v3214, %v3212
    %v3331 = vpack.c.b16 %v3215, %v3213
    %v3332 = vpack.c.b16 %v3218, %v3216
    %v3333 = vpack.c.b16 %v3219, %v3217
    %v3334 = vpack.c.b16 %v3222, %v3220
    %v3335 = vpack.c.b16 %v3223, %v3221
    %v3336 = vpack.c.b16 %v3226, %v3224
    %v3337 = vpack.c.b16 %v3227, %v3225
    %v3338 = vpack.c.b16 %v3230, %v3228
    %v3339 = vpack.c.b16 %v3231, %v3229
    %v3340 = vpack.c.b16 %v3234, %v3232
    %v3341 = vpack.c.b16 %v3235, %v3233
    %v3342 = vpack.c.b16 %v3238, %v3236
    %v3343 = vpack.c.b16 %v3239, %v3237
    %v3344 = vpack.c.b16 %v3242, %v3240
    %v3345 = vpack.c.b16 %v3243, %v3241
    %v3346 = vpack.c.b16 %v3246, %v3244
    %v3347 = vpack.c.b16 %v3247, %v3245
    %v3348 = vpack.c.b16 %v3250, %v3248
    %v3349 = vpack.c.b16 %v3251, %v3249
    %v3350 = vpack.c.b16 %v3254, %v3252
    %v3351 = vpack.c.b16 %v3255, %v3253
    %v3352 = vpack.c.b16 %v3258, %v3256
    %v3353 = vpack.c.b16 %v3259, %v3257
    %v3354 = vpack.c.b16 %v3262, %v3260
    %v3355 = vpack.c.b16 %v3263, %v3261
    %v3356 = vpack.c.b16 %v3266, %v3264
    %v3357 = vpack.c.b16 %v3267, %v3265
    %v3358 = vpack.c.b16 %v3270, %v3268
    %v3359 = vpack.c.b16 %v3271, %v3269
    %v3360 = vpack.c.b16 %v3274, %v3272
    %v3361 = vpack.c.b16 %v3275, %v3273
    %v3362 = vpack.c.b16 %v3278, %v3276
    %v3363 = vpack.c.b16 %v3279, %v3277
    %v3364 = vpack.c.b16 %v3282, %v3280
    %v3365 = vpack.c.b16 %v3283, %v3281
    %v3366 = vpack.c.b16 %v3286, %v3284
    %v3367 = vpack.c.b16 %v3287, %v3285
    %3448 = vmatpush.bf16.msra.mxu0 %v3302
    %3449 = vmatpush.bf16.msra.mxu0 %v3300
    %3450 = vmatpush.bf16.msra.mxu0 %v3298
    %3451 = vmatpush.bf16.msra.mxu0 %v3296
    %3452 = vmatpush.bf16.msra.mxu0 %v3294
    %3453 = vmatpush.bf16.msra.mxu0 %v3292
    %3454 = vmatpush.bf16.msra.mxu0 %v3290
    %3455 = vmatpush.bf16.msra.mxu0 %v3288
    %3456 = vmatmul.bf16.gmra.mxu0 %v2963
    %v3457 = vpop.f32.mrf.mxu0
    %v3458 = vadd.f32 0.0, %v3457
    %v3459 = vpop.f32.mrf.mxu0
    %v3460 = vadd.f32 0.0, %v3459
    %3461 = vdwg.mxu0
    %3462 = vmatpush.bf16.msra.mxu0 %v3318
    %3463 = vmatpush.bf16.msra.mxu0 %v3316
    %3464 = vmatpush.bf16.msra.mxu0 %v3314
    %3465 = vmatpush.bf16.msra.mxu0 %v3312
    %3466 = vmatpush.bf16.msra.mxu0 %v3310
    %3467 = vmatpush.bf16.msra.mxu0 %v3308
    %3468 = vmatpush.bf16.msra.mxu0 %v3306
    %3469 = vmatpush.bf16.msra.mxu0 %v3304
    %3470 = vmatmul.bf16.gmra.mxu0 %v2964
    %v3471 = vpop.f32.mrf.mxu0
    %v3472 = vadd.f32 %v3458, %v3471
    %v3473 = vpop.f32.mrf.mxu0
    %v3474 = vadd.f32 %v3460, %v3473
    %3475 = vdwg.mxu0
    %3476 = vmatpush.bf16.msra.mxu0 %v3334
    %3477 = vmatpush.bf16.msra.mxu0 %v3332
    %3478 = vmatpush.bf16.msra.mxu0 %v3330
    %3479 = vmatpush.bf16.msra.mxu0 %v3328
    %3480 = vmatpush.bf16.msra.mxu0 %v3326
    %3481 = vmatpush.bf16.msra.mxu0 %v3324
    %3482 = vmatpush.bf16.msra.mxu0 %v3322
    %3483 = vmatpush.bf16.msra.mxu0 %v3320
    %3484 = vmatmul.bf16.gmra.mxu0 %v2965
    %v3485 = vpop.f32.mrf.mxu0
    %v3486 = vadd.f32 %v3472, %v3485
    %v3487 = vpop.f32.mrf.mxu0
    %v3488 = vadd.f32 %v3474, %v3487
    %3489 = vdwg.mxu0
    %3490 = vmatpush.bf16.msra.mxu0 %v3350
    %3491 = vmatpush.bf16.msra.mxu0 %v3348
    %3492 = vmatpush.bf16.msra.mxu0 %v3346
    %3493 = vmatpush.bf16.msra.mxu0 %v3344
    %3494 = vmatpush.bf16.msra.mxu0 %v3342
    %3495 = vmatpush.bf16.msra.mxu0 %v3340
    %3496 = vmatpush.bf16.msra.mxu0 %v3338
    %3497 = vmatpush.bf16.msra.mxu0 %v3336
    %3498 = vmatmul.bf16.gmra.mxu0 %v2966
    %v3499 = vpop.f32.mrf.mxu0
    %v3500 = vadd.f32 %v3486, %v3499
    %v3501 = vpop.f32.mrf.mxu0
    %v3502 = vadd.f32 %v3488, %v3501
    %3503 = vdwg.mxu0
    %3504 = vmatpush.bf16.msra.mxu0 %v3366
    %3505 = vmatpush.bf16.msra.mxu0 %v3364
    %3506 = vmatpush.bf16.msra.mxu0 %v3362
    %3507 = vmatpush.bf16.msra.mxu0 %v3360
    %3508 = vmatpush.bf16.msra.mxu0 %v3358
    %3509 = vmatpush.bf16.msra.mxu0 %v3356
    %3510 = vmatpush.bf16.msra.mxu0 %v3354
    %3511 = vmatpush.bf16.msra.mxu0 %v3352
    %3512 = vmatmul.bf16.gmra.mxu0 %v2967
    %v3513 = vpop.f32.mrf.mxu0
    %v3514 = vadd.f32 %v3500, %v3513
    %v3515 = vpop.f32.mrf.mxu0
    %v3516 = vadd.f32 %v3502, %v3515
    %3517 = vdwg.mxu0
    %3518 = vmatpush.bf16.msra.mxu0 %v3303
    %3519 = vmatpush.bf16.msra.mxu0 %v3301
    %3520 = vmatpush.bf16.msra.mxu0 %v3299
    %3521 = vmatpush.bf16.msra.mxu0 %v3297
    %3522 = vmatpush.bf16.msra.mxu0 %v3295
    %3523 = vmatpush.bf16.msra.mxu0 %v3293
    %3524 = vmatpush.bf16.msra.mxu0 %v3291
    %3525 = vmatpush.bf16.msra.mxu0 %v3289
    %3526 = vmatmul.bf16.gmra.mxu0 %v2963
    %v3527 = vpop.f32.mrf.mxu0
    %v3528 = vadd.f32 0.0, %v3527
    %v3529 = vpop.f32.mrf.mxu0
    %v3530 = vadd.f32 0.0, %v3529
    %3531 = vdwg.mxu0
    %3532 = vmatpush.bf16.msra.mxu0 %v3319
    %3533 = vmatpush.bf16.msra.mxu0 %v3317
    %3534 = vmatpush.bf16.msra.mxu0 %v3315
    %3535 = vmatpush.bf16.msra.mxu0 %v3313
    %3536 = vmatpush.bf16.msra.mxu0 %v3311
    %3537 = vmatpush.bf16.msra.mxu0 %v3309
    %3538 = vmatpush.bf16.msra.mxu0 %v3307
    %3539 = vmatpush.bf16.msra.mxu0 %v3305
    %3540 = vmatmul.bf16.gmra.mxu0 %v2964
    %v3541 = vpop.f32.mrf.mxu0
    %v3542 = vadd.f32 %v3528, %v3541
    %v3543 = vpop.f32.mrf.mxu0
    %v3544 = vadd.f32 %v3530, %v3543
    %3545 = vdwg.mxu0
    %3546 = vmatpush.bf16.msra.mxu0 %v3335
    %3547 = vmatpush.bf16.msra.mxu0 %v3333
    %3548 = vmatpush.bf16.msra.mxu0 %v3331
    %3549 = vmatpush.bf16.msra.mxu0 %v3329
    %3550 = vmatpush.bf16.msra.mxu0 %v3327
    %3551 = vmatpush.bf16.msra.mxu0 %v3325
    %3552 = vmatpush.bf16.msra.mxu0 %v3323
    %3553 = vmatpush.bf16.msra.mxu0 %v3321
    %3554 = vmatmul.bf16.gmra.mxu0 %v2965
    %v3555 = vpop.f32.mrf.mxu0
    %v3556 = vadd.f32 %v3542, %v3555
    %v3557 = vpop.f32.mrf.mxu0
    %v3558 = vadd.f32 %v3544, %v3557
    %3559 = vdwg.mxu0
    %3560 = vmatpush.bf16.msra.mxu0 %v3351
    %3561 = vmatpush.bf16.msra.mxu0 %v3349
    %3562 = vmatpush.bf16.msra.mxu0 %v3347
    %3563 = vmatpush.bf16.msra.mxu0 %v3345
    %3564 = vmatpush.bf16.msra.mxu0 %v3343
    %3565 = vmatpush.bf16.msra.mxu0 %v3341
    %3566 = vmatpush.bf16.msra.mxu0 %v3339
    %3567 = vmatpush.bf16.msra.mxu0 %v3337
    %3568 = vmatmul.bf16.gmra.mxu0 %v2966
    %v3569 = vpop.f32.mrf.mxu0
    %v3570 = vadd.f32 %v3556, %v3569
    %v3571 = vpop.f32.mrf.mxu0
    %v3572 = vadd.f32 %v3558, %v3571
    %3573 = vdwg.mxu0
    %3574 = vmatpush.bf16.msra.mxu0 %v3367
    %3575 = vmatpush.bf16.msra.mxu0 %v3365
    %3576 = vmatpush.bf16.msra.mxu0 %v3363
    %3577 = vmatpush.bf16.msra.mxu0 %v3361
    %3578 = vmatpush.bf16.msra.mxu0 %v3359
    %3579 = vmatpush.bf16.msra.mxu0 %v3357
    %3580 = vmatpush.bf16.msra.mxu0 %v3355
    %3581 = vmatpush.bf16.msra.mxu0 %v3353
    %3582 = vmatmul.bf16.gmra.mxu0 %v2967
    %v3583 = vpop.f32.mrf.mxu0
    %v3584 = vadd.f32 %v3570, %v3583
    %v3585 = vpop.f32.mrf.mxu0
    %v3586 = vadd.f32 %v3572, %v3585
    %3587 = vdwg.mxu0
    %v3588 = vld [vmem:[%s11] sm:$0x3]
    %v3590 = vperm.slane %v3588, 0
    %v3591 = vperm.slane %v3588, 1
    %v3594 = vmul.f32 %v3514, %v3590
    %v3595 = vmul.f32 %v3584, %v3591
    %v3596 = vmul.f32 %v3516, %v3590
    %v3597 = vmul.f32 %v3586, %v3591
    %v3598 = vld [vmem:[%s12] sm:$0x3]
    %v3600 = vperm.slane %v3598, 0
    %v3601 = vperm.slane %v3598, 1
    %v3604 = vadd.f32 %v3594, %v3600
    %v3605 = vadd.f32 %v3595, %v3601
    %v3606 = vadd.f32 %v3596, %v3600
    %v3607 = vadd.f32 %v3597, %v3601
    %v3608 = vmax.f32 %v3604, 0.0
    %v3609 = vmax.f32 %v3605, 0.0
    %v3610 = vmax.f32 %v3606, 0.0
    %v3611 = vmax.f32 %v3607, 0.0
    %v3612 = vsel %vm2943, %v3608, 0.0
    %v3613 = vrot.slane %v3612, 4
    %v3614 = vadd.f32 %v3612, %v3613
    %v3615 = vrot.slane %v3614, 2
    %v3616 = vadd.f32 %v3614, %v3615
    %v3617 = vrot.slane %v3616, 1
    %v3618 = vadd.f32 %v3616, %v3617
    %v3619 = vsel %vm2943, %v3609, 0.0
    %v3620 = vrot.slane %v3619, 4
    %v3621 = vadd.f32 %v3619, %v3620
    %v3622 = vrot.slane %v3621, 2
    %v3623 = vadd.f32 %v3621, %v3622
    %v3624 = vrot.slane %v3623, 1
    %v3625 = vadd.f32 %v3623, %v3624
    %v3626 = vrcp.pop 5.0
    %v3627 = vmul.f32 5.0, %v3626
    %v3628 = vsub.f32 1.0, %v3627
    %v3629 = vmul.f32 %v3626, %v3628
    %v3630 = vadd.f32 %v3626, %v3629
    %vm3631 = vweird.f32 %v3626
    %v3632 = vsel %vm3631, %v3626, %v3630
    %v3633 = vmul.f32 %v3618, %v3632
    %v3634 = vmul.f32 %v3625, %v3632
    %vm3639 = vcmask 1042432
    %v3640 = vrot.slane %v3608, 5
    %v3641 = vrot.slane %v3610, 5
    %v3642 = vsel %vm3639, %v3640, %v3641
    %v3643 = vrot.slane %v3609, 5
    %v3644 = vrot.slane %v3611, 5
    %v3645 = vsel %vm3639, %v3643, %v3644
    %v3648 = vsel %vm2943, %v3642, 0.0
    %v3649 = vrot.slane %v3648, 4
    %v3650 = vadd.f32 %v3648, %v3649
    %v3651 = vrot.slane %v3650, 2
    %v3652 = vadd.f32 %v3650, %v3651
    %v3653 = vrot.slane %v3652, 1
    %v3654 = vadd.f32 %v3652, %v3653
    %v3655 = vsel %vm2943, %v3645, 0.0
    %v3656 = vrot.slane %v3655, 4
    %v3657 = vadd.f32 %v3655, %v3656
    %v3658 = vrot.slane %v3657, 2
    %v3659 = vadd.f32 %v3657, %v3658
    %v3660 = vrot.slane %v3659, 1
    %v3661 = vadd.f32 %v3659, %v3660
    %v3662 = vmul.f32 %v3654, %v3632
    %v3663 = vmul.f32 %v3661, %v3632
    %v3664 = vsel %vm2767, %v3633, %v3662
    %v3665 = vsel %vm2767, %v3634, %v3663
    %v3666 = vpack.c.bf16 %v3664, %v3664
    %v3667 = vpack.c.bf16 %v3665, %v3665
    %v3668 = vld [vmem:[#allocation8] sm:$0xf]
    %v3669 = vld [vmem:[#allocation8 + $0x4] sm:$0xf]
    %v3670 = vld [vmem:[#allocation8 + $0x8] sm:$0xf]
    %v3671 = vld [vmem:[#allocation8 + $0xc] sm:$0xf]
    %v3672 = vld [vmem:[#allocation8 + $0x10] sm:$0xf]
    %v3673 = vld [vmem:[#allocation8 + $0x14] sm:$0xf]
    %v3674 = vld [vmem:[#allocation8 + $0x18] sm:$0xf]
    %v3675 = vld [vmem:[#allocation8 + $0x1c] sm:$0xf]
    %v3676 = vld [vmem:[#allocation8 + $0x20] sm:$0xf]
    %v3677 = vld [vmem:[#allocation8 + $0x24] sm:$0xf]
    %v3678 = vld [vmem:[#allocation8 + $0x28] sm:$0xf]
    %v3679 = vld [vmem:[#allocation8 + $0x2c] sm:$0xf]
    %v3680 = vld [vmem:[#allocation8 + $0x30] sm:$0xf]
    %v3681 = vld [vmem:[#allocation8 + $0x34] sm:$0xf]
    %v3682 = vld [vmem:[#allocation8 + $0x38] sm:$0xf]
    %v3683 = vld [vmem:[#allocation8 + $0x3c] sm:$0xf]
    %v3684 = vld [vmem:[#allocation8 + $0x40] sm:$0xf]
    %v3685 = vld [vmem:[#allocation8 + $0x44] sm:$0xf]
    %v3686 = vld [vmem:[#allocation8 + $0x48] sm:$0xf]
    %v3687 = vld [vmem:[#allocation8 + $0x4c] sm:$0xf]
    %v3688 = vld [vmem:[#allocation8 + $0x50] sm:$0xf]
    %v3689 = vld [vmem:[#allocation8 + $0x54] sm:$0xf]
    %v3690 = vld [vmem:[#allocation8 + $0x58] sm:$0xf]
    %v3691 = vld [vmem:[#allocation8 + $0x5c] sm:$0xf]
    %v3692 = vld [vmem:[#allocation8 + $0x60] sm:$0xf]
    %v3693 = vld [vmem:[#allocation8 + $0x64] sm:$0xf]
    %v3694 = vld [vmem:[#allocation8 + $0x68] sm:$0xf]
    %v3695 = vld [vmem:[#allocation8 + $0x6c] sm:$0xf]
    %v3696 = vld [vmem:[#allocation8 + $0x70] sm:$0xf]
    %v3697 = vld [vmem:[#allocation8 + $0x74] sm:$0xf]
    %v3698 = vld [vmem:[#allocation8 + $0x78] sm:$0xf]
    %v3699 = vld [vmem:[#allocation8 + $0x7c] sm:$0xf]
    %v3732 = vunpack.c.l.b16 %v3668
    %v3733 = vunpack.c.l.b16 %v3669
    %v3734 = vunpack.c.l.b16 %v3670
    %v3735 = vunpack.c.l.b16 %v3671
    %v3736 = vunpack.c.l.b16 %v3672
    %v3737 = vunpack.c.l.b16 %v3673
    %v3738 = vunpack.c.l.b16 %v3674
    %v3739 = vunpack.c.l.b16 %v3675
    %v3740 = vunpack.c.l.b16 %v3676
    %v3741 = vunpack.c.l.b16 %v3677
    %v3742 = vunpack.c.l.b16 %v3678
    %v3743 = vunpack.c.l.b16 %v3679
    %v3744 = vunpack.c.l.b16 %v3680
    %v3745 = vunpack.c.l.b16 %v3681
    %v3746 = vunpack.c.l.b16 %v3682
    %v3747 = vunpack.c.l.b16 %v3683
    %v3748 = vunpack.c.l.b16 %v3684
    %v3749 = vunpack.c.l.b16 %v3685
    %v3750 = vunpack.c.l.b16 %v3686
    %v3751 = vunpack.c.l.b16 %v3687
    %v3752 = vunpack.c.l.b16 %v3688
    %v3753 = vunpack.c.l.b16 %v3689
    %v3754 = vunpack.c.l.b16 %v3690
    %v3755 = vunpack.c.l.b16 %v3691
    %v3756 = vunpack.c.l.b16 %v3692
    %v3757 = vunpack.c.l.b16 %v3693
    %v3758 = vunpack.c.l.b16 %v3694
    %v3759 = vunpack.c.l.b16 %v3695
    %v3760 = vunpack.c.l.b16 %v3696
    %v3761 = vunpack.c.l.b16 %v3697
    %v3762 = vunpack.c.l.b16 %v3698
    %v3763 = vunpack.c.l.b16 %v3699
    %v3764 = vpack.c.b16 %v3733, %v3732
    %v3765 = vpack.c.b16 %v3735, %v3734
    %v3766 = vpack.c.b16 %v3737, %v3736
    %v3767 = vpack.c.b16 %v3739, %v3738
    %v3768 = vpack.c.b16 %v3741, %v3740
    %v3769 = vpack.c.b16 %v3743, %v3742
    %v3770 = vpack.c.b16 %v3745, %v3744
    %v3771 = vpack.c.b16 %v3747, %v3746
    %v3772 = vpack.c.b16 %v3749, %v3748
    %v3773 = vpack.c.b16 %v3751, %v3750
    %v3774 = vpack.c.b16 %v3753, %v3752
    %v3775 = vpack.c.b16 %v3755, %v3754
    %v3776 = vpack.c.b16 %v3757, %v3756
    %v3777 = vpack.c.b16 %v3759, %v3758
    %v3778 = vpack.c.b16 %v3761, %v3760
    %v3779 = vpack.c.b16 %v3763, %v3762
    %3796 = vmatpush.bf16.msra.mxu0 %v3771
    %3797 = vmatpush.bf16.msra.mxu0 %v3770
    %3798 = vmatpush.bf16.msra.mxu0 %v3769
    %3799 = vmatpush.bf16.msra.mxu0 %v3768
    %3800 = vmatpush.bf16.msra.mxu0 %v3767
    %3801 = vmatpush.bf16.msra.mxu0 %v3766
    %3802 = vmatpush.bf16.msra.mxu0 %v3765
    %3803 = vmatpush.bf16.msra.mxu0 %v3764
    %3804 = vmatmul.bf16.gmra.mxu0 %v3666
    %v3805 = vpop.f32.mrf.mxu0
    %v3806 = vadd.f32 0.0, %v3805
    %v3807 = vpop.f32.mrf.mxu0
    %3808 = vdwg.mxu0
    %3809 = vmatpush.bf16.msra.mxu0 %v3779
    %3810 = vmatpush.bf16.msra.mxu0 %v3778
    %3811 = vmatpush.bf16.msra.mxu0 %v3777
    %3812 = vmatpush.bf16.msra.mxu0 %v3776
    %3813 = vmatpush.bf16.msra.mxu0 %v3775
    %3814 = vmatpush.bf16.msra.mxu0 %v3774
    %3815 = vmatpush.bf16.msra.mxu0 %v3773
    %3816 = vmatpush.bf16.msra.mxu0 %v3772
    %3817 = vmatmul.bf16.gmra.mxu0 %v3667
    %v3818 = vpop.f32.mrf.mxu0
    %v3819 = vadd.f32 %v3806, %v3818
    %v3820 = vpop.f32.mrf.mxu0
    %3821 = vdwg.mxu0
    %v3822 = vmax.f32 %v3819, 0.0
    %v3823 = vpack.c.bf16 %v3822, %v3822
    %v3824 = vld [vmem:[#allocation10] sm:$0xff]
    %v3825 = vld [vmem:[#allocation10 + $0x8] sm:$0xff]
    %v3828 = vunpack.c.l.b16 %v3824
    %v3829 = vunpack.c.h.b16 %v3824
    %v3830 = vunpack.c.l.b16 %v3825
    %v3831 = vunpack.c.h.b16 %v3825
    %v3832 = vpack.c.b16 %v3830, %v3828
    %v3833 = vpack.c.b16 %v3831, %v3829
    %vm3836 = vcmask 130048
    %v3838 = vsel %vm3836, %v3823, 0
    %3840 = vmatpush.bf16.msra.mxu0 0
    %3841 = vmatpush.bf16.msra.mxu0 0
    %3842 = vmatpush.bf16.msra.mxu0 0
    %3843 = vmatpush.bf16.msra.mxu0 0
    %3844 = vmatpush.bf16.msra.mxu0 0
    %3845 = vmatpush.bf16.msra.mxu0 0
    %3846 = vmatpush.bf16.msra.mxu0 0
    %3847 = vmatpush.bf16.msra.mxu0 %v3832
    %3848 = vmatmul.bf16.gmra.mxu0 %v3838
    %v3849 = vpop.f32.mrf.mxu0
    %v3850 = vadd.f32 0.0, %v3849
    %v3851 = vpop.f32.mrf.mxu0
    %3852 = vdwg.mxu0
    %3853 = vmatpush.bf16.msra.mxu0 0
    %3854 = vmatpush.bf16.msra.mxu0 0
    %3855 = vmatpush.bf16.msra.mxu0 0
    %3856 = vmatpush.bf16.msra.mxu0 0
    %3857 = vmatpush.bf16.msra.mxu0 0
    %3858 = vmatpush.bf16.msra.mxu0 0
    %3859 = vmatpush.bf16.msra.mxu0 0
    %3860 = vmatpush.bf16.msra.mxu0 %v3833
    %3861 = vmatmul.bf16.gmra.mxu0 %v3838
    %v3862 = vpop.f32.mrf.mxu0
    %v3863 = vadd.f32 0.0, %v3862
    %v3864 = vpop.f32.mrf.mxu0
    %3865 = vdwg.mxu0
    %v3866 = vxor.u32 %v3850, 2147483648
    %v3867 = vxor.u32 %v3863, 2147483648
    %v3868 = vmul.f32 %v3866, 1.442695
    %v3869 = vpow.pop %v3868
    %v3870 = vmul.f32 %v3867, 1.442695
    %v3871 = vpow.pop %v3870
    %v3872 = vadd.f32 %v3869, 1.0
    %v3873 = vadd.f32 %v3871, 1.0
    %v3874 = vrcp.pop %v3872
    %v3875 = vmul.f32 %v3872, %v3874
    %v3876 = vsub.f32 1.0, %v3875
    %v3877 = vmul.f32 %v3874, %v3876
    %v3878 = vadd.f32 %v3874, %v3877
    %vm3879 = vweird.f32 %v3872
    %vm3880 = vweird.f32 %v3874
    %vm3881 = vmor %vm3879, %vm3880
    %v3882 = vsel %vm3881, %v3874, %v3878
    %v3883 = vand.u32 2147483647, %v3872
    %vm3884 = vcmp.eq.f32.partialorder %v3883, 8.507059e+37
    %v3885 = vand.u32 %v3872, 2147483648
    %v3886 = vor.u32 1.1754944e-38, %v3885
    %v3887 = vsel %vm3884, %v3886, %v3882
    %v3888 = vmul.f32 1.0, %v3887
    %v3889 = vrcp.pop %v3873
    %v3890 = vmul.f32 %v3873, %v3889
    %v3891 = vsub.f32 1.0, %v3890
    %v3892 = vmul.f32 %v3889, %v3891
    %v3893 = vadd.f32 %v3889, %v3892
    %vm3894 = vweird.f32 %v3873
    %vm3895 = vweird.f32 %v3889
    %vm3896 = vmor %vm3894, %vm3895
    %v3897 = vsel %vm3896, %v3889, %v3893
    %v3898 = vand.u32 2147483647, %v3873
    %vm3899 = vcmp.eq.f32.partialorder %v3898, 8.507059e+37
    %v3900 = vand.u32 %v3873, 2147483648
    %v3901 = vor.u32 1.1754944e-38, %v3900
    %v3902 = vsel %vm3899, %v3901, %v3897
    %v3903 = vmul.f32 1.0, %v3902
    %v3904 = vperm.slane %v3888, 0
    %v3905 = vperm.slane %v3903, 0
    %v3906 = vmul.f32 %v3608, %v3904
    %v3907 = vmul.f32 %v3609, %v3905
    %v3908 = vperm.slane %v3888, 1
    %v3909 = vperm.slane %v3903, 1
    %v3910 = vmul.f32 %v3608, %v3908
    %v3911 = vmul.f32 %v3609, %v3909
    %v3912 = vmul.f32 %v3610, %v3908
    %v3913 = vmul.f32 %v3611, %v3909
    %v3914 = vsel %vm2943, %v3906, %v3910
    %v3915 = vsel %vm2943, %v3907, %v3911
    %v3918 = vrot.slane %v3914, 1
    %v3919 = vrot.slane %v3915, 1
    %v3922 = vrot.slane %v3914, 2
    %v3923 = vrot.slane %v3915, 2
    %v3928 = vrot.slane %v3912, 1
    %v3929 = vsel %vm2786, %v3918, %v3928
    %v3930 = vrot.slane %v3913, 1
    %v3931 = vsel %vm2786, %v3919, %v3930
    %vm3932 = vcmask 1045504
    %v3933 = vrot.slane %v3912, 2
    %v3934 = vsel %vm3932, %v3922, %v3933
    %v3935 = vrot.slane %v3913, 2
    %v3936 = vsel %vm3932, %v3923, %v3935
    %v3937 = vrot.slane %v3929, 2
    %v3938 = vrot.slane %v3931, 2
    %v3939 = vrot.slane %v3934, 2
    %v3940 = vrot.slane %v3936, 2
    %v3945 = vsel %vm3639, %v3914, %v3922
    %v3946 = vsel %vm3639, %v3915, %v3923
    %v3947 = vsel %vm3639, %v3918, %v3937
    %v3948 = vsel %vm3639, %v3919, %v3938
    %v3949 = vsel %vm3639, %v3922, %v3939
    %v3950 = vsel %vm3639, %v3923, %v3940
    %v3951 = vpack.c.bf16 %v3945, %v3945
    %v3952 = vpack.c.bf16 %v3946, %v3946
    %v3953 = vpack.c.bf16 %v3947, %v3947
    %v3954 = vpack.c.bf16 %v3948, %v3948
    %v3955 = vpack.c.bf16 %v3949, %v3949
    %v3956 = vpack.c.bf16 %v3950, %v3950
    %v3957 = vld [vmem:[#allocation11] sm:$0xf]
    %v3958 = vld [vmem:[#allocation11 + $0x4] sm:$0xf]
    %v3959 = vld [vmem:[#allocation11 + $0x8] sm:$0xf]
    %v3960 = vld [vmem:[#allocation11 + $0xc] sm:$0xf]
    %v3961 = vld [vmem:[#allocation11 + $0x10] sm:$0xf]
    %v3962 = vld [vmem:[#allocation11 + $0x14] sm:$0xf]
    %v3963 = vld [vmem:[#allocation11 + $0x18] sm:$0xf]
    %v3964 = vld [vmem:[#allocation11 + $0x1c] sm:$0xf]
    %v3965 = vld [vmem:[#allocation11 + $0x20] sm:$0xf]
    %v3966 = vld [vmem:[#allocation11 + $0x24] sm:$0xf]
    %v3967 = vld [vmem:[#allocation11 + $0x28] sm:$0xf]
    %v3968 = vld [vmem:[#allocation11 + $0x2c] sm:$0xf]
    %v3969 = vld [vmem:[#allocation11 + $0x30] sm:$0xf]
    %v3970 = vld [vmem:[#allocation11 + $0x34] sm:$0xf]
    %v3971 = vld [vmem:[#allocation11 + $0x38] sm:$0xf]
    %v3972 = vld [vmem:[#allocation11 + $0x3c] sm:$0xf]
    %v3973 = vld [vmem:[#allocation11 + $0x40] sm:$0xf]
    %v3974 = vld [vmem:[#allocation11 + $0x44] sm:$0xf]
    %v3975 = vld [vmem:[#allocation11 + $0x48] sm:$0xf]
    %v3976 = vld [vmem:[#allocation11 + $0x4c] sm:$0xf]
    %v3977 = vld [vmem:[#allocation11 + $0x50] sm:$0xf]
    %v3978 = vld [vmem:[#allocation11 + $0x54] sm:$0xf]
    %v3979 = vld [vmem:[#allocation11 + $0x58] sm:$0xf]
    %v3980 = vld [vmem:[#allocation11 + $0x5c] sm:$0xf]
    %v3981 = vld [vmem:[#allocation11 + $0x60] sm:$0xf]
    %v3982 = vld [vmem:[#allocation11 + $0x64] sm:$0xf]
    %v3983 = vld [vmem:[#allocation11 + $0x68] sm:$0xf]
    %v3984 = vld [vmem:[#allocation11 + $0x6c] sm:$0xf]
    %v3985 = vld [vmem:[#allocation11 + $0x70] sm:$0xf]
    %v3986 = vld [vmem:[#allocation11 + $0x74] sm:$0xf]
    %v3987 = vld [vmem:[#allocation11 + $0x78] sm:$0xf]
    %v3988 = vld [vmem:[#allocation11 + $0x7c] sm:$0xf]
    %v3989 = vld [vmem:[#allocation11 + $0x80] sm:$0xf]
    %v3990 = vld [vmem:[#allocation11 + $0x84] sm:$0xf]
    %v3991 = vld [vmem:[#allocation11 + $0x88] sm:$0xf]
    %v3992 = vld [vmem:[#allocation11 + $0x8c] sm:$0xf]
    %v3993 = vld [vmem:[#allocation11 + $0x90] sm:$0xf]
    %v3994 = vld [vmem:[#allocation11 + $0x94] sm:$0xf]
    %v3995 = vld [vmem:[#allocation11 + $0x98] sm:$0xf]
    %v3996 = vld [vmem:[#allocation11 + $0x9c] sm:$0xf]
    %v3997 = vld [vmem:[#allocation11 + $0xa0] sm:$0xf]
    %v3998 = vld [vmem:[#allocation11 + $0xa4] sm:$0xf]
    %v3999 = vld [vmem:[#allocation11 + $0xa8] sm:$0xf]
    %v4000 = vld [vmem:[#allocation11 + $0xac] sm:$0xf]
    %v4001 = vld [vmem:[#allocation11 + $0xb0] sm:$0xf]
    %v4002 = vld [vmem:[#allocation11 + $0xb4] sm:$0xf]
    %v4003 = vld [vmem:[#allocation11 + $0xb8] sm:$0xf]
    %v4004 = vld [vmem:[#allocation11 + $0xbc] sm:$0xf]
    %v4005 = vld [vmem:[#allocation11 + $0xc0] sm:$0xf]
    %v4006 = vld [vmem:[#allocation11 + $0xc4] sm:$0xf]
    %v4007 = vld [vmem:[#allocation11 + $0xc8] sm:$0xf]
    %v4008 = vld [vmem:[#allocation11 + $0xcc] sm:$0xf]
    %v4009 = vld [vmem:[#allocation11 + $0xd0] sm:$0xf]
    %v4010 = vld [vmem:[#allocation11 + $0xd4] sm:$0xf]
    %v4011 = vld [vmem:[#allocation11 + $0xd8] sm:$0xf]
    %v4012 = vld [vmem:[#allocation11 + $0xdc] sm:$0xf]
    %v4013 = vld [vmem:[#allocation11 + $0xe0] sm:$0xf]
    %v4014 = vld [vmem:[#allocation11 + $0xe4] sm:$0xf]
    %v4015 = vld [vmem:[#allocation11 + $0xe8] sm:$0xf]
    %v4016 = vld [vmem:[#allocation11 + $0xec] sm:$0xf]
    %v4017 = vld [vmem:[#allocation11 + $0xf0] sm:$0xf]
    %v4018 = vld [vmem:[#allocation11 + $0xf4] sm:$0xf]
    %v4019 = vld [vmem:[#allocation11 + $0xf8] sm:$0xf]
    %v4020 = vld [vmem:[#allocation11 + $0xfc] sm:$0xf]
    %v4021 = vld [vmem:[#allocation11 + $0x100] sm:$0xf]
    %v4022 = vld [vmem:[#allocation11 + $0x104] sm:$0xf]
    %v4023 = vld [vmem:[#allocation11 + $0x108] sm:$0xf]
    %v4024 = vld [vmem:[#allocation11 + $0x10c] sm:$0xf]
    %v4025 = vld [vmem:[#allocation11 + $0x110] sm:$0xf]
    %v4026 = vld [vmem:[#allocation11 + $0x114] sm:$0xf]
    %v4027 = vld [vmem:[#allocation11 + $0x118] sm:$0xf]
    %v4028 = vld [vmem:[#allocation11 + $0x11c] sm:$0xf]
    %v4029 = vld [vmem:[#allocation11 + $0x120] sm:$0xf]
    %v4030 = vld [vmem:[#allocation11 + $0x124] sm:$0xf]
    %v4031 = vld [vmem:[#allocation11 + $0x128] sm:$0xf]
    %v4032 = vld [vmem:[#allocation11 + $0x12c] sm:$0xf]
    %v4033 = vld [vmem:[#allocation11 + $0x130] sm:$0xf]
    %v4034 = vld [vmem:[#allocation11 + $0x134] sm:$0xf]
    %v4035 = vld [vmem:[#allocation11 + $0x138] sm:$0xf]
    %v4036 = vld [vmem:[#allocation11 + $0x13c] sm:$0xf]
    %v4037 = vld [vmem:[#allocation11 + $0x140] sm:$0xf]
    %v4038 = vld [vmem:[#allocation11 + $0x144] sm:$0xf]
    %v4039 = vld [vmem:[#allocation11 + $0x148] sm:$0xf]
    %v4040 = vld [vmem:[#allocation11 + $0x14c] sm:$0xf]
    %v4041 = vld [vmem:[#allocation11 + $0x150] sm:$0xf]
    %v4042 = vld [vmem:[#allocation11 + $0x154] sm:$0xf]
    %v4043 = vld [vmem:[#allocation11 + $0x158] sm:$0xf]
    %v4044 = vld [vmem:[#allocation11 + $0x15c] sm:$0xf]
    %v4045 = vld [vmem:[#allocation11 + $0x160] sm:$0xf]
    %v4046 = vld [vmem:[#allocation11 + $0x164] sm:$0xf]
    %v4047 = vld [vmem:[#allocation11 + $0x168] sm:$0xf]
    %v4048 = vld [vmem:[#allocation11 + $0x16c] sm:$0xf]
    %v4049 = vld [vmem:[#allocation11 + $0x170] sm:$0xf]
    %v4050 = vld [vmem:[#allocation11 + $0x174] sm:$0xf]
    %v4051 = vld [vmem:[#allocation11 + $0x178] sm:$0xf]
    %v4052 = vld [vmem:[#allocation11 + $0x17c] sm:$0xf]
    %v4149 = vunpack.c.l.b16 %v3957
    %v4150 = vunpack.c.l.b16 %v3958
    %v4151 = vunpack.c.l.b16 %v3959
    %v4152 = vunpack.c.l.b16 %v3960
    %v4153 = vunpack.c.l.b16 %v3961
    %v4154 = vunpack.c.l.b16 %v3962
    %v4155 = vunpack.c.l.b16 %v3963
    %v4156 = vunpack.c.l.b16 %v3964
    %v4157 = vunpack.c.l.b16 %v3965
    %v4158 = vunpack.c.l.b16 %v3966
    %v4159 = vunpack.c.l.b16 %v3967
    %v4160 = vunpack.c.l.b16 %v3968
    %v4161 = vunpack.c.l.b16 %v3969
    %v4162 = vunpack.c.l.b16 %v3970
    %v4163 = vunpack.c.l.b16 %v3971
    %v4164 = vunpack.c.l.b16 %v3972
    %v4165 = vunpack.c.l.b16 %v3973
    %v4166 = vunpack.c.l.b16 %v3974
    %v4167 = vunpack.c.l.b16 %v3975
    %v4168 = vunpack.c.l.b16 %v3976
    %v4169 = vunpack.c.l.b16 %v3977
    %v4170 = vunpack.c.l.b16 %v3978
    %v4171 = vunpack.c.l.b16 %v3979
    %v4172 = vunpack.c.l.b16 %v3980
    %v4173 = vunpack.c.l.b16 %v3981
    %v4174 = vunpack.c.l.b16 %v3982
    %v4175 = vunpack.c.l.b16 %v3983
    %v4176 = vunpack.c.l.b16 %v3984
    %v4177 = vunpack.c.l.b16 %v3985
    %v4178 = vunpack.c.l.b16 %v3986
    %v4179 = vunpack.c.l.b16 %v3987
    %v4180 = vunpack.c.l.b16 %v3988
    %v4181 = vunpack.c.l.b16 %v3989
    %v4182 = vunpack.c.l.b16 %v3990
    %v4183 = vunpack.c.l.b16 %v3991
    %v4184 = vunpack.c.l.b16 %v3992
    %v4185 = vunpack.c.l.b16 %v3993
    %v4186 = vunpack.c.l.b16 %v3994
    %v4187 = vunpack.c.l.b16 %v3995
    %v4188 = vunpack.c.l.b16 %v3996
    %v4189 = vunpack.c.l.b16 %v3997
    %v4190 = vunpack.c.l.b16 %v3998
    %v4191 = vunpack.c.l.b16 %v3999
    %v4192 = vunpack.c.l.b16 %v4000
    %v4193 = vunpack.c.l.b16 %v4001
    %v4194 = vunpack.c.l.b16 %v4002
    %v4195 = vunpack.c.l.b16 %v4003
    %v4196 = vunpack.c.l.b16 %v4004
    %v4197 = vunpack.c.l.b16 %v4005
    %v4198 = vunpack.c.l.b16 %v4006
    %v4199 = vunpack.c.l.b16 %v4007
    %v4200 = vunpack.c.l.b16 %v4008
    %v4201 = vunpack.c.l.b16 %v4009
    %v4202 = vunpack.c.l.b16 %v4010
    %v4203 = vunpack.c.l.b16 %v4011
    %v4204 = vunpack.c.l.b16 %v4012
    %v4205 = vunpack.c.l.b16 %v4013
    %v4206 = vunpack.c.l.b16 %v4014
    %v4207 = vunpack.c.l.b16 %v4015
    %v4208 = vunpack.c.l.b16 %v4016
    %v4209 = vunpack.c.l.b16 %v4017
    %v4210 = vunpack.c.l.b16 %v4018
    %v4211 = vunpack.c.l.b16 %v4019
    %v4212 = vunpack.c.l.b16 %v4020
    %v4213 = vunpack.c.l.b16 %v4021
    %v4214 = vunpack.c.l.b16 %v4022
    %v4215 = vunpack.c.l.b16 %v4023
    %v4216 = vunpack.c.l.b16 %v4024
    %v4217 = vunpack.c.l.b16 %v4025
    %v4218 = vunpack.c.l.b16 %v4026
    %v4219 = vunpack.c.l.b16 %v4027
    %v4220 = vunpack.c.l.b16 %v4028
    %v4221 = vunpack.c.l.b16 %v4029
    %v4222 = vunpack.c.l.b16 %v4030
    %v4223 = vunpack.c.l.b16 %v4031
    %v4224 = vunpack.c.l.b16 %v4032
    %v4225 = vunpack.c.l.b16 %v4033
    %v4226 = vunpack.c.l.b16 %v4034
    %v4227 = vunpack.c.l.b16 %v4035
    %v4228 = vunpack.c.l.b16 %v4036
    %v4229 = vunpack.c.l.b16 %v4037
    %v4230 = vunpack.c.l.b16 %v4038
    %v4231 = vunpack.c.l.b16 %v4039
    %v4232 = vunpack.c.l.b16 %v4040
    %v4233 = vunpack.c.l.b16 %v4041
    %v4234 = vunpack.c.l.b16 %v4042
    %v4235 = vunpack.c.l.b16 %v4043
    %v4236 = vunpack.c.l.b16 %v4044
    %v4237 = vunpack.c.l.b16 %v4045
    %v4238 = vunpack.c.l.b16 %v4046
    %v4239 = vunpack.c.l.b16 %v4047
    %v4240 = vunpack.c.l.b16 %v4048
    %v4241 = vunpack.c.l.b16 %v4049
    %v4242 = vunpack.c.l.b16 %v4050
    %v4243 = vunpack.c.l.b16 %v4051
    %v4244 = vunpack.c.l.b16 %v4052
    %v4245 = vpack.c.b16 %v4150, %v4149
    %v4246 = vpack.c.b16 %v4152, %v4151
    %v4247 = vpack.c.b16 %v4154, %v4153
    %v4248 = vpack.c.b16 %v4156, %v4155
    %v4249 = vpack.c.b16 %v4158, %v4157
    %v4250 = vpack.c.b16 %v4160, %v4159
    %v4251 = vpack.c.b16 %v4162, %v4161
    %v4252 = vpack.c.b16 %v4164, %v4163
    %v4253 = vpack.c.b16 %v4166, %v4165
    %v4254 = vpack.c.b16 %v4168, %v4167
    %v4255 = vpack.c.b16 %v4170, %v4169
    %v4256 = vpack.c.b16 %v4172, %v4171
    %v4257 = vpack.c.b16 %v4174, %v4173
    %v4258 = vpack.c.b16 %v4176, %v4175
    %v4259 = vpack.c.b16 %v4178, %v4177
    %v4260 = vpack.c.b16 %v4180, %v4179
    %v4261 = vpack.c.b16 %v4182, %v4181
    %v4262 = vpack.c.b16 %v4184, %v4183
    %v4263 = vpack.c.b16 %v4186, %v4185
    %v4264 = vpack.c.b16 %v4188, %v4187
    %v4265 = vpack.c.b16 %v4190, %v4189
    %v4266 = vpack.c.b16 %v4192, %v4191
    %v4267 = vpack.c.b16 %v4194, %v4193
    %v4268 = vpack.c.b16 %v4196, %v4195
    %v4269 = vpack.c.b16 %v4198, %v4197
    %v4270 = vpack.c.b16 %v4200, %v4199
    %v4271 = vpack.c.b16 %v4202, %v4201
    %v4272 = vpack.c.b16 %v4204, %v4203
    %v4273 = vpack.c.b16 %v4206, %v4205
    %v4274 = vpack.c.b16 %v4208, %v4207
    %v4275 = vpack.c.b16 %v4210, %v4209
    %v4276 = vpack.c.b16 %v4212, %v4211
    %v4277 = vpack.c.b16 %v4214, %v4213
    %v4278 = vpack.c.b16 %v4216, %v4215
    %v4279 = vpack.c.b16 %v4218, %v4217
    %v4280 = vpack.c.b16 %v4220, %v4219
    %v4281 = vpack.c.b16 %v4222, %v4221
    %v4282 = vpack.c.b16 %v4224, %v4223
    %v4283 = vpack.c.b16 %v4226, %v4225
    %v4284 = vpack.c.b16 %v4228, %v4227
    %v4285 = vpack.c.b16 %v4230, %v4229
    %v4286 = vpack.c.b16 %v4232, %v4231
    %v4287 = vpack.c.b16 %v4234, %v4233
    %v4288 = vpack.c.b16 %v4236, %v4235
    %v4289 = vpack.c.b16 %v4238, %v4237
    %v4290 = vpack.c.b16 %v4240, %v4239
    %v4291 = vpack.c.b16 %v4242, %v4241
    %v4292 = vpack.c.b16 %v4244, %v4243
    %4341 = vmatpush.bf16.msra.mxu0 %v4252
    %4342 = vmatpush.bf16.msra.mxu0 %v4251
    %4343 = vmatpush.bf16.msra.mxu0 %v4250
    %4344 = vmatpush.bf16.msra.mxu0 %v4249
    %4345 = vmatpush.bf16.msra.mxu0 %v4248
    %4346 = vmatpush.bf16.msra.mxu0 %v4247
    %4347 = vmatpush.bf16.msra.mxu0 %v4246
    %4348 = vmatpush.bf16.msra.mxu0 %v4245
    %4349 = vmatmul.bf16.gmra.mxu0 %v3951
    %v4350 = vpop.f32.mrf.mxu0
    %v4351 = vadd.f32 0.0, %v4350
    %v4352 = vpop.f32.mrf.mxu0
    %4353 = vdwg.mxu0
    %4354 = vmatpush.bf16.msra.mxu0 %v4260
    %4355 = vmatpush.bf16.msra.mxu0 %v4259
    %4356 = vmatpush.bf16.msra.mxu0 %v4258
    %4357 = vmatpush.bf16.msra.mxu0 %v4257
    %4358 = vmatpush.bf16.msra.mxu0 %v4256
    %4359 = vmatpush.bf16.msra.mxu0 %v4255
    %4360 = vmatpush.bf16.msra.mxu0 %v4254
    %4361 = vmatpush.bf16.msra.mxu0 %v4253
    %4362 = vmatmul.bf16.gmra.mxu0 %v3952
    %v4363 = vpop.f32.mrf.mxu0
    %v4364 = vadd.f32 %v4351, %v4363
    %v4365 = vpop.f32.mrf.mxu0
    %4366 = vdwg.mxu0
    %4367 = vmatpush.bf16.msra.mxu0 %v4268
    %4368 = vmatpush.bf16.msra.mxu0 %v4267
    %4369 = vmatpush.bf16.msra.mxu0 %v4266
    %4370 = vmatpush.bf16.msra.mxu0 %v4265
    %4371 = vmatpush.bf16.msra.mxu0 %v4264
    %4372 = vmatpush.bf16.msra.mxu0 %v4263
    %4373 = vmatpush.bf16.msra.mxu0 %v4262
    %4374 = vmatpush.bf16.msra.mxu0 %v4261
    %4375 = vmatmul.bf16.gmra.mxu0 %v3953
    %v4376 = vpop.f32.mrf.mxu0
    %v4377 = vadd.f32 %v4364, %v4376
    %v4378 = vpop.f32.mrf.mxu0
    %4379 = vdwg.mxu0
    %4380 = vmatpush.bf16.msra.mxu0 %v4276
    %4381 = vmatpush.bf16.msra.mxu0 %v4275
    %4382 = vmatpush.bf16.msra.mxu0 %v4274
    %4383 = vmatpush.bf16.msra.mxu0 %v4273
    %4384 = vmatpush.bf16.msra.mxu0 %v4272
    %4385 = vmatpush.bf16.msra.mxu0 %v4271
    %4386 = vmatpush.bf16.msra.mxu0 %v4270
    %4387 = vmatpush.bf16.msra.mxu0 %v4269
    %4388 = vmatmul.bf16.gmra.mxu0 %v3954
    %v4389 = vpop.f32.mrf.mxu0
    %v4390 = vadd.f32 %v4377, %v4389
    %v4391 = vpop.f32.mrf.mxu0
    %4392 = vdwg.mxu0
    %4393 = vmatpush.bf16.msra.mxu0 %v4284
    %4394 = vmatpush.bf16.msra.mxu0 %v4283
    %4395 = vmatpush.bf16.msra.mxu0 %v4282
    %4396 = vmatpush.bf16.msra.mxu0 %v4281
    %4397 = vmatpush.bf16.msra.mxu0 %v4280
    %4398 = vmatpush.bf16.msra.mxu0 %v4279
    %4399 = vmatpush.bf16.msra.mxu0 %v4278
    %4400 = vmatpush.bf16.msra.mxu0 %v4277
    %4401 = vmatmul.bf16.gmra.mxu0 %v3955
    %v4402 = vpop.f32.mrf.mxu0
    %v4403 = vadd.f32 %v4390, %v4402
    %v4404 = vpop.f32.mrf.mxu0
    %4405 = vdwg.mxu0
    %4406 = vmatpush.bf16.msra.mxu0 %v4292
    %4407 = vmatpush.bf16.msra.mxu0 %v4291
    %4408 = vmatpush.bf16.msra.mxu0 %v4290
    %4409 = vmatpush.bf16.msra.mxu0 %v4289
    %4410 = vmatpush.bf16.msra.mxu0 %v4288
    %4411 = vmatpush.bf16.msra.mxu0 %v4287
    %4412 = vmatpush.bf16.msra.mxu0 %v4286
    %4413 = vmatpush.bf16.msra.mxu0 %v4285
    %4414 = vmatmul.bf16.gmra.mxu0 %v3956
    %v4415 = vpop.f32.mrf.mxu0
    %v4416 = vadd.f32 %v4403, %v4415
    %v4417 = vpop.f32.mrf.mxu0
    %4418 = vdwg.mxu0
    %v4419 = vld [vmem:[#allocation13] sm:$0x1]
    %v4421 = vperm.slane %v4419, 0
    %v4423 = vmul.f32 %v4416, %v4421
    %v4424 = vld [vmem:[#allocation14] sm:$0x1]
    %v4426 = vperm.slane %v4424, 0
    %v4428 = vadd.f32 %v4423, %v4426
    %v4429 = vmax.f32 %v4428, 0.0
    %v4430 = vsel %vm3639, %v4429, 0.0
    %v4431 = vrot.slane %v4430, 4
    %v4432 = vadd.f32 %v4430, %v4431
    %v4433 = vrot.slane %v4432, 2
    %v4434 = vadd.f32 %v4432, %v4433
    %v4435 = vrot.slane %v4434, 1
    %v4436 = vadd.f32 %v4434, %v4435
    %v4437 = vrcp.pop 3.0
    %v4438 = vmul.f32 3.0, %v4437
    %v4439 = vsub.f32 1.0, %v4438
    %v4440 = vmul.f32 %v4437, %v4439
    %v4441 = vadd.f32 %v4437, %v4440
    %vm4442 = vweird.f32 %v4437
    %v4443 = vsel %vm4442, %v4437, %v4441
    %v4444 = vmul.f32 %v4436, %v4443
    %v4446 = vrot.slane %v4429, 3
    %v4448 = vsel %vm3639, %v4446, 0.0
    %v4449 = vrot.slane %v4448, 4
    %v4450 = vadd.f32 %v4448, %v4449
    %v4451 = vrot.slane %v4450, 2
    %v4452 = vadd.f32 %v4450, %v4451
    %v4453 = vrot.slane %v4452, 1
    %v4454 = vadd.f32 %v4452, %v4453
    %v4455 = vmul.f32 %v4454, %v4443
    %v4456 = vsel %vm2767, %v4444, %v4455
    %v4457 = vpack.c.bf16 %v2687, %v2687
    %v4458 = vld [vmem:[#allocation16] sm:$0xf]
    %v4459 = vld [vmem:[#allocation16 + $0x4] sm:$0xf]
    %v4460 = vld [vmem:[#allocation16 + $0x8] sm:$0xf]
    %v4461 = vld [vmem:[#allocation16 + $0xc] sm:$0xf]
    %v4462 = vld [vmem:[#allocation16 + $0x10] sm:$0xf]
    %v4463 = vld [vmem:[#allocation16 + $0x14] sm:$0xf]
    %v4464 = vld [vmem:[#allocation16 + $0x18] sm:$0xf]
    %v4465 = vld [vmem:[#allocation16 + $0x1c] sm:$0xf]
    %v4466 = vld [vmem:[#allocation16 + $0x20] sm:$0xf]
    %v4467 = vld [vmem:[#allocation16 + $0x24] sm:$0xf]
    %v4468 = vld [vmem:[#allocation16 + $0x28] sm:$0xf]
    %v4469 = vld [vmem:[#allocation16 + $0x2c] sm:$0xf]
    %v4470 = vld [vmem:[#allocation16 + $0x30] sm:$0xf]
    %v4471 = vld [vmem:[#allocation16 + $0x34] sm:$0xf]
    %v4472 = vld [vmem:[#allocation16 + $0x38] sm:$0xf]
    %v4473 = vld [vmem:[#allocation16 + $0x3c] sm:$0xf]
    %v4474 = vpack.c.bf16 %v4456, %v4456
    %v4475 = vld [vmem:[#allocation17] sm:$0xf]
    %v4476 = vld [vmem:[#allocation17 + $0x4] sm:$0xf]
    %v4477 = vld [vmem:[#allocation17 + $0x8] sm:$0xf]
    %v4478 = vld [vmem:[#allocation17 + $0xc] sm:$0xf]
    %v4479 = vld [vmem:[#allocation17 + $0x10] sm:$0xf]
    %v4480 = vld [vmem:[#allocation17 + $0x14] sm:$0xf]
    %v4481 = vld [vmem:[#allocation17 + $0x18] sm:$0xf]
    %v4482 = vld [vmem:[#allocation17 + $0x1c] sm:$0xf]
    %v4483 = vld [vmem:[#allocation17 + $0x20] sm:$0xf]
    %v4484 = vld [vmem:[#allocation17 + $0x24] sm:$0xf]
    %v4485 = vld [vmem:[#allocation17 + $0x28] sm:$0xf]
    %v4486 = vld [vmem:[#allocation17 + $0x2c] sm:$0xf]
    %v4487 = vld [vmem:[#allocation17 + $0x30] sm:$0xf]
    %v4488 = vld [vmem:[#allocation17 + $0x34] sm:$0xf]
    %v4489 = vld [vmem:[#allocation17 + $0x38] sm:$0xf]
    %v4490 = vld [vmem:[#allocation17 + $0x3c] sm:$0xf]
    %v4507 = vunpack.c.l.b16 %v4475
    %v4508 = vunpack.c.l.b16 %v4476
    %v4509 = vunpack.c.l.b16 %v4477
    %v4510 = vunpack.c.l.b16 %v4478
    %v4511 = vunpack.c.l.b16 %v4479
    %v4512 = vunpack.c.l.b16 %v4480
    %v4513 = vunpack.c.l.b16 %v4481
    %v4514 = vunpack.c.l.b16 %v4482
    %v4515 = vunpack.c.l.b16 %v4483
    %v4516 = vunpack.c.l.b16 %v4484
    %v4517 = vunpack.c.l.b16 %v4485
    %v4518 = vunpack.c.l.b16 %v4486
    %v4519 = vunpack.c.l.b16 %v4487
    %v4520 = vunpack.c.l.b16 %v4488
    %v4521 = vunpack.c.l.b16 %v4489
    %v4522 = vunpack.c.l.b16 %v4490
    %v4523 = vpack.c.b16 %v4508, %v4507
    %v4524 = vpack.c.b16 %v4510, %v4509
    %v4525 = vpack.c.b16 %v4512, %v4511
    %v4526 = vpack.c.b16 %v4514, %v4513
    %v4527 = vpack.c.b16 %v4516, %v4515
    %v4528 = vpack.c.b16 %v4518, %v4517
    %v4529 = vpack.c.b16 %v4520, %v4519
    %v4530 = vpack.c.b16 %v4522, %v4521
    %4539 = vmatpush.bf16.msra.mxu0 %v4530
    %4540 = vmatpush.bf16.msra.mxu0 %v4529
    %4541 = vmatpush.bf16.msra.mxu0 %v4528
    %4542 = vmatpush.bf16.msra.mxu0 %v4527
    %4543 = vmatpush.bf16.msra.mxu0 %v4526
    %4544 = vmatpush.bf16.msra.mxu0 %v4525
    %4545 = vmatpush.bf16.msra.mxu0 %v4524
    %4546 = vmatpush.bf16.msra.mxu0 %v4523
    %4547 = vmatmul.bf16.gmra.mxu0 %v4474
    %v4548 = vpop.f32.mrf.mxu0
    %v4549 = vadd.f32 0.0, %v4548
    %v4550 = vpop.f32.mrf.mxu0
    %4551 = vdwg.mxu0
    %v4553 = vrot.slane %v4457, 3
    %v4571 = vunpack.c.l.b16 %v4458
    %v4572 = vunpack.c.l.b16 %v4459
    %v4573 = vunpack.c.l.b16 %v4460
    %v4574 = vunpack.c.l.b16 %v4461
    %v4575 = vunpack.c.l.b16 %v4462
    %v4576 = vunpack.c.l.b16 %v4463
    %v4577 = vunpack.c.l.b16 %v4464
    %v4578 = vunpack.c.l.b16 %v4465
    %v4579 = vunpack.c.l.b16 %v4466
    %v4580 = vunpack.c.l.b16 %v4467
    %v4581 = vunpack.c.l.b16 %v4468
    %v4582 = vunpack.c.l.b16 %v4469
    %v4583 = vunpack.c.l.b16 %v4470
    %v4584 = vunpack.c.l.b16 %v4471
    %v4585 = vunpack.c.l.b16 %v4472
    %v4586 = vunpack.c.l.b16 %v4473
    %v4587 = vpack.c.b16 %v4572, %v4571
    %v4588 = vpack.c.b16 %v4574, %v4573
    %v4589 = vpack.c.b16 %v4576, %v4575
    %v4590 = vpack.c.b16 %v4578, %v4577
    %v4591 = vpack.c.b16 %v4580, %v4579
    %v4592 = vpack.c.b16 %v4582, %v4581
    %v4593 = vpack.c.b16 %v4584, %v4583
    %v4594 = vpack.c.b16 %v4586, %v4585
    %4603 = vmatpush.bf16.msra.mxu0 %v4594
    %4604 = vmatpush.bf16.msra.mxu0 %v4593
    %4605 = vmatpush.bf16.msra.mxu0 %v4592
    %4606 = vmatpush.bf16.msra.mxu0 %v4591
    %4607 = vmatpush.bf16.msra.mxu0 %v4590
    %4608 = vmatpush.bf16.msra.mxu0 %v4589
    %4609 = vmatpush.bf16.msra.mxu0 %v4588
    %4610 = vmatpush.bf16.msra.mxu0 %v4587
    %4611 = vmatmul.bf16.gmra.mxu0 %v4553
    %v4612 = vpop.f32.mrf.mxu0
    %v4613 = vadd.f32 %v4549, %v4612
    %v4614 = vpop.f32.mrf.mxu0
    %4615 = vdwg.mxu0
    %v4616 = vld [vmem:[#allocation19] sm:$0x1]
    %v4618 = vperm.slane %v4616, 0
    %v4620 = vadd.f32 %v4613, %v4618
    %vm4621 = vcmask 1041408
    %v4622 = vsel %vm4621, %v4620, -inf
    %4623 = vmax.xlane.f32.xlu0 %v4622
    %v4624 = vpop.xlane.xlu0 %4623
    %v4625 = vsub.f32 %v4620, %v4624
    %v4626 = vmul.f32 %v4625, 1.442695
    %v4627 = vpow.pop %v4626
    %v4628 = vsel %vm4621, %v4627, 0.0
    %4629 = vadd.xlane.f32.xlu0 %v4628
    %v4630 = vpop.xlane.xlu0 %4629
    %v4631 = vlog2.pop %v4630
    %v4632 = vmul.f32 %v4631, 0.6931472
    %v4633 = vsub.f32 %v4625, %v4632
    %4634 = vst [vmem:[#allocation20] sm:$0x3] %v4633
    // Predicated region
    $region130: #{_lambda_.1} parent=1 // pred_check
      _
    $region131: #{_lambda_.1} parent=1 // pred_check_branch
      %4636 = sbr.rel (0) target = $region133
    $region132: #{_lambda_.1} parent=1 // pred_region
      %4638 = vsyncadd [#allocation4], 0
      %s4640 = sshll.u32 [#allocation20], 4
      %s4641 = int_to_ptr.vmem [resolvable:$true] %s4640
      %s4642 = sshll.u32 %s21, 4
      %s4643 = int_to_ptr.hbm [resolvable:$true] %s4642
      %4645 = dma.vmem_to_hbm [thread:$0]  %s4641, 32, %s4643, [#allocation4]
    $region133: #{_lambda_.1} parent=1 // pred_fallthru
      _
    // Predicated region
    $region134: #{_lambda_.1} parent=1 // pred_check
      _
    $region135: #{_lambda_.1} parent=1 // pred_check_branch
      %4647 = sbr.rel (0) target = $region137
    $region136: #{_lambda_.1} parent=1 // pred_region
      %4649 = dma.done [#allocation4], 32
    $region137: #{_lambda_.1} parent=1 // pred_fallthru
      _
    %4650 = vsyncpa [#allocation3], 1
    %4651 = vsyncpa [#allocation6], 1
    %4652 = vsyncpa [#allocation9], 1
    %4653 = vsyncpa [#allocation12], 1
    %4654 = vsyncpa [#allocation15], 1
    %4655 = vsyncpa [#allocation18], 1
    %4656 = vsyncpa [#allocation4], 1

</llo_original>
